<compile_context>
chip_gen: v5e
topology: v5e:2x2
jax: 0.10.0
libtpu: 0.0.40
codegen_flags: <defaults>
</compile_context>

<pallas_src>
import math

import jax
import jax.numpy as jnp
from jax.experimental import pallas as pl
from jax.experimental.pallas import tpu as pltpu

# ----------------------------- config (small, synthetic BERT) ------------------
B = 2              # batch
S = 8              # sequence length
H = 32             # bert hidden size
NUM_HEADS = 4
DH = H // NUM_HEADS
FFN = 128          # intermediate size
NUM_LAYERS = 2
VOCAB = 100
VOCAB_PAD = 128    # word table padded to a lane-aligned contraction dim
NUM_LABELS = 3
CLF_HIDDEN = 64    # classifier MLP hidden size (nn.Linear(D_in, 64))
LOGIT_PAD = 128    # lane-dense padded logits width (sliced to NUM_LABELS outside)
LN_EPS = 1e-12
N_TOK = B * S
ATTN_SCALE = 1.0 / math.sqrt(DH)

# ---- row layout of the (VEC_ROWS, H) "narrow vector" slab ----------------------
V_POS = 0                       # rows 0..S-1 : position embeddings
V_TYPE = S                      # token-type-0 embedding
V_ELN_G = S + 1                 # embedding LayerNorm gamma
V_ELN_B = S + 2                 # embedding LayerNorm beta
V_LAYER0 = S + 3                # first per-layer block
L_BQ, L_BK, L_BV, L_BO = 0, 1, 2, 3
L_LN1G, L_LN1B, L_B2, L_LN2G, L_LN2B = 4, 5, 6, 7, 8
LAYER_ROWS = 9
VEC_ROWS = V_LAYER0 + NUM_LAYERS * LAYER_ROWS          # 29

# ---- row layout of the (WIDE_ROWS, 128) "wide" slab ----------------------------
W_B1 = 0                        # rows 0..NUM_LAYERS-1 : ffn intermediate bias
W_BC1 = NUM_LAYERS              # classifier bias 1 (lanes 0:CLF_HIDDEN)
W_BC2 = NUM_LAYERS + 1          # classifier bias 2 (lanes 0:NUM_LABELS, rest 0)
W_WC1 = 8                       # rows 8..8+H-1      : clf W1 (lanes 0:CLF_HIDDEN)
W_WC2 = W_WC1 + H               # rows 40..103       : clf W2 (lanes 0:NUM_LABELS)
WIDE_ROWS = W_WC2 + CLF_HIDDEN  # 104


# ----------------------------- in-kernel helpers --------------------------------
def _layernorm(x, g, b):
    mu = jnp.mean(x, axis=-1, keepdims=True)
    var = jnp.mean((x - mu) ** 2, axis=-1, keepdims=True)
    return (x - mu) * jax.lax.rsqrt(var + LN_EPS) * g + b


def _gelu(x):
    # Exact erf GELU (HF BERT default); lax.erf lowers on Mosaic.
    return 0.5 * x * (1.0 + jax.lax.erf(x * 0.7071067811865475))


# ----------------------------- fully fused forward kernel -----------------------
def fused_forward_kernel(tok_ref, word_ref, vec_ref, qkv_ref, wo_ref,
                         w1_ref, w2_ref, wide_ref,
                         logits_ref, loss_ref):
    f32 = jnp.float32

    ids = tok_ref[:, 0:1]                                            # (N,1) int32
    labels = tok_ref[:, 1:2]                                         # (N,1) int32

    # ---- embeddings: gather via one-hot matmul (N, VOCAB_PAD) @ (VOCAB_PAD, H) -
    vcol = jax.lax.broadcasted_iota(jnp.int32, (N_TOK, VOCAB_PAD), 1)
    onehot_ids = (vcol == ids).astype(f32)
    we = jnp.dot(onehot_ids, word_ref[...], preferred_element_type=f32)  # (N, H)

    pos = vec_ref[V_POS:V_POS + S, :]                                # (S, H)
    tt = vec_ref[V_TYPE:V_TYPE + 1, :]                               # (1, H), ids==0
    # broadcast add of position / token-type embeddings (no concat copy)
    x = (we.reshape(B, S, H) + pos[None, :, :] + tt[None, :, :]).reshape(N_TOK, H)
    x = _layernorm(x, vec_ref[V_ELN_G:V_ELN_G + 1, :], vec_ref[V_ELN_B:V_ELN_B + 1, :])

    hidden_sum = x                                                   # hidden_states[0]
    # TODO(synk): no attention_mask is applied (matches reference only for
    # fully valid sequences, i.e. no padding tokens).

    # ---- transformer encoder layers --------------------------------------------
    for l in range(NUM_LAYERS):
        base = V_LAYER0 + l * LAYER_ROWS
        bo = vec_ref[base + L_BO:base + L_BO + 1, :]
        ln1g = vec_ref[base + L_LN1G:base + L_LN1G + 1, :]
        ln1b = vec_ref[base + L_LN1B:base + L_LN1B + 1, :]
        b2 = vec_ref[base + L_B2:base + L_B2 + 1, :]
        ln2g = vec_ref[base + L_LN2G:base + L_LN2G + 1, :]
        ln2b = vec_ref[base + L_LN2B:base + L_LN2B + 1, :]
        b1 = wide_ref[W_B1 + l:W_B1 + l + 1, :]                      # (1, FFN)

        # ---- multi-head self-attention: head index lives on weight leading axes,
        #      so there are zero lane slices / concats on activations.
        attn = jnp.zeros((N_TOK, H), f32)
        for hd in range(NUM_HEADS):
            lo = hd * DH
            wq_h = qkv_ref[(l * 3 + 0) * NUM_HEADS + hd]             # (H, DH)
            wk_h = qkv_ref[(l * 3 + 1) * NUM_HEADS + hd]
            wv_h = qkv_ref[(l * 3 + 2) * NUM_HEADS + hd]
            wo_h = wo_ref[l * NUM_HEADS + hd]                        # (DH, H)
            bq_h = vec_ref[base + L_BQ:base + L_BQ + 1, lo:lo + DH]  # (1, DH)
            bk_h = vec_ref[base + L_BK:base + L_BK + 1, lo:lo + DH]
            bv_h = vec_ref[base + L_BV:base + L_BV + 1, lo:lo + DH]

            q_h = (jnp.dot(x, wq_h, preferred_element_type=f32) + bq_h).reshape(B, S, DH)
            k_h = (jnp.dot(x, wk_h, preferred_element_type=f32) + bk_h).reshape(B, S, DH)
            v_h = (jnp.dot(x, wv_h, preferred_element_type=f32) + bv_h).reshape(B, S, DH)

            s = jnp.einsum('bqd,bkd->bqk', q_h, k_h,
                           preferred_element_type=f32) * ATTN_SCALE  # (B, S, S)
            s = s - jnp.max(s, axis=-1, keepdims=True)
            p = jnp.exp(s)
            inv = pl.reciprocal(jnp.sum(p, axis=-1, keepdims=True), approx=True)
            ctx = jnp.einsum('bqk,bkd->bqd', p, v_h,
                             preferred_element_type=f32) * inv       # (B, S, DH)
            # fold head back via its (DH,H) slice of the output projection
            attn = attn + jnp.dot(ctx.reshape(N_TOK, DH), wo_h,
                                  preferred_element_type=f32)
        attn = attn + bo
        x1 = _layernorm(x + attn, ln1g, ln1b)

        mid = _gelu(jnp.dot(x1, w1_ref[l], preferred_element_type=f32) + b1)
        ffn = jnp.dot(mid, w2_ref[l], preferred_element_type=f32) + b2
        x = _layernorm(x1 + ffn, ln2g, ln2b)

        hidden_sum = hidden_sum + x                                  # accumulate hidden states

    # ---- classifier MLP on the summed hidden states -----------------------------
    wc1 = wide_ref[W_WC1:W_WC1 + H, 0:CLF_HIDDEN]                    # (H, 64)
    bc1 = wide_ref[W_BC1:W_BC1 + 1, 0:CLF_HIDDEN]                    # (1, 64)
    wc2 = wide_ref[W_WC2:W_WC2 + CLF_HIDDEN, :]                      # (64, 128)
    bc2 = wide_ref[W_BC2:W_BC2 + 1, :]                               # (1, 128)

    h1 = jnp.maximum(jnp.dot(hidden_sum, wc1, preferred_element_type=f32) + bc1, 0.0)
    # dropout(p=0.5) is identity in eval mode
    logits = jnp.dot(h1, wc2, preferred_element_type=f32) + bc2      # (N, 128)
    logits_ref[...] = logits                                         # lane-dense store

    # ---- token-level cross entropy (only lanes < NUM_LABELS are real) ----------
    lane = jax.lax.broadcasted_iota(jnp.int32, (N_TOK, LOGIT_PAD), 1)
    masked = jnp.where(lane < NUM_LABELS, logits, -1e30)
    m = jnp.max(masked, axis=-1, keepdims=True)
    lse = m + jnp.log(jnp.sum(jnp.exp(masked - m), axis=-1, keepdims=True))
    onehot_lbl = (lane == labels).astype(f32)
    picked = jnp.sum(logits * onehot_lbl, axis=-1, keepdims=True)
    loss_ref[0, 0] = jnp.sum(lse - picked) * (1.0 / N_TOK)           # mean, in SMEM


# ----------------------------- wrapper -------------------------------------------
def sep_layer_bert_forward(input_ids, labels, params):
    tok = jnp.concatenate([input_ids.reshape(N_TOK, 1),
                           labels.reshape(N_TOK, 1)], axis=1).astype(jnp.int32)

    args = [tok, params['word'], params['vec'], params['attn_qkv'],
            params['attn_wo'], params['ffn_w1'], params['ffn_w2'], params['wide']]

    in_specs = [pl.BlockSpec(a.shape, (lambda i, nd=a.ndim: (0,) * nd)) for a in args]

    logits_pad, loss = pl.pallas_call(
        fused_forward_kernel,
        out_shape=(jax.ShapeDtypeStruct((N_TOK, LOGIT_PAD), jnp.float32),
                   jax.ShapeDtypeStruct((1, 1), jnp.float32)),
        grid=(1,),
        in_specs=in_specs,
        out_specs=(pl.BlockSpec((N_TOK, LOGIT_PAD), lambda i: (0, 0)),
                   pl.BlockSpec(memory_space=pltpu.SMEM)),
        compiler_params=pltpu.CompilerParams(dimension_semantics=("arbitrary",)),
    )(*args)

    logits = logits_pad[:, :NUM_LABELS].reshape(B, S, NUM_LABELS)
    return loss[0, 0], logits


# ----------------------------- deterministic parameter init ----------------------
def make_params(key):
    keys = iter(jax.random.split(key, 64))

    def nrm(shape, scale=0.02):
        return scale * jax.random.normal(next(keys), shape, jnp.float32)

    word_pad = jnp.zeros((VOCAB_PAD, H), jnp.float32).at[:VOCAB].set(nrm((VOCAB, H)))

    vec = jnp.zeros((VEC_ROWS, H), jnp.float32)
    vec = vec.at[V_POS:V_POS + S].set(nrm((S, H)))
    vec = vec.at[V_TYPE].set(nrm((H,)))
    vec = vec.at[V_ELN_G].set(jnp.ones((H,), jnp.float32))           # beta stays 0

    wide = jnp.zeros((WIDE_ROWS, LOGIT_PAD), jnp.float32)

    qkv_blocks, wo_blocks, w1_list, w2_list = [], [], [], []
    for l in range(NUM_LAYERS):
        base = V_LAYER0 + l * LAYER_ROWS
        wq, wk, wv, wo = nrm((H, H)), nrm((H, H)), nrm((H, H)), nrm((H, H))
        # head -> leading axis: (H,H) -> (NUM_HEADS, H, DH); wo -> (NUM_HEADS, DH, H)
        for w in (wq, wk, wv):
            qkv_blocks.append(jnp.transpose(w.reshape(H, NUM_HEADS, DH), (1, 0, 2)))
        wo_blocks.append(wo.reshape(NUM_HEADS, DH, H))
        w1_list.append(nrm((H, FFN)))
        w2_list.append(nrm((FFN, H)))

        vec = vec.at[base + L_BQ].set(nrm((H,)))
        vec = vec.at[base + L_BK].set(nrm((H,)))
        vec = vec.at[base + L_BV].set(nrm((H,)))
        vec = vec.at[base + L_BO].set(nrm((H,)))
        vec = vec.at[base + L_LN1G].set(jnp.ones((H,), jnp.float32))
        vec = vec.at[base + L_B2].set(nrm((H,)))
        vec = vec.at[base + L_LN2G].set(jnp.ones((H,), jnp.float32))
        wide = wide.at[W_B1 + l].set(nrm((FFN,)))

    attn_qkv = jnp.concatenate(qkv_blocks, axis=0)                   # (L*3*NH, H, DH)
    attn_wo = jnp.concatenate(wo_blocks, axis=0)                     # (L*NH, DH, H)
    ffn_w1 = jnp.stack(w1_list)                                      # (L, H, FFN)
    ffn_w2 = jnp.stack(w2_list)                                      # (L, FFN, H)

    wide = wide.at[W_BC1, :CLF_HIDDEN].set(nrm((CLF_HIDDEN,)))
    wide = wide.at[W_BC2, :NUM_LABELS].set(nrm((NUM_LABELS,)))
    wide = wide.at[W_WC1:W_WC1 + H, :CLF_HIDDEN].set(nrm((H, CLF_HIDDEN)))
    wide = wide.at[W_WC2:W_WC2 + CLF_HIDDEN, :NUM_LABELS].set(nrm((CLF_HIDDEN, NUM_LABELS)))

    return dict(word=word_pad, vec=vec, attn_qkv=attn_qkv, attn_wo=attn_wo,
                ffn_w1=ffn_w1, ffn_w2=ffn_w2, wide=wide)


# ----------------------------- main ----------------------------------------------
if __name__ == "__main__":
    root = jax.random.PRNGKey(0)
    k_params, k_ids, k_lbl = jax.random.split(root, 3)

    params = make_params(k_params)
    input_ids = jax.random.randint(k_ids, (B, S), 0, VOCAB, dtype=jnp.int32)
    labels = jax.random.randint(k_lbl, (B, S), 0, NUM_LABELS, dtype=jnp.int32)

    fwd = jax.jit(sep_layer_bert_forward)
    loss, logits = fwd(input_ids, labels, params)
    jax.block_until_ready((loss, logits))

    assert logits.shape == (B, S, NUM_LABELS)
    assert loss.shape == ()
    assert bool(jnp.isfinite(loss))
    assert bool(jnp.all(jnp.isfinite(logits)))
    print("KERNEL_OK")
</pallas_src>

<mosaic_0001>
module attributes {stable_mosaic.version = 11 : i64} {
  func.func @fused_forward_kernel(%arg0: i32, %arg1: memref<16x2xi32, #tpu.memory_space<vmem>>, %arg2: memref<128x32xf32, #tpu.memory_space<vmem>>, %arg3: memref<29x32xf32, #tpu.memory_space<vmem>>, %arg4: memref<24x32x8xf32, #tpu.memory_space<vmem>>, %arg5: memref<8x8x32xf32, #tpu.memory_space<vmem>>, %arg6: memref<2x32x128xf32, #tpu.memory_space<vmem>>, %arg7: memref<2x128x32xf32, #tpu.memory_space<vmem>>, %arg8: memref<104x128xf32, #tpu.memory_space<vmem>>, %arg9: memref<16x128xf32, #tpu.memory_space<vmem>>, %arg10: memref<1x1xf32, #tpu.memory_space<smem>>) attributes {dimension_semantics = [#tpu.dimension_semantics<arbitrary>], iteration_bounds = array<i64: 1>, scalar_prefetch = 0 : i64, scratch_operands = 0 : i64, tpu.core_type = #tpu.core_type<tc>, window_params = [{pipeline_mode = #tpu.pipeline_mode<synchronous>, transform_indices = @transform_0, window_bounds = array<i64: 16, 2>}, {pipeline_mode = #tpu.pipeline_mode<synchronous>, transform_indices = @transform_1, window_bounds = array<i64: 128, 32>}, {pipeline_mode = #tpu.pipeline_mode<synchronous>, transform_indices = @transform_2, window_bounds = array<i64: 29, 32>}, {pipeline_mode = #tpu.pipeline_mode<synchronous>, transform_indices = @transform_3, window_bounds = array<i64: 24, 32, 8>}, {pipeline_mode = #tpu.pipeline_mode<synchronous>, transform_indices = @transform_4, window_bounds = array<i64: 8, 8, 32>}, {pipeline_mode = #tpu.pipeline_mode<synchronous>, transform_indices = @transform_5, window_bounds = array<i64: 2, 32, 128>}, {pipeline_mode = #tpu.pipeline_mode<synchronous>, transform_indices = @transform_6, window_bounds = array<i64: 2, 128, 32>}, {pipeline_mode = #tpu.pipeline_mode<synchronous>, transform_indices = @transform_7, window_bounds = array<i64: 104, 128>}, {pipeline_mode = #tpu.pipeline_mode<synchronous>, transform_indices = @transform_8, window_bounds = array<i64: 16, 128>}, {transform_indices = @transform_9, window_bounds = array<i64: 1, 1>}]} {
    %c0 = arith.constant 0 : index
    %c0_0 = arith.constant 0 : index
    %0 = vector.load %arg1[%c0, %c0_0] : memref<16x2xi32, #tpu.memory_space<vmem>>, vector<16x1xi32>
    %c0_1 = arith.constant 0 : index
    %c1 = arith.constant 1 : index
    %1 = vector.load %arg1[%c0_1, %c1] : memref<16x2xi32, #tpu.memory_space<vmem>>, vector<16x1xi32>
    %2 = tpu.iota {dimensions = array<i32: 1>} : vector<16x128xi32>
    %3 = vector.broadcast %0 : vector<16x1xi32> to vector<16x128xi32>
    %4 = arith.cmpi eq, %2, %3 : vector<16x128xi32>
    %5 = arith.extui %4 : vector<16x128xi1> to vector<16x128xi32>
    %6 = arith.sitofp %5 : vector<16x128xi32> to vector<16x128xf32>
    %c0_2 = arith.constant 0 : index
    %c0_3 = arith.constant 0 : index
    %7 = vector.load %arg2[%c0_2, %c0_3] : memref<128x32xf32, #tpu.memory_space<vmem>>, vector<128x32xf32>
    %cst = arith.constant dense<0.000000e+00> : vector<16x32xf32>
    %8 = tpu.matmul %6, %7, %cst {dimension_numbers = #tpu.dot_dimension_numbers<[1], [0], [0], [1], [0, 0, 1, 1], [], []>} : vector<16x128xf32>, vector<128x32xf32>, vector<16x32xf32> -> vector<16x32xf32>
    %c0_4 = arith.constant 0 : index
    %c0_5 = arith.constant 0 : index
    %9 = vector.load %arg3[%c0_4, %c0_5] : memref<29x32xf32, #tpu.memory_space<vmem>>, vector<8x32xf32>
    %c8 = arith.constant 8 : index
    %c0_6 = arith.constant 0 : index
    %10 = vector.load %arg3[%c8, %c0_6] : memref<29x32xf32, #tpu.memory_space<vmem>>, vector<1x32xf32>
    %11 = vector.shape_cast %8 : vector<16x32xf32> to vector<2x8x32xf32>
    %12 = vector.shape_cast %9 : vector<8x32xf32> to vector<1x8x32xf32>
    %13 = vector.broadcast %12 : vector<1x8x32xf32> to vector<2x8x32xf32>
    %14 = arith.addf %11, %13 : vector<2x8x32xf32>
    %15 = vector.shape_cast %10 : vector<1x32xf32> to vector<1x1x32xf32>
    %16 = vector.broadcast %15 : vector<1x1x32xf32> to vector<2x8x32xf32>
    %17 = arith.addf %14, %16 : vector<2x8x32xf32>
    %18 = vector.shape_cast %17 : vector<2x8x32xf32> to vector<16x32xf32>
    %c9 = arith.constant 9 : index
    %c0_7 = arith.constant 0 : index
    %19 = vector.load %arg3[%c9, %c0_7] : memref<29x32xf32, #tpu.memory_space<vmem>>, vector<1x32xf32>
    %c10 = arith.constant 10 : index
    %c0_8 = arith.constant 0 : index
    %20 = vector.load %arg3[%c10, %c0_8] : memref<29x32xf32, #tpu.memory_space<vmem>>, vector<1x32xf32>
    %cst_9 = arith.constant dense<0.000000e+00> : vector<16xf32>
    %21 = vector.multi_reduction <add>, %18, %cst_9 [1] : vector<16x32xf32> to vector<16xf32>
    %22 = vector.shape_cast %21 : vector<16xf32> to vector<16x1xf32>
    %cst_10 = arith.constant 3.200000e+01 : f32
    %23 = vector.broadcast %cst_10 : f32 to vector<16x1xf32>
    %24 = arith.divf %22, %23 : vector<16x1xf32>
    %25 = vector.broadcast %24 : vector<16x1xf32> to vector<16x32xf32>
    %26 = arith.subf %18, %25 : vector<16x32xf32>
    %27 = arith.mulf %26, %26 : vector<16x32xf32>
    %cst_11 = arith.constant dense<0.000000e+00> : vector<16xf32>
    %28 = vector.multi_reduction <add>, %27, %cst_11 [1] : vector<16x32xf32> to vector<16xf32>
    %29 = vector.shape_cast %28 : vector<16xf32> to vector<16x1xf32>
    %cst_12 = arith.constant 3.200000e+01 : f32
    %30 = vector.broadcast %cst_12 : f32 to vector<16x1xf32>
    %31 = arith.divf %29, %30 : vector<16x1xf32>
    %32 = vector.broadcast %24 : vector<16x1xf32> to vector<16x32xf32>
    %33 = arith.subf %18, %32 : vector<16x32xf32>
    %cst_13 = arith.constant 9.99999996E-13 : f32
    %34 = vector.broadcast %cst_13 : f32 to vector<16x1xf32>
    %35 = arith.addf %31, %34 : vector<16x1xf32>
    %36 = math.rsqrt %35 : vector<16x1xf32>
    %37 = vector.broadcast %36 : vector<16x1xf32> to vector<16x32xf32>
    %38 = arith.mulf %33, %37 : vector<16x32xf32>
    %39 = vector.broadcast %19 : vector<1x32xf32> to vector<16x32xf32>
    %40 = arith.mulf %38, %39 : vector<16x32xf32>
    %41 = vector.broadcast %20 : vector<1x32xf32> to vector<16x32xf32>
    %42 = arith.addf %40, %41 : vector<16x32xf32>
    %c14 = arith.constant 14 : index
    %c0_14 = arith.constant 0 : index
    %43 = vector.load %arg3[%c14, %c0_14] : memref<29x32xf32, #tpu.memory_space<vmem>>, vector<1x32xf32>
    %c15 = arith.constant 15 : index
    %c0_15 = arith.constant 0 : index
    %44 = vector.load %arg3[%c15, %c0_15] : memref<29x32xf32, #tpu.memory_space<vmem>>, vector<1x32xf32>
    %c16 = arith.constant 16 : index
    %c0_16 = arith.constant 0 : index
    %45 = vector.load %arg3[%c16, %c0_16] : memref<29x32xf32, #tpu.memory_space<vmem>>, vector<1x32xf32>
    %c17 = arith.constant 17 : index
    %c0_17 = arith.constant 0 : index
    %46 = vector.load %arg3[%c17, %c0_17] : memref<29x32xf32, #tpu.memory_space<vmem>>, vector<1x32xf32>
    %c18 = arith.constant 18 : index
    %c0_18 = arith.constant 0 : index
    %47 = vector.load %arg3[%c18, %c0_18] : memref<29x32xf32, #tpu.memory_space<vmem>>, vector<1x32xf32>
    %c19 = arith.constant 19 : index
    %c0_19 = arith.constant 0 : index
    %48 = vector.load %arg3[%c19, %c0_19] : memref<29x32xf32, #tpu.memory_space<vmem>>, vector<1x32xf32>
    %c0_20 = arith.constant 0 : index
    %c0_21 = arith.constant 0 : index
    %49 = vector.load %arg8[%c0_20, %c0_21] : memref<104x128xf32, #tpu.memory_space<vmem>>, vector<1x128xf32>
    %cst_22 = arith.constant 0.000000e+00 : f32
    %50 = vector.broadcast %cst_22 : f32 to vector<16x32xf32>
    %c0_23 = arith.constant 0 : index
    %c0_24 = arith.constant 0 : index
    %c0_25 = arith.constant 0 : index
    %51 = vector.load %arg4[%c0_23, %c0_24, %c0_25] : memref<24x32x8xf32, #tpu.memory_space<vmem>>, vector<1x32x8xf32>
    %52 = vector.shape_cast %51 : vector<1x32x8xf32> to vector<32x8xf32>
    %c4 = arith.constant 4 : index
    %c0_26 = arith.constant 0 : index
    %c0_27 = arith.constant 0 : index
    %53 = vector.load %arg4[%c4, %c0_26, %c0_27] : memref<24x32x8xf32, #tpu.memory_space<vmem>>, vector<1x32x8xf32>
    %54 = vector.shape_cast %53 : vector<1x32x8xf32> to vector<32x8xf32>
    %c8_28 = arith.constant 8 : index
    %c0_29 = arith.constant 0 : index
    %c0_30 = arith.constant 0 : index
    %55 = vector.load %arg4[%c8_28, %c0_29, %c0_30] : memref<24x32x8xf32, #tpu.memory_space<vmem>>, vector<1x32x8xf32>
    %56 = vector.shape_cast %55 : vector<1x32x8xf32> to vector<32x8xf32>
    %c0_31 = arith.constant 0 : index
    %c0_32 = arith.constant 0 : index
    %c0_33 = arith.constant 0 : index
    %57 = vector.load %arg5[%c0_31, %c0_32, %c0_33] : memref<8x8x32xf32, #tpu.memory_space<vmem>>, vector<1x8x32xf32>
    %58 = vector.shape_cast %57 : vector<1x8x32xf32> to vector<8x32xf32>
    %c11 = arith.constant 11 : index
    %c0_34 = arith.constant 0 : index
    %59 = vector.load %arg3[%c11, %c0_34] : memref<29x32xf32, #tpu.memory_space<vmem>>, vector<1x8xf32>
    %c12 = arith.constant 12 : index
    %c0_35 = arith.constant 0 : index
    %60 = vector.load %arg3[%c12, %c0_35] : memref<29x32xf32, #tpu.memory_space<vmem>>, vector<1x8xf32>
    %c13 = arith.constant 13 : index
    %c0_36 = arith.constant 0 : index
    %61 = vector.load %arg3[%c13, %c0_36] : memref<29x32xf32, #tpu.memory_space<vmem>>, vector<1x8xf32>
    %cst_37 = arith.constant dense<0.000000e+00> : vector<16x8xf32>
    %62 = tpu.matmul %42, %52, %cst_37 {dimension_numbers = #tpu.dot_dimension_numbers<[1], [0], [0], [1], [0, 0, 1, 1], [], []>} : vector<16x32xf32>, vector<32x8xf32>, vector<16x8xf32> -> vector<16x8xf32>
    %63 = vector.broadcast %59 : vector<1x8xf32> to vector<16x8xf32>
    %64 = arith.addf %62, %63 : vector<16x8xf32>
    %65 = vector.shape_cast %64 : vector<16x8xf32> to vector<2x8x8xf32>
    %cst_38 = arith.constant dense<0.000000e+00> : vector<16x8xf32>
    %66 = tpu.matmul %42, %54, %cst_38 {dimension_numbers = #tpu.dot_dimension_numbers<[1], [0], [0], [1], [0, 0, 1, 1], [], []>} : vector<16x32xf32>, vector<32x8xf32>, vector<16x8xf32> -> vector<16x8xf32>
    %67 = vector.broadcast %60 : vector<1x8xf32> to vector<16x8xf32>
    %68 = arith.addf %66, %67 : vector<16x8xf32>
    %69 = vector.shape_cast %68 : vector<16x8xf32> to vector<2x8x8xf32>
    %cst_39 = arith.constant dense<0.000000e+00> : vector<16x8xf32>
    %70 = tpu.matmul %42, %56, %cst_39 {dimension_numbers = #tpu.dot_dimension_numbers<[1], [0], [0], [1], [0, 0, 1, 1], [], []>} : vector<16x32xf32>, vector<32x8xf32>, vector<16x8xf32> -> vector<16x8xf32>
    %71 = vector.broadcast %61 : vector<1x8xf32> to vector<16x8xf32>
    %72 = arith.addf %70, %71 : vector<16x8xf32>
    %73 = vector.shape_cast %72 : vector<16x8xf32> to vector<2x8x8xf32>
    "tpu.trace_start"() <{level = 10 : i32, message = "bqd,bkd->bqk"}> : () -> ()
    %cst_40 = arith.constant dense<0.000000e+00> : vector<2x8x8xf32>
    %74 = tpu.matmul %65, %69, %cst_40 {dimension_numbers = #tpu.dot_dimension_numbers<[2], [2], [1], [1], [0, 0, 0, 1, 1, 1], [0], [0]>} : vector<2x8x8xf32>, vector<2x8x8xf32>, vector<2x8x8xf32> -> vector<2x8x8xf32>
    "tpu.trace_stop"() : () -> ()
    %cst_41 = arith.constant 0.353553385 : f32
    %75 = vector.broadcast %cst_41 : f32 to vector<2x8x8xf32>
    %76 = arith.mulf %74, %75 : vector<2x8x8xf32>
    %cst_42 = arith.constant dense<0xFF800000> : vector<2x8xf32>
    %77 = vector.multi_reduction <maximumf>, %76, %cst_42 [2] : vector<2x8x8xf32> to vector<2x8xf32>
    %78 = vector.shape_cast %77 : vector<2x8xf32> to vector<2x8x1xf32>
    %79 = vector.broadcast %78 : vector<2x8x1xf32> to vector<2x8x8xf32>
    %80 = arith.subf %76, %79 : vector<2x8x8xf32>
    %81 = math.exp %80 : vector<2x8x8xf32>
    %cst_43 = arith.constant dense<0.000000e+00> : vector<2x8xf32>
    %82 = vector.multi_reduction <add>, %81, %cst_43 [2] : vector<2x8x8xf32> to vector<2x8xf32>
    %83 = vector.shape_cast %82 : vector<2x8xf32> to vector<2x8x1xf32>
    %84 = tpu.reciprocal %83 {approx = true} : vector<2x8x1xf32> -> vector<2x8x1xf32>
    "tpu.trace_start"() <{level = 10 : i32, message = "bqk,bkd->bqd"}> : () -> ()
    %cst_44 = arith.constant dense<0.000000e+00> : vector<2x8x8xf32>
    %85 = tpu.matmul %81, %73, %cst_44 {dimension_numbers = #tpu.dot_dimension_numbers<[2], [1], [1], [2], [0, 0, 0, 1, 1, 2], [0], [0]>} : vector<2x8x8xf32>, vector<2x8x8xf32>, vector<2x8x8xf32> -> vector<2x8x8xf32>
    "tpu.trace_stop"() : () -> ()
    %86 = vector.broadcast %84 : vector<2x8x1xf32> to vector<2x8x8xf32>
    %87 = arith.mulf %85, %86 : vector<2x8x8xf32>
    %88 = vector.shape_cast %87 : vector<2x8x8xf32> to vector<16x8xf32>
    %cst_45 = arith.constant dense<0.000000e+00> : vector<16x32xf32>
    %89 = tpu.matmul %88, %58, %cst_45 {dimension_numbers = #tpu.dot_dimension_numbers<[1], [0], [0], [1], [0, 0, 1, 1], [], []>} : vector<16x8xf32>, vector<8x32xf32>, vector<16x32xf32> -> vector<16x32xf32>
    %90 = arith.addf %50, %89 : vector<16x32xf32>
    %c1_46 = arith.constant 1 : index
    %c0_47 = arith.constant 0 : index
    %c0_48 = arith.constant 0 : index
    %91 = vector.load %arg4[%c1_46, %c0_47, %c0_48] : memref<24x32x8xf32, #tpu.memory_space<vmem>>, vector<1x32x8xf32>
    %92 = vector.shape_cast %91 : vector<1x32x8xf32> to vector<32x8xf32>
    %c5 = arith.constant 5 : index
    %c0_49 = arith.constant 0 : index
    %c0_50 = arith.constant 0 : index
    %93 = vector.load %arg4[%c5, %c0_49, %c0_50] : memref<24x32x8xf32, #tpu.memory_space<vmem>>, vector<1x32x8xf32>
    %94 = vector.shape_cast %93 : vector<1x32x8xf32> to vector<32x8xf32>
    %c9_51 = arith.constant 9 : index
    %c0_52 = arith.constant 0 : index
    %c0_53 = arith.constant 0 : index
    %95 = vector.load %arg4[%c9_51, %c0_52, %c0_53] : memref<24x32x8xf32, #tpu.memory_space<vmem>>, vector<1x32x8xf32>
    %96 = vector.shape_cast %95 : vector<1x32x8xf32> to vector<32x8xf32>
    %c1_54 = arith.constant 1 : index
    %c0_55 = arith.constant 0 : index
    %c0_56 = arith.constant 0 : index
    %97 = vector.load %arg5[%c1_54, %c0_55, %c0_56] : memref<8x8x32xf32, #tpu.memory_space<vmem>>, vector<1x8x32xf32>
    %98 = vector.shape_cast %97 : vector<1x8x32xf32> to vector<8x32xf32>
    %c11_57 = arith.constant 11 : index
    %c8_58 = arith.constant 8 : index
    %99 = vector.load %arg3[%c11_57, %c8_58] : memref<29x32xf32, #tpu.memory_space<vmem>>, vector<1x8xf32>
    %c12_59 = arith.constant 12 : index
    %c8_60 = arith.constant 8 : index
    %100 = vector.load %arg3[%c12_59, %c8_60] : memref<29x32xf32, #tpu.memory_space<vmem>>, vector<1x8xf32>
    %c13_61 = arith.constant 13 : index
    %c8_62 = arith.constant 8 : index
    %101 = vector.load %arg3[%c13_61, %c8_62] : memref<29x32xf32, #tpu.memory_space<vmem>>, vector<1x8xf32>
    %cst_63 = arith.constant dense<0.000000e+00> : vector<16x8xf32>
    %102 = tpu.matmul %42, %92, %cst_63 {dimension_numbers = #tpu.dot_dimension_numbers<[1], [0], [0], [1], [0, 0, 1, 1], [], []>} : vector<16x32xf32>, vector<32x8xf32>, vector<16x8xf32> -> vector<16x8xf32>
    %103 = vector.broadcast %99 : vector<1x8xf32> to vector<16x8xf32>
    %104 = arith.addf %102, %103 : vector<16x8xf32>
    %105 = vector.shape_cast %104 : vector<16x8xf32> to vector<2x8x8xf32>
    %cst_64 = arith.constant dense<0.000000e+00> : vector<16x8xf32>
    %106 = tpu.matmul %42, %94, %cst_64 {dimension_numbers = #tpu.dot_dimension_numbers<[1], [0], [0], [1], [0, 0, 1, 1], [], []>} : vector<16x32xf32>, vector<32x8xf32>, vector<16x8xf32> -> vector<16x8xf32>
    %107 = vector.broadcast %100 : vector<1x8xf32> to vector<16x8xf32>
    %108 = arith.addf %106, %107 : vector<16x8xf32>
    %109 = vector.shape_cast %108 : vector<16x8xf32> to vector<2x8x8xf32>
    %cst_65 = arith.constant dense<0.000000e+00> : vector<16x8xf32>
    %110 = tpu.matmul %42, %96, %cst_65 {dimension_numbers = #tpu.dot_dimension_numbers<[1], [0], [0], [1], [0, 0, 1, 1], [], []>} : vector<16x32xf32>, vector<32x8xf32>, vector<16x8xf32> -> vector<16x8xf32>
    %111 = vector.broadcast %101 : vector<1x8xf32> to vector<16x8xf32>
    %112 = arith.addf %110, %111 : vector<16x8xf32>
    %113 = vector.shape_cast %112 : vector<16x8xf32> to vector<2x8x8xf32>
    "tpu.trace_start"() <{level = 10 : i32, message = "bqd,bkd->bqk"}> : () -> ()
    %cst_66 = arith.constant dense<0.000000e+00> : vector<2x8x8xf32>
    %114 = tpu.matmul %105, %109, %cst_66 {dimension_numbers = #tpu.dot_dimension_numbers<[2], [2], [1], [1], [0, 0, 0, 1, 1, 1], [0], [0]>} : vector<2x8x8xf32>, vector<2x8x8xf32>, vector<2x8x8xf32> -> vector<2x8x8xf32>
    "tpu.trace_stop"() : () -> ()
    %cst_67 = arith.constant 0.353553385 : f32
    %115 = vector.broadcast %cst_67 : f32 to vector<2x8x8xf32>
    %116 = arith.mulf %114, %115 : vector<2x8x8xf32>
    %cst_68 = arith.constant dense<0xFF800000> : vector<2x8xf32>
    %117 = vector.multi_reduction <maximumf>, %116, %cst_68 [2] : vector<2x8x8xf32> to vector<2x8xf32>
    %118 = vector.shape_cast %117 : vector<2x8xf32> to vector<2x8x1xf32>
    %119 = vector.broadcast %118 : vector<2x8x1xf32> to vector<2x8x8xf32>
    %120 = arith.subf %116, %119 : vector<2x8x8xf32>
    %121 = math.exp %120 : vector<2x8x8xf32>
    %cst_69 = arith.constant dense<0.000000e+00> : vector<2x8xf32>
    %122 = vector.multi_reduction <add>, %121, %cst_69 [2] : vector<2x8x8xf32> to vector<2x8xf32>
    %123 = vector.shape_cast %122 : vector<2x8xf32> to vector<2x8x1xf32>
    %124 = tpu.reciprocal %123 {approx = true} : vector<2x8x1xf32> -> vector<2x8x1xf32>
    "tpu.trace_start"() <{level = 10 : i32, message = "bqk,bkd->bqd"}> : () -> ()
    %cst_70 = arith.constant dense<0.000000e+00> : vector<2x8x8xf32>
    %125 = tpu.matmul %121, %113, %cst_70 {dimension_numbers = #tpu.dot_dimension_numbers<[2], [1], [1], [2], [0, 0, 0, 1, 1, 2], [0], [0]>} : vector<2x8x8xf32>, vector<2x8x8xf32>, vector<2x8x8xf32> -> vector<2x8x8xf32>
    "tpu.trace_stop"() : () -> ()
    %126 = vector.broadcast %124 : vector<2x8x1xf32> to vector<2x8x8xf32>
    %127 = arith.mulf %125, %126 : vector<2x8x8xf32>
    %128 = vector.shape_cast %127 : vector<2x8x8xf32> to vector<16x8xf32>
    %cst_71 = arith.constant dense<0.000000e+00> : vector<16x32xf32>
    %129 = tpu.matmul %128, %98, %cst_71 {dimension_numbers = #tpu.dot_dimension_numbers<[1], [0], [0], [1], [0, 0, 1, 1], [], []>} : vector<16x8xf32>, vector<8x32xf32>, vector<16x32xf32> -> vector<16x32xf32>
    %130 = arith.addf %90, %129 : vector<16x32xf32>
    %c2 = arith.constant 2 : index
    %c0_72 = arith.constant 0 : index
    %c0_73 = arith.constant 0 : index
    %131 = vector.load %arg4[%c2, %c0_72, %c0_73] : memref<24x32x8xf32, #tpu.memory_space<vmem>>, vector<1x32x8xf32>
    %132 = vector.shape_cast %131 : vector<1x32x8xf32> to vector<32x8xf32>
    %c6 = arith.constant 6 : index
    %c0_74 = arith.constant 0 : index
    %c0_75 = arith.constant 0 : index
    %133 = vector.load %arg4[%c6, %c0_74, %c0_75] : memref<24x32x8xf32, #tpu.memory_space<vmem>>, vector<1x32x8xf32>
    %134 = vector.shape_cast %133 : vector<1x32x8xf32> to vector<32x8xf32>
    %c10_76 = arith.constant 10 : index
    %c0_77 = arith.constant 0 : index
    %c0_78 = arith.constant 0 : index
    %135 = vector.load %arg4[%c10_76, %c0_77, %c0_78] : memref<24x32x8xf32, #tpu.memory_space<vmem>>, vector<1x32x8xf32>
    %136 = vector.shape_cast %135 : vector<1x32x8xf32> to vector<32x8xf32>
    %c2_79 = arith.constant 2 : index
    %c0_80 = arith.constant 0 : index
    %c0_81 = arith.constant 0 : index
    %137 = vector.load %arg5[%c2_79, %c0_80, %c0_81] : memref<8x8x32xf32, #tpu.memory_space<vmem>>, vector<1x8x32xf32>
    %138 = vector.shape_cast %137 : vector<1x8x32xf32> to vector<8x32xf32>
    %c11_82 = arith.constant 11 : index
    %c16_83 = arith.constant 16 : index
    %139 = vector.load %arg3[%c11_82, %c16_83] : memref<29x32xf32, #tpu.memory_space<vmem>>, vector<1x8xf32>
    %c12_84 = arith.constant 12 : index
    %c16_85 = arith.constant 16 : index
    %140 = vector.load %arg3[%c12_84, %c16_85] : memref<29x32xf32, #tpu.memory_space<vmem>>, vector<1x8xf32>
    %c13_86 = arith.constant 13 : index
    %c16_87 = arith.constant 16 : index
    %141 = vector.load %arg3[%c13_86, %c16_87] : memref<29x32xf32, #tpu.memory_space<vmem>>, vector<1x8xf32>
    %cst_88 = arith.constant dense<0.000000e+00> : vector<16x8xf32>
    %142 = tpu.matmul %42, %132, %cst_88 {dimension_numbers = #tpu.dot_dimension_numbers<[1], [0], [0], [1], [0, 0, 1, 1], [], []>} : vector<16x32xf32>, vector<32x8xf32>, vector<16x8xf32> -> vector<16x8xf32>
    %143 = vector.broadcast %139 : vector<1x8xf32> to vector<16x8xf32>
    %144 = arith.addf %142, %143 : vector<16x8xf32>
    %145 = vector.shape_cast %144 : vector<16x8xf32> to vector<2x8x8xf32>
    %cst_89 = arith.constant dense<0.000000e+00> : vector<16x8xf32>
    %146 = tpu.matmul %42, %134, %cst_89 {dimension_numbers = #tpu.dot_dimension_numbers<[1], [0], [0], [1], [0, 0, 1, 1], [], []>} : vector<16x32xf32>, vector<32x8xf32>, vector<16x8xf32> -> vector<16x8xf32>
    %147 = vector.broadcast %140 : vector<1x8xf32> to vector<16x8xf32>
    %148 = arith.addf %146, %147 : vector<16x8xf32>
    %149 = vector.shape_cast %148 : vector<16x8xf32> to vector<2x8x8xf32>
    %cst_90 = arith.constant dense<0.000000e+00> : vector<16x8xf32>
    %150 = tpu.matmul %42, %136, %cst_90 {dimension_numbers = #tpu.dot_dimension_numbers<[1], [0], [0], [1], [0, 0, 1, 1], [], []>} : vector<16x32xf32>, vector<32x8xf32>, vector<16x8xf32> -> vector<16x8xf32>
    %151 = vector.broadcast %141 : vector<1x8xf32> to vector<16x8xf32>
    %152 = arith.addf %150, %151 : vector<16x8xf32>
    %153 = vector.shape_cast %152 : vector<16x8xf32> to vector<2x8x8xf32>
    "tpu.trace_start"() <{level = 10 : i32, message = "bqd,bkd->bqk"}> : () -> ()
    %cst_91 = arith.constant dense<0.000000e+00> : vector<2x8x8xf32>
    %154 = tpu.matmul %145, %149, %cst_91 {dimension_numbers = #tpu.dot_dimension_numbers<[2], [2], [1], [1], [0, 0, 0, 1, 1, 1], [0], [0]>} : vector<2x8x8xf32>, vector<2x8x8xf32>, vector<2x8x8xf32> -> vector<2x8x8xf32>
    "tpu.trace_stop"() : () -> ()
    %cst_92 = arith.constant 0.353553385 : f32
    %155 = vector.broadcast %cst_92 : f32 to vector<2x8x8xf32>
    %156 = arith.mulf %154, %155 : vector<2x8x8xf32>
    %cst_93 = arith.constant dense<0xFF800000> : vector<2x8xf32>
    %157 = vector.multi_reduction <maximumf>, %156, %cst_93 [2] : vector<2x8x8xf32> to vector<2x8xf32>
    %158 = vector.shape_cast %157 : vector<2x8xf32> to vector<2x8x1xf32>
    %159 = vector.broadcast %158 : vector<2x8x1xf32> to vector<2x8x8xf32>
    %160 = arith.subf %156, %159 : vector<2x8x8xf32>
    %161 = math.exp %160 : vector<2x8x8xf32>
    %cst_94 = arith.constant dense<0.000000e+00> : vector<2x8xf32>
    %162 = vector.multi_reduction <add>, %161, %cst_94 [2] : vector<2x8x8xf32> to vector<2x8xf32>
    %163 = vector.shape_cast %162 : vector<2x8xf32> to vector<2x8x1xf32>
    %164 = tpu.reciprocal %163 {approx = true} : vector<2x8x1xf32> -> vector<2x8x1xf32>
    "tpu.trace_start"() <{level = 10 : i32, message = "bqk,bkd->bqd"}> : () -> ()
    %cst_95 = arith.constant dense<0.000000e+00> : vector<2x8x8xf32>
    %165 = tpu.matmul %161, %153, %cst_95 {dimension_numbers = #tpu.dot_dimension_numbers<[2], [1], [1], [2], [0, 0, 0, 1, 1, 2], [0], [0]>} : vector<2x8x8xf32>, vector<2x8x8xf32>, vector<2x8x8xf32> -> vector<2x8x8xf32>
    "tpu.trace_stop"() : () -> ()
    %166 = vector.broadcast %164 : vector<2x8x1xf32> to vector<2x8x8xf32>
    %167 = arith.mulf %165, %166 : vector<2x8x8xf32>
    %168 = vector.shape_cast %167 : vector<2x8x8xf32> to vector<16x8xf32>
    %cst_96 = arith.constant dense<0.000000e+00> : vector<16x32xf32>
    %169 = tpu.matmul %168, %138, %cst_96 {dimension_numbers = #tpu.dot_dimension_numbers<[1], [0], [0], [1], [0, 0, 1, 1], [], []>} : vector<16x8xf32>, vector<8x32xf32>, vector<16x32xf32> -> vector<16x32xf32>
    %170 = arith.addf %130, %169 : vector<16x32xf32>
    %c3 = arith.constant 3 : index
    %c0_97 = arith.constant 0 : index
    %c0_98 = arith.constant 0 : index
    %171 = vector.load %arg4[%c3, %c0_97, %c0_98] : memref<24x32x8xf32, #tpu.memory_space<vmem>>, vector<1x32x8xf32>
    %172 = vector.shape_cast %171 : vector<1x32x8xf32> to vector<32x8xf32>
    %c7 = arith.constant 7 : index
    %c0_99 = arith.constant 0 : index
    %c0_100 = arith.constant 0 : index
    %173 = vector.load %arg4[%c7, %c0_99, %c0_100] : memref<24x32x8xf32, #tpu.memory_space<vmem>>, vector<1x32x8xf32>
    %174 = vector.shape_cast %173 : vector<1x32x8xf32> to vector<32x8xf32>
    %c11_101 = arith.constant 11 : index
    %c0_102 = arith.constant 0 : index
    %c0_103 = arith.constant 0 : index
    %175 = vector.load %arg4[%c11_101, %c0_102, %c0_103] : memref<24x32x8xf32, #tpu.memory_space<vmem>>, vector<1x32x8xf32>
    %176 = vector.shape_cast %175 : vector<1x32x8xf32> to vector<32x8xf32>
    %c3_104 = arith.constant 3 : index
    %c0_105 = arith.constant 0 : index
    %c0_106 = arith.constant 0 : index
    %177 = vector.load %arg5[%c3_104, %c0_105, %c0_106] : memref<8x8x32xf32, #tpu.memory_space<vmem>>, vector<1x8x32xf32>
    %178 = vector.shape_cast %177 : vector<1x8x32xf32> to vector<8x32xf32>
    %c11_107 = arith.constant 11 : index
    %c24 = arith.constant 24 : index
    %179 = vector.load %arg3[%c11_107, %c24] : memref<29x32xf32, #tpu.memory_space<vmem>>, vector<1x8xf32>
    %c12_108 = arith.constant 12 : index
    %c24_109 = arith.constant 24 : index
    %180 = vector.load %arg3[%c12_108, %c24_109] : memref<29x32xf32, #tpu.memory_space<vmem>>, vector<1x8xf32>
    %c13_110 = arith.constant 13 : index
    %c24_111 = arith.constant 24 : index
    %181 = vector.load %arg3[%c13_110, %c24_111] : memref<29x32xf32, #tpu.memory_space<vmem>>, vector<1x8xf32>
    %cst_112 = arith.constant dense<0.000000e+00> : vector<16x8xf32>
    %182 = tpu.matmul %42, %172, %cst_112 {dimension_numbers = #tpu.dot_dimension_numbers<[1], [0], [0], [1], [0, 0, 1, 1], [], []>} : vector<16x32xf32>, vector<32x8xf32>, vector<16x8xf32> -> vector<16x8xf32>
    %183 = vector.broadcast %179 : vector<1x8xf32> to vector<16x8xf32>
    %184 = arith.addf %182, %183 : vector<16x8xf32>
    %185 = vector.shape_cast %184 : vector<16x8xf32> to vector<2x8x8xf32>
    %cst_113 = arith.constant dense<0.000000e+00> : vector<16x8xf32>
    %186 = tpu.matmul %42, %174, %cst_113 {dimension_numbers = #tpu.dot_dimension_numbers<[1], [0], [0], [1], [0, 0, 1, 1], [], []>} : vector<16x32xf32>, vector<32x8xf32>, vector<16x8xf32> -> vector<16x8xf32>
    %187 = vector.broadcast %180 : vector<1x8xf32> to vector<16x8xf32>
    %188 = arith.addf %186, %187 : vector<16x8xf32>
    %189 = vector.shape_cast %188 : vector<16x8xf32> to vector<2x8x8xf32>
    %cst_114 = arith.constant dense<0.000000e+00> : vector<16x8xf32>
    %190 = tpu.matmul %42, %176, %cst_114 {dimension_numbers = #tpu.dot_dimension_numbers<[1], [0], [0], [1], [0, 0, 1, 1], [], []>} : vector<16x32xf32>, vector<32x8xf32>, vector<16x8xf32> -> vector<16x8xf32>
    %191 = vector.broadcast %181 : vector<1x8xf32> to vector<16x8xf32>
    %192 = arith.addf %190, %191 : vector<16x8xf32>
    %193 = vector.shape_cast %192 : vector<16x8xf32> to vector<2x8x8xf32>
    "tpu.trace_start"() <{level = 10 : i32, message = "bqd,bkd->bqk"}> : () -> ()
    %cst_115 = arith.constant dense<0.000000e+00> : vector<2x8x8xf32>
    %194 = tpu.matmul %185, %189, %cst_115 {dimension_numbers = #tpu.dot_dimension_numbers<[2], [2], [1], [1], [0, 0, 0, 1, 1, 1], [0], [0]>} : vector<2x8x8xf32>, vector<2x8x8xf32>, vector<2x8x8xf32> -> vector<2x8x8xf32>
    "tpu.trace_stop"() : () -> ()
    %cst_116 = arith.constant 0.353553385 : f32
    %195 = vector.broadcast %cst_116 : f32 to vector<2x8x8xf32>
    %196 = arith.mulf %194, %195 : vector<2x8x8xf32>
    %cst_117 = arith.constant dense<0xFF800000> : vector<2x8xf32>
    %197 = vector.multi_reduction <maximumf>, %196, %cst_117 [2] : vector<2x8x8xf32> to vector<2x8xf32>
    %198 = vector.shape_cast %197 : vector<2x8xf32> to vector<2x8x1xf32>
    %199 = vector.broadcast %198 : vector<2x8x1xf32> to vector<2x8x8xf32>
    %200 = arith.subf %196, %199 : vector<2x8x8xf32>
    %201 = math.exp %200 : vector<2x8x8xf32>
    %cst_118 = arith.constant dense<0.000000e+00> : vector<2x8xf32>
    %202 = vector.multi_reduction <add>, %201, %cst_118 [2] : vector<2x8x8xf32> to vector<2x8xf32>
    %203 = vector.shape_cast %202 : vector<2x8xf32> to vector<2x8x1xf32>
    %204 = tpu.reciprocal %203 {approx = true} : vector<2x8x1xf32> -> vector<2x8x1xf32>
    "tpu.trace_start"() <{level = 10 : i32, message = "bqk,bkd->bqd"}> : () -> ()
    %cst_119 = arith.constant dense<0.000000e+00> : vector<2x8x8xf32>
    %205 = tpu.matmul %201, %193, %cst_119 {dimension_numbers = #tpu.dot_dimension_numbers<[2], [1], [1], [2], [0, 0, 0, 1, 1, 2], [0], [0]>} : vector<2x8x8xf32>, vector<2x8x8xf32>, vector<2x8x8xf32> -> vector<2x8x8xf32>
    "tpu.trace_stop"() : () -> ()
    %206 = vector.broadcast %204 : vector<2x8x1xf32> to vector<2x8x8xf32>
    %207 = arith.mulf %205, %206 : vector<2x8x8xf32>
    %208 = vector.shape_cast %207 : vector<2x8x8xf32> to vector<16x8xf32>
    %cst_120 = arith.constant dense<0.000000e+00> : vector<16x32xf32>
    %209 = tpu.matmul %208, %178, %cst_120 {dimension_numbers = #tpu.dot_dimension_numbers<[1], [0], [0], [1], [0, 0, 1, 1], [], []>} : vector<16x8xf32>, vector<8x32xf32>, vector<16x32xf32> -> vector<16x32xf32>
    %210 = arith.addf %170, %209 : vector<16x32xf32>
    %211 = vector.broadcast %43 : vector<1x32xf32> to vector<16x32xf32>
    %212 = arith.addf %210, %211 : vector<16x32xf32>
    %213 = arith.addf %42, %212 : vector<16x32xf32>
    %cst_121 = arith.constant dense<0.000000e+00> : vector<16xf32>
    %214 = vector.multi_reduction <add>, %213, %cst_121 [1] : vector<16x32xf32> to vector<16xf32>
    %215 = vector.shape_cast %214 : vector<16xf32> to vector<16x1xf32>
    %cst_122 = arith.constant 3.200000e+01 : f32
    %216 = vector.broadcast %cst_122 : f32 to vector<16x1xf32>
    %217 = arith.divf %215, %216 : vector<16x1xf32>
    %218 = vector.broadcast %217 : vector<16x1xf32> to vector<16x32xf32>
    %219 = arith.subf %213, %218 : vector<16x32xf32>
    %220 = arith.mulf %219, %219 : vector<16x32xf32>
    %cst_123 = arith.constant dense<0.000000e+00> : vector<16xf32>
    %221 = vector.multi_reduction <add>, %220, %cst_123 [1] : vector<16x32xf32> to vector<16xf32>
    %222 = vector.shape_cast %221 : vector<16xf32> to vector<16x1xf32>
    %cst_124 = arith.constant 3.200000e+01 : f32
    %223 = vector.broadcast %cst_124 : f32 to vector<16x1xf32>
    %224 = arith.divf %222, %223 : vector<16x1xf32>
    %225 = vector.broadcast %217 : vector<16x1xf32> to vector<16x32xf32>
    %226 = arith.subf %213, %225 : vector<16x32xf32>
    %cst_125 = arith.constant 9.99999996E-13 : f32
    %227 = vector.broadcast %cst_125 : f32 to vector<16x1xf32>
    %228 = arith.addf %224, %227 : vector<16x1xf32>
    %229 = math.rsqrt %228 : vector<16x1xf32>
    %230 = vector.broadcast %229 : vector<16x1xf32> to vector<16x32xf32>
    %231 = arith.mulf %226, %230 : vector<16x32xf32>
    %232 = vector.broadcast %44 : vector<1x32xf32> to vector<16x32xf32>
    %233 = arith.mulf %231, %232 : vector<16x32xf32>
    %234 = vector.broadcast %45 : vector<1x32xf32> to vector<16x32xf32>
    %235 = arith.addf %233, %234 : vector<16x32xf32>
    %c0_126 = arith.constant 0 : index
    %c0_127 = arith.constant 0 : index
    %c0_128 = arith.constant 0 : index
    %236 = vector.load %arg6[%c0_126, %c0_127, %c0_128] : memref<2x32x128xf32, #tpu.memory_space<vmem>>, vector<1x32x128xf32>
    %237 = vector.shape_cast %236 : vector<1x32x128xf32> to vector<32x128xf32>
    %cst_129 = arith.constant dense<0.000000e+00> : vector<16x128xf32>
    %238 = tpu.matmul %235, %237, %cst_129 {dimension_numbers = #tpu.dot_dimension_numbers<[1], [0], [0], [1], [0, 0, 1, 1], [], []>} : vector<16x32xf32>, vector<32x128xf32>, vector<16x128xf32> -> vector<16x128xf32>
    %239 = vector.broadcast %49 : vector<1x128xf32> to vector<16x128xf32>
    %240 = arith.addf %238, %239 : vector<16x128xf32>
    %cst_130 = arith.constant 5.000000e-01 : f32
    %241 = vector.broadcast %cst_130 : f32 to vector<16x128xf32>
    %242 = arith.mulf %241, %240 : vector<16x128xf32>
    %cst_131 = arith.constant 0.707106769 : f32
    %243 = vector.broadcast %cst_131 : f32 to vector<16x128xf32>
    %244 = arith.mulf %240, %243 : vector<16x128xf32>
    %245 = math.erf %244 : vector<16x128xf32>
    %cst_132 = arith.constant 1.000000e+00 : f32
    %246 = vector.broadcast %cst_132 : f32 to vector<16x128xf32>
    %247 = arith.addf %246, %245 : vector<16x128xf32>
    %248 = arith.mulf %242, %247 : vector<16x128xf32>
    %c0_133 = arith.constant 0 : index
    %c0_134 = arith.constant 0 : index
    %c0_135 = arith.constant 0 : index
    %249 = vector.load %arg7[%c0_133, %c0_134, %c0_135] : memref<2x128x32xf32, #tpu.memory_space<vmem>>, vector<1x128x32xf32>
    %250 = vector.shape_cast %249 : vector<1x128x32xf32> to vector<128x32xf32>
    %cst_136 = arith.constant dense<0.000000e+00> : vector<16x32xf32>
    %251 = tpu.matmul %248, %250, %cst_136 {dimension_numbers = #tpu.dot_dimension_numbers<[1], [0], [0], [1], [0, 0, 1, 1], [], []>} : vector<16x128xf32>, vector<128x32xf32>, vector<16x32xf32> -> vector<16x32xf32>
    %252 = vector.broadcast %46 : vector<1x32xf32> to vector<16x32xf32>
    %253 = arith.addf %251, %252 : vector<16x32xf32>
    %254 = arith.addf %235, %253 : vector<16x32xf32>
    %cst_137 = arith.constant dense<0.000000e+00> : vector<16xf32>
    %255 = vector.multi_reduction <add>, %254, %cst_137 [1] : vector<16x32xf32> to vector<16xf32>
    %256 = vector.shape_cast %255 : vector<16xf32> to vector<16x1xf32>
    %cst_138 = arith.constant 3.200000e+01 : f32
    %257 = vector.broadcast %cst_138 : f32 to vector<16x1xf32>
    %258 = arith.divf %256, %257 : vector<16x1xf32>
    %259 = vector.broadcast %258 : vector<16x1xf32> to vector<16x32xf32>
    %260 = arith.subf %254, %259 : vector<16x32xf32>
    %261 = arith.mulf %260, %260 : vector<16x32xf32>
    %cst_139 = arith.constant dense<0.000000e+00> : vector<16xf32>
    %262 = vector.multi_reduction <add>, %261, %cst_139 [1] : vector<16x32xf32> to vector<16xf32>
    %263 = vector.shape_cast %262 : vector<16xf32> to vector<16x1xf32>
    %cst_140 = arith.constant 3.200000e+01 : f32
    %264 = vector.broadcast %cst_140 : f32 to vector<16x1xf32>
    %265 = arith.divf %263, %264 : vector<16x1xf32>
    %266 = vector.broadcast %258 : vector<16x1xf32> to vector<16x32xf32>
    %267 = arith.subf %254, %266 : vector<16x32xf32>
    %cst_141 = arith.constant 9.99999996E-13 : f32
    %268 = vector.broadcast %cst_141 : f32 to vector<16x1xf32>
    %269 = arith.addf %265, %268 : vector<16x1xf32>
    %270 = math.rsqrt %269 : vector<16x1xf32>
    %271 = vector.broadcast %270 : vector<16x1xf32> to vector<16x32xf32>
    %272 = arith.mulf %267, %271 : vector<16x32xf32>
    %273 = vector.broadcast %47 : vector<1x32xf32> to vector<16x32xf32>
    %274 = arith.mulf %272, %273 : vector<16x32xf32>
    %275 = vector.broadcast %48 : vector<1x32xf32> to vector<16x32xf32>
    %276 = arith.addf %274, %275 : vector<16x32xf32>
    %277 = arith.addf %42, %276 : vector<16x32xf32>
    %c23 = arith.constant 23 : index
    %c0_142 = arith.constant 0 : index
    %278 = vector.load %arg3[%c23, %c0_142] : memref<29x32xf32, #tpu.memory_space<vmem>>, vector<1x32xf32>
    %c24_143 = arith.constant 24 : index
    %c0_144 = arith.constant 0 : index
    %279 = vector.load %arg3[%c24_143, %c0_144] : memref<29x32xf32, #tpu.memory_space<vmem>>, vector<1x32xf32>
    %c25 = arith.constant 25 : index
    %c0_145 = arith.constant 0 : index
    %280 = vector.load %arg3[%c25, %c0_145] : memref<29x32xf32, #tpu.memory_space<vmem>>, vector<1x32xf32>
    %c26 = arith.constant 26 : index
    %c0_146 = arith.constant 0 : index
    %281 = vector.load %arg3[%c26, %c0_146] : memref<29x32xf32, #tpu.memory_space<vmem>>, vector<1x32xf32>
    %c27 = arith.constant 27 : index
    %c0_147 = arith.constant 0 : index
    %282 = vector.load %arg3[%c27, %c0_147] : memref<29x32xf32, #tpu.memory_space<vmem>>, vector<1x32xf32>
    %c28 = arith.constant 28 : index
    %c0_148 = arith.constant 0 : index
    %283 = vector.load %arg3[%c28, %c0_148] : memref<29x32xf32, #tpu.memory_space<vmem>>, vector<1x32xf32>
    %c1_149 = arith.constant 1 : index
    %c0_150 = arith.constant 0 : index
    %284 = vector.load %arg8[%c1_149, %c0_150] : memref<104x128xf32, #tpu.memory_space<vmem>>, vector<1x128xf32>
    %cst_151 = arith.constant 0.000000e+00 : f32
    %285 = vector.broadcast %cst_151 : f32 to vector<16x32xf32>
    %c12_152 = arith.constant 12 : index
    %c0_153 = arith.constant 0 : index
    %c0_154 = arith.constant 0 : index
    %286 = vector.load %arg4[%c12_152, %c0_153, %c0_154] : memref<24x32x8xf32, #tpu.memory_space<vmem>>, vector<1x32x8xf32>
    %287 = vector.shape_cast %286 : vector<1x32x8xf32> to vector<32x8xf32>
    %c16_155 = arith.constant 16 : index
    %c0_156 = arith.constant 0 : index
    %c0_157 = arith.constant 0 : index
    %288 = vector.load %arg4[%c16_155, %c0_156, %c0_157] : memref<24x32x8xf32, #tpu.memory_space<vmem>>, vector<1x32x8xf32>
    %289 = vector.shape_cast %288 : vector<1x32x8xf32> to vector<32x8xf32>
    %c20 = arith.constant 20 : index
    %c0_158 = arith.constant 0 : index
    %c0_159 = arith.constant 0 : index
    %290 = vector.load %arg4[%c20, %c0_158, %c0_159] : memref<24x32x8xf32, #tpu.memory_space<vmem>>, vector<1x32x8xf32>
    %291 = vector.shape_cast %290 : vector<1x32x8xf32> to vector<32x8xf32>
    %c4_160 = arith.constant 4 : index
    %c0_161 = arith.constant 0 : index
    %c0_162 = arith.constant 0 : index
    %292 = vector.load %arg5[%c4_160, %c0_161, %c0_162] : memref<8x8x32xf32, #tpu.memory_space<vmem>>, vector<1x8x32xf32>
    %293 = vector.shape_cast %292 : vector<1x8x32xf32> to vector<8x32xf32>
    %c20_163 = arith.constant 20 : index
    %c0_164 = arith.constant 0 : index
    %294 = vector.load %arg3[%c20_163, %c0_164] : memref<29x32xf32, #tpu.memory_space<vmem>>, vector<1x8xf32>
    %c21 = arith.constant 21 : index
    %c0_165 = arith.constant 0 : index
    %295 = vector.load %arg3[%c21, %c0_165] : memref<29x32xf32, #tpu.memory_space<vmem>>, vector<1x8xf32>
    %c22 = arith.constant 22 : index
    %c0_166 = arith.constant 0 : index
    %296 = vector.load %arg3[%c22, %c0_166] : memref<29x32xf32, #tpu.memory_space<vmem>>, vector<1x8xf32>
    %cst_167 = arith.constant dense<0.000000e+00> : vector<16x8xf32>
    %297 = tpu.matmul %276, %287, %cst_167 {dimension_numbers = #tpu.dot_dimension_numbers<[1], [0], [0], [1], [0, 0, 1, 1], [], []>} : vector<16x32xf32>, vector<32x8xf32>, vector<16x8xf32> -> vector<16x8xf32>
    %298 = vector.broadcast %294 : vector<1x8xf32> to vector<16x8xf32>
    %299 = arith.addf %297, %298 : vector<16x8xf32>
    %300 = vector.shape_cast %299 : vector<16x8xf32> to vector<2x8x8xf32>
    %cst_168 = arith.constant dense<0.000000e+00> : vector<16x8xf32>
    %301 = tpu.matmul %276, %289, %cst_168 {dimension_numbers = #tpu.dot_dimension_numbers<[1], [0], [0], [1], [0, 0, 1, 1], [], []>} : vector<16x32xf32>, vector<32x8xf32>, vector<16x8xf32> -> vector<16x8xf32>
    %302 = vector.broadcast %295 : vector<1x8xf32> to vector<16x8xf32>
    %303 = arith.addf %301, %302 : vector<16x8xf32>
    %304 = vector.shape_cast %303 : vector<16x8xf32> to vector<2x8x8xf32>
    %cst_169 = arith.constant dense<0.000000e+00> : vector<16x8xf32>
    %305 = tpu.matmul %276, %291, %cst_169 {dimension_numbers = #tpu.dot_dimension_numbers<[1], [0], [0], [1], [0, 0, 1, 1], [], []>} : vector<16x32xf32>, vector<32x8xf32>, vector<16x8xf32> -> vector<16x8xf32>
    %306 = vector.broadcast %296 : vector<1x8xf32> to vector<16x8xf32>
    %307 = arith.addf %305, %306 : vector<16x8xf32>
    %308 = vector.shape_cast %307 : vector<16x8xf32> to vector<2x8x8xf32>
    "tpu.trace_start"() <{level = 10 : i32, message = "bqd,bkd->bqk"}> : () -> ()
    %cst_170 = arith.constant dense<0.000000e+00> : vector<2x8x8xf32>
    %309 = tpu.matmul %300, %304, %cst_170 {dimension_numbers = #tpu.dot_dimension_numbers<[2], [2], [1], [1], [0, 0, 0, 1, 1, 1], [0], [0]>} : vector<2x8x8xf32>, vector<2x8x8xf32>, vector<2x8x8xf32> -> vector<2x8x8xf32>
    "tpu.trace_stop"() : () -> ()
    %cst_171 = arith.constant 0.353553385 : f32
    %310 = vector.broadcast %cst_171 : f32 to vector<2x8x8xf32>
    %311 = arith.mulf %309, %310 : vector<2x8x8xf32>
    %cst_172 = arith.constant dense<0xFF800000> : vector<2x8xf32>
    %312 = vector.multi_reduction <maximumf>, %311, %cst_172 [2] : vector<2x8x8xf32> to vector<2x8xf32>
    %313 = vector.shape_cast %312 : vector<2x8xf32> to vector<2x8x1xf32>
    %314 = vector.broadcast %313 : vector<2x8x1xf32> to vector<2x8x8xf32>
    %315 = arith.subf %311, %314 : vector<2x8x8xf32>
    %316 = math.exp %315 : vector<2x8x8xf32>
    %cst_173 = arith.constant dense<0.000000e+00> : vector<2x8xf32>
    %317 = vector.multi_reduction <add>, %316, %cst_173 [2] : vector<2x8x8xf32> to vector<2x8xf32>
    %318 = vector.shape_cast %317 : vector<2x8xf32> to vector<2x8x1xf32>
    %319 = tpu.reciprocal %318 {approx = true} : vector<2x8x1xf32> -> vector<2x8x1xf32>
    "tpu.trace_start"() <{level = 10 : i32, message = "bqk,bkd->bqd"}> : () -> ()
    %cst_174 = arith.constant dense<0.000000e+00> : vector<2x8x8xf32>
    %320 = tpu.matmul %316, %308, %cst_174 {dimension_numbers = #tpu.dot_dimension_numbers<[2], [1], [1], [2], [0, 0, 0, 1, 1, 2], [0], [0]>} : vector<2x8x8xf32>, vector<2x8x8xf32>, vector<2x8x8xf32> -> vector<2x8x8xf32>
    "tpu.trace_stop"() : () -> ()
    %321 = vector.broadcast %319 : vector<2x8x1xf32> to vector<2x8x8xf32>
    %322 = arith.mulf %320, %321 : vector<2x8x8xf32>
    %323 = vector.shape_cast %322 : vector<2x8x8xf32> to vector<16x8xf32>
    %cst_175 = arith.constant dense<0.000000e+00> : vector<16x32xf32>
    %324 = tpu.matmul %323, %293, %cst_175 {dimension_numbers = #tpu.dot_dimension_numbers<[1], [0], [0], [1], [0, 0, 1, 1], [], []>} : vector<16x8xf32>, vector<8x32xf32>, vector<16x32xf32> -> vector<16x32xf32>
    %325 = arith.addf %285, %324 : vector<16x32xf32>
    %c13_176 = arith.constant 13 : index
    %c0_177 = arith.constant 0 : index
    %c0_178 = arith.constant 0 : index
    %326 = vector.load %arg4[%c13_176, %c0_177, %c0_178] : memref<24x32x8xf32, #tpu.memory_space<vmem>>, vector<1x32x8xf32>
    %327 = vector.shape_cast %326 : vector<1x32x8xf32> to vector<32x8xf32>
    %c17_179 = arith.constant 17 : index
    %c0_180 = arith.constant 0 : index
    %c0_181 = arith.constant 0 : index
    %328 = vector.load %arg4[%c17_179, %c0_180, %c0_181] : memref<24x32x8xf32, #tpu.memory_space<vmem>>, vector<1x32x8xf32>
    %329 = vector.shape_cast %328 : vector<1x32x8xf32> to vector<32x8xf32>
    %c21_182 = arith.constant 21 : index
    %c0_183 = arith.constant 0 : index
    %c0_184 = arith.constant 0 : index
    %330 = vector.load %arg4[%c21_182, %c0_183, %c0_184] : memref<24x32x8xf32, #tpu.memory_space<vmem>>, vector<1x32x8xf32>
    %331 = vector.shape_cast %330 : vector<1x32x8xf32> to vector<32x8xf32>
    %c5_185 = arith.constant 5 : index
    %c0_186 = arith.constant 0 : index
    %c0_187 = arith.constant 0 : index
    %332 = vector.load %arg5[%c5_185, %c0_186, %c0_187] : memref<8x8x32xf32, #tpu.memory_space<vmem>>, vector<1x8x32xf32>
    %333 = vector.shape_cast %332 : vector<1x8x32xf32> to vector<8x32xf32>
    %c20_188 = arith.constant 20 : index
    %c8_189 = arith.constant 8 : index
    %334 = vector.load %arg3[%c20_188, %c8_189] : memref<29x32xf32, #tpu.memory_space<vmem>>, vector<1x8xf32>
    %c21_190 = arith.constant 21 : index
    %c8_191 = arith.constant 8 : index
    %335 = vector.load %arg3[%c21_190, %c8_191] : memref<29x32xf32, #tpu.memory_space<vmem>>, vector<1x8xf32>
    %c22_192 = arith.constant 22 : index
    %c8_193 = arith.constant 8 : index
    %336 = vector.load %arg3[%c22_192, %c8_193] : memref<29x32xf32, #tpu.memory_space<vmem>>, vector<1x8xf32>
    %cst_194 = arith.constant dense<0.000000e+00> : vector<16x8xf32>
    %337 = tpu.matmul %276, %327, %cst_194 {dimension_numbers = #tpu.dot_dimension_numbers<[1], [0], [0], [1], [0, 0, 1, 1], [], []>} : vector<16x32xf32>, vector<32x8xf32>, vector<16x8xf32> -> vector<16x8xf32>
    %338 = vector.broadcast %334 : vector<1x8xf32> to vector<16x8xf32>
    %339 = arith.addf %337, %338 : vector<16x8xf32>
    %340 = vector.shape_cast %339 : vector<16x8xf32> to vector<2x8x8xf32>
    %cst_195 = arith.constant dense<0.000000e+00> : vector<16x8xf32>
    %341 = tpu.matmul %276, %329, %cst_195 {dimension_numbers = #tpu.dot_dimension_numbers<[1], [0], [0], [1], [0, 0, 1, 1], [], []>} : vector<16x32xf32>, vector<32x8xf32>, vector<16x8xf32> -> vector<16x8xf32>
    %342 = vector.broadcast %335 : vector<1x8xf32> to vector<16x8xf32>
    %343 = arith.addf %341, %342 : vector<16x8xf32>
    %344 = vector.shape_cast %343 : vector<16x8xf32> to vector<2x8x8xf32>
    %cst_196 = arith.constant dense<0.000000e+00> : vector<16x8xf32>
    %345 = tpu.matmul %276, %331, %cst_196 {dimension_numbers = #tpu.dot_dimension_numbers<[1], [0], [0], [1], [0, 0, 1, 1], [], []>} : vector<16x32xf32>, vector<32x8xf32>, vector<16x8xf32> -> vector<16x8xf32>
    %346 = vector.broadcast %336 : vector<1x8xf32> to vector<16x8xf32>
    %347 = arith.addf %345, %346 : vector<16x8xf32>
    %348 = vector.shape_cast %347 : vector<16x8xf32> to vector<2x8x8xf32>
    "tpu.trace_start"() <{level = 10 : i32, message = "bqd,bkd->bqk"}> : () -> ()
    %cst_197 = arith.constant dense<0.000000e+00> : vector<2x8x8xf32>
    %349 = tpu.matmul %340, %344, %cst_197 {dimension_numbers = #tpu.dot_dimension_numbers<[2], [2], [1], [1], [0, 0, 0, 1, 1, 1], [0], [0]>} : vector<2x8x8xf32>, vector<2x8x8xf32>, vector<2x8x8xf32> -> vector<2x8x8xf32>
    "tpu.trace_stop"() : () -> ()
    %cst_198 = arith.constant 0.353553385 : f32
    %350 = vector.broadcast %cst_198 : f32 to vector<2x8x8xf32>
    %351 = arith.mulf %349, %350 : vector<2x8x8xf32>
    %cst_199 = arith.constant dense<0xFF800000> : vector<2x8xf32>
    %352 = vector.multi_reduction <maximumf>, %351, %cst_199 [2] : vector<2x8x8xf32> to vector<2x8xf32>
    %353 = vector.shape_cast %352 : vector<2x8xf32> to vector<2x8x1xf32>
    %354 = vector.broadcast %353 : vector<2x8x1xf32> to vector<2x8x8xf32>
    %355 = arith.subf %351, %354 : vector<2x8x8xf32>
    %356 = math.exp %355 : vector<2x8x8xf32>
    %cst_200 = arith.constant dense<0.000000e+00> : vector<2x8xf32>
    %357 = vector.multi_reduction <add>, %356, %cst_200 [2] : vector<2x8x8xf32> to vector<2x8xf32>
    %358 = vector.shape_cast %357 : vector<2x8xf32> to vector<2x8x1xf32>
    %359 = tpu.reciprocal %358 {approx = true} : vector<2x8x1xf32> -> vector<2x8x1xf32>
    "tpu.trace_start"() <{level = 10 : i32, message = "bqk,bkd->bqd"}> : () -> ()
    %cst_201 = arith.constant dense<0.000000e+00> : vector<2x8x8xf32>
    %360 = tpu.matmul %356, %348, %cst_201 {dimension_numbers = #tpu.dot_dimension_numbers<[2], [1], [1], [2], [0, 0, 0, 1, 1, 2], [0], [0]>} : vector<2x8x8xf32>, vector<2x8x8xf32>, vector<2x8x8xf32> -> vector<2x8x8xf32>
    "tpu.trace_stop"() : () -> ()
    %361 = vector.broadcast %359 : vector<2x8x1xf32> to vector<2x8x8xf32>
    %362 = arith.mulf %360, %361 : vector<2x8x8xf32>
    %363 = vector.shape_cast %362 : vector<2x8x8xf32> to vector<16x8xf32>
    %cst_202 = arith.constant dense<0.000000e+00> : vector<16x32xf32>
    %364 = tpu.matmul %363, %333, %cst_202 {dimension_numbers = #tpu.dot_dimension_numbers<[1], [0], [0], [1], [0, 0, 1, 1], [], []>} : vector<16x8xf32>, vector<8x32xf32>, vector<16x32xf32> -> vector<16x32xf32>
    %365 = arith.addf %325, %364 : vector<16x32xf32>
    %c14_203 = arith.constant 14 : index
    %c0_204 = arith.constant 0 : index
    %c0_205 = arith.constant 0 : index
    %366 = vector.load %arg4[%c14_203, %c0_204, %c0_205] : memref<24x32x8xf32, #tpu.memory_space<vmem>>, vector<1x32x8xf32>
    %367 = vector.shape_cast %366 : vector<1x32x8xf32> to vector<32x8xf32>
    %c18_206 = arith.constant 18 : index
    %c0_207 = arith.constant 0 : index
    %c0_208 = arith.constant 0 : index
    %368 = vector.load %arg4[%c18_206, %c0_207, %c0_208] : memref<24x32x8xf32, #tpu.memory_space<vmem>>, vector<1x32x8xf32>
    %369 = vector.shape_cast %368 : vector<1x32x8xf32> to vector<32x8xf32>
    %c22_209 = arith.constant 22 : index
    %c0_210 = arith.constant 0 : index
    %c0_211 = arith.constant 0 : index
    %370 = vector.load %arg4[%c22_209, %c0_210, %c0_211] : memref<24x32x8xf32, #tpu.memory_space<vmem>>, vector<1x32x8xf32>
    %371 = vector.shape_cast %370 : vector<1x32x8xf32> to vector<32x8xf32>
    %c6_212 = arith.constant 6 : index
    %c0_213 = arith.constant 0 : index
    %c0_214 = arith.constant 0 : index
    %372 = vector.load %arg5[%c6_212, %c0_213, %c0_214] : memref<8x8x32xf32, #tpu.memory_space<vmem>>, vector<1x8x32xf32>
    %373 = vector.shape_cast %372 : vector<1x8x32xf32> to vector<8x32xf32>
    %c20_215 = arith.constant 20 : index
    %c16_216 = arith.constant 16 : index
    %374 = vector.load %arg3[%c20_215, %c16_216] : memref<29x32xf32, #tpu.memory_space<vmem>>, vector<1x8xf32>
    %c21_217 = arith.constant 21 : index
    %c16_218 = arith.constant 16 : index
    %375 = vector.load %arg3[%c21_217, %c16_218] : memref<29x32xf32, #tpu.memory_space<vmem>>, vector<1x8xf32>
    %c22_219 = arith.constant 22 : index
    %c16_220 = arith.constant 16 : index
    %376 = vector.load %arg3[%c22_219, %c16_220] : memref<29x32xf32, #tpu.memory_space<vmem>>, vector<1x8xf32>
    %cst_221 = arith.constant dense<0.000000e+00> : vector<16x8xf32>
    %377 = tpu.matmul %276, %367, %cst_221 {dimension_numbers = #tpu.dot_dimension_numbers<[1], [0], [0], [1], [0, 0, 1, 1], [], []>} : vector<16x32xf32>, vector<32x8xf32>, vector<16x8xf32> -> vector<16x8xf32>
    %378 = vector.broadcast %374 : vector<1x8xf32> to vector<16x8xf32>
    %379 = arith.addf %377, %378 : vector<16x8xf32>
    %380 = vector.shape_cast %379 : vector<16x8xf32> to vector<2x8x8xf32>
    %cst_222 = arith.constant dense<0.000000e+00> : vector<16x8xf32>
    %381 = tpu.matmul %276, %369, %cst_222 {dimension_numbers = #tpu.dot_dimension_numbers<[1], [0], [0], [1], [0, 0, 1, 1], [], []>} : vector<16x32xf32>, vector<32x8xf32>, vector<16x8xf32> -> vector<16x8xf32>
    %382 = vector.broadcast %375 : vector<1x8xf32> to vector<16x8xf32>
    %383 = arith.addf %381, %382 : vector<16x8xf32>
    %384 = vector.shape_cast %383 : vector<16x8xf32> to vector<2x8x8xf32>
    %cst_223 = arith.constant dense<0.000000e+00> : vector<16x8xf32>
    %385 = tpu.matmul %276, %371, %cst_223 {dimension_numbers = #tpu.dot_dimension_numbers<[1], [0], [0], [1], [0, 0, 1, 1], [], []>} : vector<16x32xf32>, vector<32x8xf32>, vector<16x8xf32> -> vector<16x8xf32>
    %386 = vector.broadcast %376 : vector<1x8xf32> to vector<16x8xf32>
    %387 = arith.addf %385, %386 : vector<16x8xf32>
    %388 = vector.shape_cast %387 : vector<16x8xf32> to vector<2x8x8xf32>
    "tpu.trace_start"() <{level = 10 : i32, message = "bqd,bkd->bqk"}> : () -> ()
    %cst_224 = arith.constant dense<0.000000e+00> : vector<2x8x8xf32>
    %389 = tpu.matmul %380, %384, %cst_224 {dimension_numbers = #tpu.dot_dimension_numbers<[2], [2], [1], [1], [0, 0, 0, 1, 1, 1], [0], [0]>} : vector<2x8x8xf32>, vector<2x8x8xf32>, vector<2x8x8xf32> -> vector<2x8x8xf32>
    "tpu.trace_stop"() : () -> ()
    %cst_225 = arith.constant 0.353553385 : f32
    %390 = vector.broadcast %cst_225 : f32 to vector<2x8x8xf32>
    %391 = arith.mulf %389, %390 : vector<2x8x8xf32>
    %cst_226 = arith.constant dense<0xFF800000> : vector<2x8xf32>
    %392 = vector.multi_reduction <maximumf>, %391, %cst_226 [2] : vector<2x8x8xf32> to vector<2x8xf32>
    %393 = vector.shape_cast %392 : vector<2x8xf32> to vector<2x8x1xf32>
    %394 = vector.broadcast %393 : vector<2x8x1xf32> to vector<2x8x8xf32>
    %395 = arith.subf %391, %394 : vector<2x8x8xf32>
    %396 = math.exp %395 : vector<2x8x8xf32>
    %cst_227 = arith.constant dense<0.000000e+00> : vector<2x8xf32>
    %397 = vector.multi_reduction <add>, %396, %cst_227 [2] : vector<2x8x8xf32> to vector<2x8xf32>
    %398 = vector.shape_cast %397 : vector<2x8xf32> to vector<2x8x1xf32>
    %399 = tpu.reciprocal %398 {approx = true} : vector<2x8x1xf32> -> vector<2x8x1xf32>
    "tpu.trace_start"() <{level = 10 : i32, message = "bqk,bkd->bqd"}> : () -> ()
    %cst_228 = arith.constant dense<0.000000e+00> : vector<2x8x8xf32>
    %400 = tpu.matmul %396, %388, %cst_228 {dimension_numbers = #tpu.dot_dimension_numbers<[2], [1], [1], [2], [0, 0, 0, 1, 1, 2], [0], [0]>} : vector<2x8x8xf32>, vector<2x8x8xf32>, vector<2x8x8xf32> -> vector<2x8x8xf32>
    "tpu.trace_stop"() : () -> ()
    %401 = vector.broadcast %399 : vector<2x8x1xf32> to vector<2x8x8xf32>
    %402 = arith.mulf %400, %401 : vector<2x8x8xf32>
    %403 = vector.shape_cast %402 : vector<2x8x8xf32> to vector<16x8xf32>
    %cst_229 = arith.constant dense<0.000000e+00> : vector<16x32xf32>
    %404 = tpu.matmul %403, %373, %cst_229 {dimension_numbers = #tpu.dot_dimension_numbers<[1], [0], [0], [1], [0, 0, 1, 1], [], []>} : vector<16x8xf32>, vector<8x32xf32>, vector<16x32xf32> -> vector<16x32xf32>
    %405 = arith.addf %365, %404 : vector<16x32xf32>
    %c15_230 = arith.constant 15 : index
    %c0_231 = arith.constant 0 : index
    %c0_232 = arith.constant 0 : index
    %406 = vector.load %arg4[%c15_230, %c0_231, %c0_232] : memref<24x32x8xf32, #tpu.memory_space<vmem>>, vector<1x32x8xf32>
    %407 = vector.shape_cast %406 : vector<1x32x8xf32> to vector<32x8xf32>
    %c19_233 = arith.constant 19 : index
    %c0_234 = arith.constant 0 : index
    %c0_235 = arith.constant 0 : index
    %408 = vector.load %arg4[%c19_233, %c0_234, %c0_235] : memref<24x32x8xf32, #tpu.memory_space<vmem>>, vector<1x32x8xf32>
    %409 = vector.shape_cast %408 : vector<1x32x8xf32> to vector<32x8xf32>
    %c23_236 = arith.constant 23 : index
    %c0_237 = arith.constant 0 : index
    %c0_238 = arith.constant 0 : index
    %410 = vector.load %arg4[%c23_236, %c0_237, %c0_238] : memref<24x32x8xf32, #tpu.memory_space<vmem>>, vector<1x32x8xf32>
    %411 = vector.shape_cast %410 : vector<1x32x8xf32> to vector<32x8xf32>
    %c7_239 = arith.constant 7 : index
    %c0_240 = arith.constant 0 : index
    %c0_241 = arith.constant 0 : index
    %412 = vector.load %arg5[%c7_239, %c0_240, %c0_241] : memref<8x8x32xf32, #tpu.memory_space<vmem>>, vector<1x8x32xf32>
    %413 = vector.shape_cast %412 : vector<1x8x32xf32> to vector<8x32xf32>
    %c20_242 = arith.constant 20 : index
    %c24_243 = arith.constant 24 : index
    %414 = vector.load %arg3[%c20_242, %c24_243] : memref<29x32xf32, #tpu.memory_space<vmem>>, vector<1x8xf32>
    %c21_244 = arith.constant 21 : index
    %c24_245 = arith.constant 24 : index
    %415 = vector.load %arg3[%c21_244, %c24_245] : memref<29x32xf32, #tpu.memory_space<vmem>>, vector<1x8xf32>
    %c22_246 = arith.constant 22 : index
    %c24_247 = arith.constant 24 : index
    %416 = vector.load %arg3[%c22_246, %c24_247] : memref<29x32xf32, #tpu.memory_space<vmem>>, vector<1x8xf32>
    %cst_248 = arith.constant dense<0.000000e+00> : vector<16x8xf32>
    %417 = tpu.matmul %276, %407, %cst_248 {dimension_numbers = #tpu.dot_dimension_numbers<[1], [0], [0], [1], [0, 0, 1, 1], [], []>} : vector<16x32xf32>, vector<32x8xf32>, vector<16x8xf32> -> vector<16x8xf32>
    %418 = vector.broadcast %414 : vector<1x8xf32> to vector<16x8xf32>
    %419 = arith.addf %417, %418 : vector<16x8xf32>
    %420 = vector.shape_cast %419 : vector<16x8xf32> to vector<2x8x8xf32>
    %cst_249 = arith.constant dense<0.000000e+00> : vector<16x8xf32>
    %421 = tpu.matmul %276, %409, %cst_249 {dimension_numbers = #tpu.dot_dimension_numbers<[1], [0], [0], [1], [0, 0, 1, 1], [], []>} : vector<16x32xf32>, vector<32x8xf32>, vector<16x8xf32> -> vector<16x8xf32>
    %422 = vector.broadcast %415 : vector<1x8xf32> to vector<16x8xf32>
    %423 = arith.addf %421, %422 : vector<16x8xf32>
    %424 = vector.shape_cast %423 : vector<16x8xf32> to vector<2x8x8xf32>
    %cst_250 = arith.constant dense<0.000000e+00> : vector<16x8xf32>
    %425 = tpu.matmul %276, %411, %cst_250 {dimension_numbers = #tpu.dot_dimension_numbers<[1], [0], [0], [1], [0, 0, 1, 1], [], []>} : vector<16x32xf32>, vector<32x8xf32>, vector<16x8xf32> -> vector<16x8xf32>
    %426 = vector.broadcast %416 : vector<1x8xf32> to vector<16x8xf32>
    %427 = arith.addf %425, %426 : vector<16x8xf32>
    %428 = vector.shape_cast %427 : vector<16x8xf32> to vector<2x8x8xf32>
    "tpu.trace_start"() <{level = 10 : i32, message = "bqd,bkd->bqk"}> : () -> ()
    %cst_251 = arith.constant dense<0.000000e+00> : vector<2x8x8xf32>
    %429 = tpu.matmul %420, %424, %cst_251 {dimension_numbers = #tpu.dot_dimension_numbers<[2], [2], [1], [1], [0, 0, 0, 1, 1, 1], [0], [0]>} : vector<2x8x8xf32>, vector<2x8x8xf32>, vector<2x8x8xf32> -> vector<2x8x8xf32>
    "tpu.trace_stop"() : () -> ()
    %cst_252 = arith.constant 0.353553385 : f32
    %430 = vector.broadcast %cst_252 : f32 to vector<2x8x8xf32>
    %431 = arith.mulf %429, %430 : vector<2x8x8xf32>
    %cst_253 = arith.constant dense<0xFF800000> : vector<2x8xf32>
    %432 = vector.multi_reduction <maximumf>, %431, %cst_253 [2] : vector<2x8x8xf32> to vector<2x8xf32>
    %433 = vector.shape_cast %432 : vector<2x8xf32> to vector<2x8x1xf32>
    %434 = vector.broadcast %433 : vector<2x8x1xf32> to vector<2x8x8xf32>
    %435 = arith.subf %431, %434 : vector<2x8x8xf32>
    %436 = math.exp %435 : vector<2x8x8xf32>
    %cst_254 = arith.constant dense<0.000000e+00> : vector<2x8xf32>
    %437 = vector.multi_reduction <add>, %436, %cst_254 [2] : vector<2x8x8xf32> to vector<2x8xf32>
    %438 = vector.shape_cast %437 : vector<2x8xf32> to vector<2x8x1xf32>
    %439 = tpu.reciprocal %438 {approx = true} : vector<2x8x1xf32> -> vector<2x8x1xf32>
    "tpu.trace_start"() <{level = 10 : i32, message = "bqk,bkd->bqd"}> : () -> ()
    %cst_255 = arith.constant dense<0.000000e+00> : vector<2x8x8xf32>
    %440 = tpu.matmul %436, %428, %cst_255 {dimension_numbers = #tpu.dot_dimension_numbers<[2], [1], [1], [2], [0, 0, 0, 1, 1, 2], [0], [0]>} : vector<2x8x8xf32>, vector<2x8x8xf32>, vector<2x8x8xf32> -> vector<2x8x8xf32>
    "tpu.trace_stop"() : () -> ()
    %441 = vector.broadcast %439 : vector<2x8x1xf32> to vector<2x8x8xf32>
    %442 = arith.mulf %440, %441 : vector<2x8x8xf32>
    %443 = vector.shape_cast %442 : vector<2x8x8xf32> to vector<16x8xf32>
    %cst_256 = arith.constant dense<0.000000e+00> : vector<16x32xf32>
    %444 = tpu.matmul %443, %413, %cst_256 {dimension_numbers = #tpu.dot_dimension_numbers<[1], [0], [0], [1], [0, 0, 1, 1], [], []>} : vector<16x8xf32>, vector<8x32xf32>, vector<16x32xf32> -> vector<16x32xf32>
    %445 = arith.addf %405, %444 : vector<16x32xf32>
    %446 = vector.broadcast %278 : vector<1x32xf32> to vector<16x32xf32>
    %447 = arith.addf %445, %446 : vector<16x32xf32>
    %448 = arith.addf %276, %447 : vector<16x32xf32>
    %cst_257 = arith.constant dense<0.000000e+00> : vector<16xf32>
    %449 = vector.multi_reduction <add>, %448, %cst_257 [1] : vector<16x32xf32> to vector<16xf32>
    %450 = vector.shape_cast %449 : vector<16xf32> to vector<16x1xf32>
    %cst_258 = arith.constant 3.200000e+01 : f32
    %451 = vector.broadcast %cst_258 : f32 to vector<16x1xf32>
    %452 = arith.divf %450, %451 : vector<16x1xf32>
    %453 = vector.broadcast %452 : vector<16x1xf32> to vector<16x32xf32>
    %454 = arith.subf %448, %453 : vector<16x32xf32>
    %455 = arith.mulf %454, %454 : vector<16x32xf32>
    %cst_259 = arith.constant dense<0.000000e+00> : vector<16xf32>
    %456 = vector.multi_reduction <add>, %455, %cst_259 [1] : vector<16x32xf32> to vector<16xf32>
    %457 = vector.shape_cast %456 : vector<16xf32> to vector<16x1xf32>
    %cst_260 = arith.constant 3.200000e+01 : f32
    %458 = vector.broadcast %cst_260 : f32 to vector<16x1xf32>
    %459 = arith.divf %457, %458 : vector<16x1xf32>
    %460 = vector.broadcast %452 : vector<16x1xf32> to vector<16x32xf32>
    %461 = arith.subf %448, %460 : vector<16x32xf32>
    %cst_261 = arith.constant 9.99999996E-13 : f32
    %462 = vector.broadcast %cst_261 : f32 to vector<16x1xf32>
    %463 = arith.addf %459, %462 : vector<16x1xf32>
    %464 = math.rsqrt %463 : vector<16x1xf32>
    %465 = vector.broadcast %464 : vector<16x1xf32> to vector<16x32xf32>
    %466 = arith.mulf %461, %465 : vector<16x32xf32>
    %467 = vector.broadcast %279 : vector<1x32xf32> to vector<16x32xf32>
    %468 = arith.mulf %466, %467 : vector<16x32xf32>
    %469 = vector.broadcast %280 : vector<1x32xf32> to vector<16x32xf32>
    %470 = arith.addf %468, %469 : vector<16x32xf32>
    %c1_262 = arith.constant 1 : index
    %c0_263 = arith.constant 0 : index
    %c0_264 = arith.constant 0 : index
    %471 = vector.load %arg6[%c1_262, %c0_263, %c0_264] : memref<2x32x128xf32, #tpu.memory_space<vmem>>, vector<1x32x128xf32>
    %472 = vector.shape_cast %471 : vector<1x32x128xf32> to vector<32x128xf32>
    %cst_265 = arith.constant dense<0.000000e+00> : vector<16x128xf32>
    %473 = tpu.matmul %470, %472, %cst_265 {dimension_numbers = #tpu.dot_dimension_numbers<[1], [0], [0], [1], [0, 0, 1, 1], [], []>} : vector<16x32xf32>, vector<32x128xf32>, vector<16x128xf32> -> vector<16x128xf32>
    %474 = vector.broadcast %284 : vector<1x128xf32> to vector<16x128xf32>
    %475 = arith.addf %473, %474 : vector<16x128xf32>
    %cst_266 = arith.constant 5.000000e-01 : f32
    %476 = vector.broadcast %cst_266 : f32 to vector<16x128xf32>
    %477 = arith.mulf %476, %475 : vector<16x128xf32>
    %cst_267 = arith.constant 0.707106769 : f32
    %478 = vector.broadcast %cst_267 : f32 to vector<16x128xf32>
    %479 = arith.mulf %475, %478 : vector<16x128xf32>
    %480 = math.erf %479 : vector<16x128xf32>
    %cst_268 = arith.constant 1.000000e+00 : f32
    %481 = vector.broadcast %cst_268 : f32 to vector<16x128xf32>
    %482 = arith.addf %481, %480 : vector<16x128xf32>
    %483 = arith.mulf %477, %482 : vector<16x128xf32>
    %c1_269 = arith.constant 1 : index
    %c0_270 = arith.constant 0 : index
    %c0_271 = arith.constant 0 : index
    %484 = vector.load %arg7[%c1_269, %c0_270, %c0_271] : memref<2x128x32xf32, #tpu.memory_space<vmem>>, vector<1x128x32xf32>
    %485 = vector.shape_cast %484 : vector<1x128x32xf32> to vector<128x32xf32>
    %cst_272 = arith.constant dense<0.000000e+00> : vector<16x32xf32>
    %486 = tpu.matmul %483, %485, %cst_272 {dimension_numbers = #tpu.dot_dimension_numbers<[1], [0], [0], [1], [0, 0, 1, 1], [], []>} : vector<16x128xf32>, vector<128x32xf32>, vector<16x32xf32> -> vector<16x32xf32>
    %487 = vector.broadcast %281 : vector<1x32xf32> to vector<16x32xf32>
    %488 = arith.addf %486, %487 : vector<16x32xf32>
    %489 = arith.addf %470, %488 : vector<16x32xf32>
    %cst_273 = arith.constant dense<0.000000e+00> : vector<16xf32>
    %490 = vector.multi_reduction <add>, %489, %cst_273 [1] : vector<16x32xf32> to vector<16xf32>
    %491 = vector.shape_cast %490 : vector<16xf32> to vector<16x1xf32>
    %cst_274 = arith.constant 3.200000e+01 : f32
    %492 = vector.broadcast %cst_274 : f32 to vector<16x1xf32>
    %493 = arith.divf %491, %492 : vector<16x1xf32>
    %494 = vector.broadcast %493 : vector<16x1xf32> to vector<16x32xf32>
    %495 = arith.subf %489, %494 : vector<16x32xf32>
    %496 = arith.mulf %495, %495 : vector<16x32xf32>
    %cst_275 = arith.constant dense<0.000000e+00> : vector<16xf32>
    %497 = vector.multi_reduction <add>, %496, %cst_275 [1] : vector<16x32xf32> to vector<16xf32>
    %498 = vector.shape_cast %497 : vector<16xf32> to vector<16x1xf32>
    %cst_276 = arith.constant 3.200000e+01 : f32
    %499 = vector.broadcast %cst_276 : f32 to vector<16x1xf32>
    %500 = arith.divf %498, %499 : vector<16x1xf32>
    %501 = vector.broadcast %493 : vector<16x1xf32> to vector<16x32xf32>
    %502 = arith.subf %489, %501 : vector<16x32xf32>
    %cst_277 = arith.constant 9.99999996E-13 : f32
    %503 = vector.broadcast %cst_277 : f32 to vector<16x1xf32>
    %504 = arith.addf %500, %503 : vector<16x1xf32>
    %505 = math.rsqrt %504 : vector<16x1xf32>
    %506 = vector.broadcast %505 : vector<16x1xf32> to vector<16x32xf32>
    %507 = arith.mulf %502, %506 : vector<16x32xf32>
    %508 = vector.broadcast %282 : vector<1x32xf32> to vector<16x32xf32>
    %509 = arith.mulf %507, %508 : vector<16x32xf32>
    %510 = vector.broadcast %283 : vector<1x32xf32> to vector<16x32xf32>
    %511 = arith.addf %509, %510 : vector<16x32xf32>
    %512 = arith.addf %277, %511 : vector<16x32xf32>
    %c8_278 = arith.constant 8 : index
    %c0_279 = arith.constant 0 : index
    %513 = vector.load %arg8[%c8_278, %c0_279] : memref<104x128xf32, #tpu.memory_space<vmem>>, vector<32x64xf32>
    %c2_280 = arith.constant 2 : index
    %c0_281 = arith.constant 0 : index
    %514 = vector.load %arg8[%c2_280, %c0_281] : memref<104x128xf32, #tpu.memory_space<vmem>>, vector<1x64xf32>
    %c40 = arith.constant 40 : index
    %c0_282 = arith.constant 0 : index
    %515 = vector.load %arg8[%c40, %c0_282] : memref<104x128xf32, #tpu.memory_space<vmem>>, vector<64x128xf32>
    %c3_283 = arith.constant 3 : index
    %c0_284 = arith.constant 0 : index
    %516 = vector.load %arg8[%c3_283, %c0_284] : memref<104x128xf32, #tpu.memory_space<vmem>>, vector<1x128xf32>
    %cst_285 = arith.constant dense<0.000000e+00> : vector<16x64xf32>
    %517 = tpu.matmul %512, %513, %cst_285 {dimension_numbers = #tpu.dot_dimension_numbers<[1], [0], [0], [1], [0, 0, 1, 1], [], []>} : vector<16x32xf32>, vector<32x64xf32>, vector<16x64xf32> -> vector<16x64xf32>
    %518 = vector.broadcast %514 : vector<1x64xf32> to vector<16x64xf32>
    %519 = arith.addf %517, %518 : vector<16x64xf32>
    %cst_286 = arith.constant 0.000000e+00 : f32
    %520 = vector.broadcast %cst_286 : f32 to vector<16x64xf32>
    %521 = arith.maximumf %519, %520 : vector<16x64xf32>
    %cst_287 = arith.constant dense<0.000000e+00> : vector<16x128xf32>
    %522 = tpu.matmul %521, %515, %cst_287 {dimension_numbers = #tpu.dot_dimension_numbers<[1], [0], [0], [1], [0, 0, 1, 1], [], []>} : vector<16x64xf32>, vector<64x128xf32>, vector<16x128xf32> -> vector<16x128xf32>
    %523 = vector.broadcast %516 : vector<1x128xf32> to vector<16x128xf32>
    %524 = arith.addf %522, %523 : vector<16x128xf32>
    %c0_288 = arith.constant 0 : index
    %c0_289 = arith.constant 0 : index
    %525 = vector.load %arg9[%c0_288, %c0_289] : memref<16x128xf32, #tpu.memory_space<vmem>>, vector<16x128xf32>
    tpu.vector_store %arg9[%c0_288, %c0_289], %524 {strides = array<i32>} : memref<16x128xf32, #tpu.memory_space<vmem>>, vector<16x128xf32>,
    %526 = tpu.iota {dimensions = array<i32: 1>} : vector<16x128xi32>
    %c3_i32 = arith.constant 3 : i32
    %527 = vector.broadcast %c3_i32 : i32 to vector<16x128xi32>
    %528 = arith.cmpi slt, %526, %527 : vector<16x128xi32>
    %cst_290 = arith.constant -1.000000e+30 : f32
    %529 = vector.broadcast %cst_290 : f32 to vector<16x128xf32>
    %530 = arith.select %528, %524, %529 : vector<16x128xi1>, vector<16x128xf32>
    %cst_291 = arith.constant dense<0xFF800000> : vector<16xf32>
    %531 = vector.multi_reduction <maximumf>, %530, %cst_291 [1] : vector<16x128xf32> to vector<16xf32>
    %532 = vector.shape_cast %531 : vector<16xf32> to vector<16x1xf32>
    %533 = vector.broadcast %532 : vector<16x1xf32> to vector<16x128xf32>
    %534 = arith.subf %530, %533 : vector<16x128xf32>
    %535 = math.exp %534 : vector<16x128xf32>
    %cst_292 = arith.constant dense<0.000000e+00> : vector<16xf32>
    %536 = vector.multi_reduction <add>, %535, %cst_292 [1] : vector<16x128xf32> to vector<16xf32>
    %537 = vector.shape_cast %536 : vector<16xf32> to vector<16x1xf32>
    %538 = math.log %537 : vector<16x1xf32>
    %539 = arith.addf %532, %538 : vector<16x1xf32>
    %540 = vector.broadcast %1 : vector<16x1xi32> to vector<16x128xi32>
    %541 = arith.cmpi eq, %526, %540 : vector<16x128xi32>
    %542 = arith.extui %541 : vector<16x128xi1> to vector<16x128xi32>
    %543 = arith.sitofp %542 : vector<16x128xi32> to vector<16x128xf32>
    %544 = arith.mulf %524, %543 : vector<16x128xf32>
    %cst_293 = arith.constant dense<0.000000e+00> : vector<16xf32>
    %545 = vector.multi_reduction <add>, %544, %cst_293 [1] : vector<16x128xf32> to vector<16xf32>
    %546 = vector.shape_cast %545 : vector<16xf32> to vector<16x1xf32>
    %547 = arith.subf %539, %546 : vector<16x1xf32>
    %548 = vector.shape_cast %547 : vector<16x1xf32> to vector<1x16x1xf32>
    %cst_294 = arith.constant dense<0.000000e+00> : vector<1xf32>
    %549 = vector.multi_reduction <add>, %548, %cst_294 [1, 2] : vector<1x16x1xf32> to vector<1xf32>
    %550 = vector.shape_cast %549 : vector<1xf32> to vector<1x1x1xf32>
    %551 = vector.extract %550[0, 0, 0] : f32 from vector<1x1x1xf32>
    %cst_295 = arith.constant 6.250000e-02 : f32
    %552 = arith.mulf %551, %cst_295 : f32
    %c0_296 = arith.constant 0 : index
    %c0_297 = arith.constant 0 : index
    %553 = memref.load %arg10[%c0_296, %c0_297] : memref<1x1xf32, #tpu.memory_space<smem>>
    memref.store %552, %arg10[%c0_296, %c0_297] : memref<1x1xf32, #tpu.memory_space<smem>>
    return
  }
  func.func @transform_0(%arg0: i32) -> (i32, i32) {
    %c0_i32 = arith.constant 0 : i32
    %c0_i32_0 = arith.constant 0 : i32
    %c0_i32_1 = arith.constant 0 : i32
    return %c0_i32, %c0_i32_0 : i32, i32
  }
  func.func @transform_1(%arg0: i32) -> (i32, i32) {
    %c0_i32 = arith.constant 0 : i32
    %c0_i32_0 = arith.constant 0 : i32
    %c0_i32_1 = arith.constant 0 : i32
    return %c0_i32, %c0_i32_0 : i32, i32
  }
  func.func @transform_2(%arg0: i32) -> (i32, i32) {
    %c0_i32 = arith.constant 0 : i32
    %c0_i32_0 = arith.constant 0 : i32
    %c0_i32_1 = arith.constant 0 : i32
    return %c0_i32, %c0_i32_0 : i32, i32
  }
  func.func @transform_3(%arg0: i32) -> (i32, i32, i32) {
    %c0_i32 = arith.constant 0 : i32
    %c0_i32_0 = arith.constant 0 : i32
    %c0_i32_1 = arith.constant 0 : i32
    %c0_i32_2 = arith.constant 0 : i32
    return %c0_i32, %c0_i32_0, %c0_i32_1 : i32, i32, i32
  }
  func.func @transform_4(%arg0: i32) -> (i32, i32, i32) {
    %c0_i32 = arith.constant 0 : i32
    %c0_i32_0 = arith.constant 0 : i32
    %c0_i32_1 = arith.constant 0 : i32
    %c0_i32_2 = arith.constant 0 : i32
    return %c0_i32, %c0_i32_0, %c0_i32_1 : i32, i32, i32
  }
  func.func @transform_5(%arg0: i32) -> (i32, i32, i32) {
    %c0_i32 = arith.constant 0 : i32
    %c0_i32_0 = arith.constant 0 : i32
    %c0_i32_1 = arith.constant 0 : i32
    %c0_i32_2 = arith.constant 0 : i32
    return %c0_i32, %c0_i32_0, %c0_i32_1 : i32, i32, i32
  }
  func.func @transform_6(%arg0: i32) -> (i32, i32, i32) {
    %c0_i32 = arith.constant 0 : i32
    %c0_i32_0 = arith.constant 0 : i32
    %c0_i32_1 = arith.constant 0 : i32
    %c0_i32_2 = arith.constant 0 : i32
    return %c0_i32, %c0_i32_0, %c0_i32_1 : i32, i32, i32
  }
  func.func @transform_7(%arg0: i32) -> (i32, i32) {
    %c0_i32 = arith.constant 0 : i32
    %c0_i32_0 = arith.constant 0 : i32
    %c0_i32_1 = arith.constant 0 : i32
    return %c0_i32, %c0_i32_0 : i32, i32
  }
  func.func @transform_8(%arg0: i32) -> (i32, i32) {
    %c0_i32 = arith.constant 0 : i32
    %c0_i32_0 = arith.constant 0 : i32
    %c0_i32_1 = arith.constant 0 : i32
    return %c0_i32, %c0_i32_0 : i32, i32
  }
  func.func @transform_9(%arg0: i32) -> (i32, i32) {
    %c0_i32 = arith.constant 0 : i32
    %c0_i32_0 = arith.constant 0 : i32
    %c0_i32_1 = arith.constant 0 : i32
    return %c0_i32, %c0_i32_0 : i32, i32
  }
}

</mosaic_0001>

<llo_original>
// kernel: sep_layer_bert_forward.1
$region0: #{sep_layer_bert_forward.1}
  #allocation0 [shape = 'u32[]', space=smem, size = 0x4, offset = 0x4, fixed_abs, tag = 'smem constant byte address 0x4 - core index']
  #allocation1 [shape = 'u32[72,128]{1,0:T(1,128)}', space=vmem, size = 0x9000, scoped, tag = 'internal scratch']
  %s0 = inlined_call_operand.vmem [shape: s32[16,2], index: 0, kind: input, shape index: {}]
  %s1 = inlined_call_operand.vmem [shape: f32[128,32], index: 1, kind: input, shape index: {}]
  %s2 = inlined_call_operand.vmem [shape: f32[29,32], index: 2, kind: input, shape index: {}]
  %s3 = inlined_call_operand.vmem [shape: f32[24,32,8], index: 3, kind: input, shape index: {}]
  %s4 = inlined_call_operand.vmem [shape: f32[8,8,32], index: 4, kind: input, shape index: {}]
  %s5 = inlined_call_operand.vmem [shape: f32[2,32,128], index: 5, kind: input, shape index: {}]
  %s6 = inlined_call_operand.vmem [shape: f32[2,128,32], index: 6, kind: input, shape index: {}]
  %s7 = inlined_call_operand.vmem [shape: f32[104,128], index: 7, kind: input, shape index: {}]
  %s8 = inlined_call_operand.vmem [shape: f32[16,128], index: 8, kind: output, shape index: {0}]
  %s9 = inlined_call_operand.hbm [shape: f32[1,1], index: 9, kind: output, shape index: {1}]
  %10 = xla_tuple %s8, %s9
  %s11 = sld [smem:[#allocation0]]
  $region50: #{sep_layer_bert_forward.1} parent=0
    _
  %s13 = ssub.s32 1, %s11
  %s14 = scalar_select 0, %s13, %s11
  $region1: #{sep_layer_bert_forward.1} parent=0
    #allocation2 [shape = 'u8[512]{0}', space=smem, size = 0x200, scoped, tag = 'output window, operand 1, single buffered']
    #allocation3 [shape = 's32[1]{0}', space=sflag, size = 0x4, scoped, tag = 'scoped memory for sep_layer_bert_forward.1']
    %15 = vsyncpa [#allocation3], 0
    // Predicated region
    $region2: #{sep_layer_bert_forward.1} parent=1 // pred_check
      _
    $region3: #{sep_layer_bert_forward.1} parent=1 // pred_check_branch
      %17 = sbr.rel (0) target = $region5
    $region4: #{sep_layer_bert_forward.1} parent=1 // pred_region
      _
    $region5: #{sep_layer_bert_forward.1} parent=1 // pred_fallthru
      _
    // Predicated region
    $region6: #{sep_layer_bert_forward.1} parent=1 // pred_check
      _
    $region7: #{sep_layer_bert_forward.1} parent=1 // pred_check_branch
      %19 = sbr.rel (0) target = $region9
    $region8: #{sep_layer_bert_forward.1} parent=1 // pred_region
      _
    $region9: #{sep_layer_bert_forward.1} parent=1 // pred_fallthru
      _
    // Predicated region
    $region10: #{sep_layer_bert_forward.1} parent=1 // pred_check
      _
    $region11: #{sep_layer_bert_forward.1} parent=1 // pred_check_branch
      %21 = sbr.rel (0) target = $region13
    $region12: #{sep_layer_bert_forward.1} parent=1 // pred_region
      _
    $region13: #{sep_layer_bert_forward.1} parent=1 // pred_fallthru
      _
    // Predicated region
    $region14: #{sep_layer_bert_forward.1} parent=1 // pred_check
      _
    $region15: #{sep_layer_bert_forward.1} parent=1 // pred_check_branch
      %23 = sbr.rel (0) target = $region17
    $region16: #{sep_layer_bert_forward.1} parent=1 // pred_region
      _
    $region17: #{sep_layer_bert_forward.1} parent=1 // pred_fallthru
      _
    // Predicated region
    $region18: #{sep_layer_bert_forward.1} parent=1 // pred_check
      _
    $region19: #{sep_layer_bert_forward.1} parent=1 // pred_check_branch
      %25 = sbr.rel (0) target = $region21
    $region20: #{sep_layer_bert_forward.1} parent=1 // pred_region
      _
    $region21: #{sep_layer_bert_forward.1} parent=1 // pred_fallthru
      _
    // Predicated region
    $region22: #{sep_layer_bert_forward.1} parent=1 // pred_check
      _
    $region23: #{sep_layer_bert_forward.1} parent=1 // pred_check_branch
      %27 = sbr.rel (0) target = $region25
    $region24: #{sep_layer_bert_forward.1} parent=1 // pred_region
      _
    $region25: #{sep_layer_bert_forward.1} parent=1 // pred_fallthru
      _
    // Predicated region
    $region26: #{sep_layer_bert_forward.1} parent=1 // pred_check
      _
    $region27: #{sep_layer_bert_forward.1} parent=1 // pred_check_branch
      %29 = sbr.rel (0) target = $region29
    $region28: #{sep_layer_bert_forward.1} parent=1 // pred_region
      _
    $region29: #{sep_layer_bert_forward.1} parent=1 // pred_fallthru
      _
    // Predicated region
    $region30: #{sep_layer_bert_forward.1} parent=1 // pred_check
      _
    $region31: #{sep_layer_bert_forward.1} parent=1 // pred_check_branch
      %31 = sbr.rel (0) target = $region33
    $region32: #{sep_layer_bert_forward.1} parent=1 // pred_region
      _
    $region33: #{sep_layer_bert_forward.1} parent=1 // pred_fallthru
      _
    %v32 = vld [vmem:[%s0] sm:$0xff]
    %v33 = vld [vmem:[%s0 + $0x8] sm:$0xff]
    %v34 = vlaneseq
    %v35 = vand.u32 %v34, 127
    %36 = vset.pattern.permute.xlu0 0
    %37 = vperm.xlu0 %36, %v32
    %v38 = vpop.permute.xlu0 %37
    %39 = vset.pattern.permute.xlu0 0
    %40 = vperm.xlu0 %39, %v33
    %v41 = vpop.permute.xlu0 %40
    %vm42 = vcmp.eq.s32.totalorder %v35, %v38
    %vm43 = vcmp.eq.s32.totalorder %v35, %v41
    %v44 = vsel %vm42, 1, 0
    %v45 = vsel %vm43, 1, 0
    %v46 = vcvt.s32.f32 %v44
    %v47 = vcvt.s32.f32 %v45
    %v48 = vld [vmem:[%s1] sm:$0xff]
    %v49 = vld [vmem:[%s1 + $0x8] sm:$0xff]
    %v50 = vld [vmem:[%s1 + $0x10] sm:$0xff]
    %v51 = vld [vmem:[%s1 + $0x18] sm:$0xff]
    %v52 = vld [vmem:[%s1 + $0x20] sm:$0xff]
    %v53 = vld [vmem:[%s1 + $0x28] sm:$0xff]
    %v54 = vld [vmem:[%s1 + $0x30] sm:$0xff]
    %v55 = vld [vmem:[%s1 + $0x38] sm:$0xff]
    %v56 = vld [vmem:[%s1 + $0x40] sm:$0xff]
    %v57 = vld [vmem:[%s1 + $0x48] sm:$0xff]
    %v58 = vld [vmem:[%s1 + $0x50] sm:$0xff]
    %v59 = vld [vmem:[%s1 + $0x58] sm:$0xff]
    %v60 = vld [vmem:[%s1 + $0x60] sm:$0xff]
    %v61 = vld [vmem:[%s1 + $0x68] sm:$0xff]
    %v62 = vld [vmem:[%s1 + $0x70] sm:$0xff]
    %v63 = vld [vmem:[%s1 + $0x78] sm:$0xff]
    %64 = vmatpush.msra.mxu0 %v63
    %65 = vmatpush.msra.mxu0 %v62
    %66 = vmatpush.msra.mxu0 %v61
    %67 = vmatpush.msra.mxu0 %v60
    %68 = vmatpush.msra.mxu0 %v59
    %69 = vmatpush.msra.mxu0 %v58
    %70 = vmatpush.msra.mxu0 %v57
    %71 = vmatpush.msra.mxu0 %v56
    %72 = vmatpush.msra.mxu0 %v55
    %73 = vmatpush.msra.mxu0 %v54
    %74 = vmatpush.msra.mxu0 %v53
    %75 = vmatpush.msra.mxu0 %v52
    %76 = vmatpush.msra.mxu0 %v51
    %77 = vmatpush.msra.mxu0 %v50
    %78 = vmatpush.msra.mxu0 %v49
    %79 = vmatpush.msra.mxu0 %v48
    %80 = vmatmul.f32.gmra.mxu0 %v46
    %v81 = vpop.f32.mrf.mxu0
    %v82 = vadd.f32 0.0, %v81
    %83 = vmatmul.f32.gmra.mxu0 %v47
    %v84 = vpop.f32.mrf.mxu0
    %v85 = vadd.f32 0.0, %v84
    %86 = vdwg.mxu0
    %v87 = vld [vmem:[%s2] sm:$0xff]
    %v88 = vld [vmem:[%s2 + $0x8] sm:$0x1]
    %v89 = vadd.f32 %v82, %v87
    %v90 = vadd.f32 %v85, %v87
    %v91 = vperm.slane %v88, 0
    %v92 = vadd.f32 %v89, %v91
    %v93 = vadd.f32 %v90, %v91
    %v94 = vld [vmem:[%s2 + $0x9] sm:$0x1]
    %v95 = vld [vmem:[%s2 + $0xa] sm:$0x1]
    %vm96 = vcmask 261120
    %v97 = vsel %vm96, %v92, 0.0
    %98 = vadd.xlane.f32.xlu0 %v97
    %v99 = vpop.xlane.xlu0 %98
    %v100 = vsel %vm96, %v93, 0.0
    %101 = vadd.xlane.f32.xlu0 %v100
    %v102 = vpop.xlane.xlu0 %101
    %v103 = vrcp.pop 32.0
    %v104 = vmul.f32 32.0, %v103
    %v105 = vsub.f32 1.0, %v104
    %v106 = vmul.f32 %v103, %v105
    %v107 = vadd.f32 %v103, %v106
    %vm108 = vweird.f32 %v103
    %v109 = vsel %vm108, %v103, %v107
    %v110 = vmul.f32 %v99, %v109
    %v111 = vmul.f32 %v102, %v109
    %v112 = vsub.f32 %v92, %v110
    %v113 = vsub.f32 %v93, %v111
    %v114 = vmul.f32 %v112, %v112
    %v115 = vmul.f32 %v113, %v113
    %v116 = vsel %vm96, %v114, 0.0
    %117 = vadd.xlane.f32.xlu0 %v116
    %v118 = vpop.xlane.xlu0 %117
    %v119 = vsel %vm96, %v115, 0.0
    %120 = vadd.xlane.f32.xlu0 %v119
    %v121 = vpop.xlane.xlu0 %120
    %v122 = vmul.f32 %v118, %v109
    %v123 = vmul.f32 %v121, %v109
    %v124 = vadd.f32 %v122, 1e-12
    %v125 = vadd.f32 %v123, 1e-12
    %v126 = vrsqrt.pop %v124
    %v127 = vmul.f32 %v126, %v124
    %v128 = vmul.f32 %v127, %v126
    %v129 = vmul.f32 0.5, %v128
    %v130 = vsub.f32 1.5, %v129
    %v131 = vmul.f32 %v126, %v130
    %vm132 = vweird.f32 %v124
    %vm133 = vweird.f32 %v126
    %vm134 = vmor %vm132, %vm133
    %v135 = vsel %vm134, %v126, %v131
    %v136 = vrsqrt.pop %v125
    %v137 = vmul.f32 %v136, %v125
    %v138 = vmul.f32 %v137, %v136
    %v139 = vmul.f32 0.5, %v138
    %v140 = vsub.f32 1.5, %v139
    %v141 = vmul.f32 %v136, %v140
    %vm142 = vweird.f32 %v125
    %vm143 = vweird.f32 %v136
    %vm144 = vmor %vm142, %vm143
    %v145 = vsel %vm144, %v136, %v141
    %v146 = vmul.f32 %v112, %v135
    %v147 = vmul.f32 %v113, %v145
    %v148 = vperm.slane %v94, 0
    %v149 = vmul.f32 %v146, %v148
    %v150 = vmul.f32 %v147, %v148
    %v151 = vperm.slane %v95, 0
    %v152 = vadd.f32 %v149, %v151
    %v153 = vadd.f32 %v150, %v151
    %v154 = vld [vmem:[%s2 + $0xe] sm:$0x1]
    %v155 = vld [vmem:[%s2 + $0xf] sm:$0x1]
    %v156 = vld [vmem:[%s2 + $0x10] sm:$0x1]
    %v157 = vld [vmem:[%s2 + $0x11] sm:$0x1]
    %v158 = vld [vmem:[%s2 + $0x12] sm:$0x1]
    %v159 = vld [vmem:[%s2 + $0x13] sm:$0x1]
    %v160 = vld [vmem:[%s7] sm:$0x1]
    %v161 = vld [vmem:[%s3] sm:$0xff]
    %v162 = vld [vmem:[%s3 + $0x8] sm:$0xff]
    %v163 = vld [vmem:[%s3 + $0x10] sm:$0xff]
    %v164 = vld [vmem:[%s3 + $0x18] sm:$0xff]
    %s165 = scalar_lea.vmem %s3, 128
    %v166 = vld [vmem:[%s165] sm:$0xff]
    %v167 = vld [vmem:[%s165 + $0x8] sm:$0xff]
    %v168 = vld [vmem:[%s165 + $0x10] sm:$0xff]
    %v169 = vld [vmem:[%s165 + $0x18] sm:$0xff]
    %s170 = scalar_lea.vmem %s3, 256
    %v171 = vld [vmem:[%s170] sm:$0xff]
    %v172 = vld [vmem:[%s170 + $0x8] sm:$0xff]
    %v173 = vld [vmem:[%s170 + $0x10] sm:$0xff]
    %v174 = vld [vmem:[%s170 + $0x18] sm:$0xff]
    %v175 = vld [vmem:[%s4] sm:$0xff]
    %v176 = vld [vmem:[%s2 + $0xb] sm:$0x1]
    %v177 = vld [vmem:[%s2 + $0xc] sm:$0x1]
    %v178 = vld [vmem:[%s2 + $0xd] sm:$0x1]
    %v179 = vperm.slane %v176, 0
    %v181 = vsel %vm96, %v152, 0
    %v184 = vsel %vm96, %v153, 0
    %186 = vmatpush.msra.mxu0 0.0
    %187 = vmatpush.msra.mxu0 0.0
    %188 = vmatpush.msra.mxu0 0.0
    %189 = vmatpush.msra.mxu0 0.0
    %190 = vmatpush.msra.mxu0 0.0
    %191 = vmatpush.msra.mxu0 0.0
    %192 = vmatpush.msra.mxu0 0.0
    %193 = vmatpush.msra.mxu0 0.0
    %194 = vmatpush.msra.mxu0 0.0
    %195 = vmatpush.msra.mxu0 0.0
    %196 = vmatpush.msra.mxu0 0.0
    %197 = vmatpush.msra.mxu0 0.0
    %198 = vmatpush.msra.mxu0 %v164
    %199 = vmatpush.msra.mxu0 %v163
    %200 = vmatpush.msra.mxu0 %v162
    %201 = vmatpush.msra.mxu0 %v161
    %202 = vmatmul.f32.gmra.mxu0 %v181
    %v203 = vpop.f32.mrf.mxu0
    %v204 = vadd.f32 %v179, %v203
    %205 = vmatmul.f32.gmra.mxu0 %v184
    %v206 = vpop.f32.mrf.mxu0
    %v207 = vadd.f32 %v179, %v206
    %208 = vdwg.mxu0
    %v209 = vperm.slane %v177, 0
    %210 = vmatpush.msra.mxu0 0.0
    %211 = vmatpush.msra.mxu0 0.0
    %212 = vmatpush.msra.mxu0 0.0
    %213 = vmatpush.msra.mxu0 0.0
    %214 = vmatpush.msra.mxu0 0.0
    %215 = vmatpush.msra.mxu0 0.0
    %216 = vmatpush.msra.mxu0 0.0
    %217 = vmatpush.msra.mxu0 0.0
    %218 = vmatpush.msra.mxu0 0.0
    %219 = vmatpush.msra.mxu0 0.0
    %220 = vmatpush.msra.mxu0 0.0
    %221 = vmatpush.msra.mxu0 0.0
    %222 = vmatpush.msra.mxu0 %v169
    %223 = vmatpush.msra.mxu0 %v168
    %224 = vmatpush.msra.mxu0 %v167
    %225 = vmatpush.msra.mxu0 %v166
    %226 = vmatmul.f32.gmra.mxu0 %v181
    %v227 = vpop.f32.mrf.mxu0
    %v228 = vadd.f32 %v209, %v227
    %229 = vmatmul.f32.gmra.mxu0 %v184
    %v230 = vpop.f32.mrf.mxu0
    %v231 = vadd.f32 %v209, %v230
    %232 = vdwg.mxu0
    %v233 = vperm.slane %v178, 0
    %234 = vmatpush.msra.mxu0 0.0
    %235 = vmatpush.msra.mxu0 0.0
    %236 = vmatpush.msra.mxu0 0.0
    %237 = vmatpush.msra.mxu0 0.0
    %238 = vmatpush.msra.mxu0 0.0
    %239 = vmatpush.msra.mxu0 0.0
    %240 = vmatpush.msra.mxu0 0.0
    %241 = vmatpush.msra.mxu0 0.0
    %242 = vmatpush.msra.mxu0 0.0
    %243 = vmatpush.msra.mxu0 0.0
    %244 = vmatpush.msra.mxu0 0.0
    %245 = vmatpush.msra.mxu0 0.0
    %246 = vmatpush.msra.mxu0 %v174
    %247 = vmatpush.msra.mxu0 %v173
    %248 = vmatpush.msra.mxu0 %v172
    %249 = vmatpush.msra.mxu0 %v171
    %250 = vmatmul.f32.gmra.mxu0 %v181
    %v251 = vpop.f32.mrf.mxu0
    %v252 = vadd.f32 %v233, %v251
    %253 = vmatmul.f32.gmra.mxu0 %v184
    %v254 = vpop.f32.mrf.mxu0
    %v255 = vadd.f32 %v233, %v254
    %256 = vdwg.mxu0
    %vm257 = vcmask 64512
    %v259 = vsel %vm257, %v204, 0
    %v262 = vsel %vm257, %v228, 0
    %264 = vmatpush.xpose.msra.mxu0 0.0
    %265 = vmatpush.xpose.msra.mxu0 0.0
    %266 = vmatpush.xpose.msra.mxu0 0.0
    %267 = vmatpush.xpose.msra.mxu0 0.0
    %268 = vmatpush.xpose.msra.mxu0 0.0
    %269 = vmatpush.xpose.msra.mxu0 0.0
    %270 = vmatpush.xpose.msra.mxu0 0.0
    %271 = vmatpush.xpose.msra.mxu0 0.0
    %272 = vmatpush.xpose.msra.mxu0 0.0
    %273 = vmatpush.xpose.msra.mxu0 0.0
    %274 = vmatpush.xpose.msra.mxu0 0.0
    %275 = vmatpush.xpose.msra.mxu0 0.0
    %276 = vmatpush.xpose.msra.mxu0 0.0
    %277 = vmatpush.xpose.msra.mxu0 0.0
    %278 = vmatpush.xpose.msra.mxu0 0.0
    %279 = vmatpush.xpose.msra.mxu0 %v262
    %280 = vmatmul.f32.gmra.mxu0 %v259
    %v281 = vpop.f32.mrf.mxu0
    %v282 = vadd.f32 0.0, %v281
    %283 = vdwg.mxu0
    %v285 = vsel %vm257, %v207, 0
    %v288 = vsel %vm257, %v231, 0
    %290 = vmatpush.xpose.msra.mxu0 0.0
    %291 = vmatpush.xpose.msra.mxu0 0.0
    %292 = vmatpush.xpose.msra.mxu0 0.0
    %293 = vmatpush.xpose.msra.mxu0 0.0
    %294 = vmatpush.xpose.msra.mxu0 0.0
    %295 = vmatpush.xpose.msra.mxu0 0.0
    %296 = vmatpush.xpose.msra.mxu0 0.0
    %297 = vmatpush.xpose.msra.mxu0 0.0
    %298 = vmatpush.xpose.msra.mxu0 0.0
    %299 = vmatpush.xpose.msra.mxu0 0.0
    %300 = vmatpush.xpose.msra.mxu0 0.0
    %301 = vmatpush.xpose.msra.mxu0 0.0
    %302 = vmatpush.xpose.msra.mxu0 0.0
    %303 = vmatpush.xpose.msra.mxu0 0.0
    %304 = vmatpush.xpose.msra.mxu0 0.0
    %305 = vmatpush.xpose.msra.mxu0 %v288
    %306 = vmatmul.f32.gmra.mxu0 %v285
    %v307 = vpop.f32.mrf.mxu0
    %v308 = vadd.f32 0.0, %v307
    %309 = vdwg.mxu0
    %v310 = vmul.f32 %v282, 0.35355338
    %v311 = vmul.f32 %v308, 0.35355338
    %v312 = vsel %vm257, %v310, -inf
    %313 = vmax.xlane.f32.xlu0 %v312
    %v314 = vpop.xlane.xlu0 %313
    %v315 = vsel %vm257, %v311, -inf
    %316 = vmax.xlane.f32.xlu0 %v315
    %v317 = vpop.xlane.xlu0 %316
    %v318 = vsub.f32 %v310, %v314
    %v319 = vsub.f32 %v311, %v317
    %v320 = vmul.f32 %v318, 1.442695
    %v321 = vpow.pop %v320
    %v322 = vmul.f32 %v319, 1.442695
    %v323 = vpow.pop %v322
    %v324 = vsel %vm257, %v321, 0.0
    %325 = vadd.xlane.f32.xlu0 %v324
    %v326 = vpop.xlane.xlu0 %325
    %v327 = vsel %vm257, %v323, 0.0
    %328 = vadd.xlane.f32.xlu0 %v327
    %v329 = vpop.xlane.xlu0 %328
    %v330 = vrcp.pop %v326
    %v331 = vrcp.pop %v329
    %v333 = vsel %vm257, %v321, 0
    %335 = vmatpush.msra.mxu0 0.0
    %336 = vmatpush.msra.mxu0 0.0
    %337 = vmatpush.msra.mxu0 0.0
    %338 = vmatpush.msra.mxu0 0.0
    %339 = vmatpush.msra.mxu0 0.0
    %340 = vmatpush.msra.mxu0 0.0
    %341 = vmatpush.msra.mxu0 0.0
    %342 = vmatpush.msra.mxu0 0.0
    %343 = vmatpush.msra.mxu0 0.0
    %344 = vmatpush.msra.mxu0 0.0
    %345 = vmatpush.msra.mxu0 0.0
    %346 = vmatpush.msra.mxu0 0.0
    %347 = vmatpush.msra.mxu0 0.0
    %348 = vmatpush.msra.mxu0 0.0
    %349 = vmatpush.msra.mxu0 0.0
    %350 = vmatpush.msra.mxu0 %v252
    %351 = vmatmul.f32.gmra.mxu0 %v333
    %v352 = vpop.f32.mrf.mxu0
    %v353 = vadd.f32 0.0, %v352
    %354 = vdwg.mxu0
    %v356 = vsel %vm257, %v323, 0
    %358 = vmatpush.msra.mxu0 0.0
    %359 = vmatpush.msra.mxu0 0.0
    %360 = vmatpush.msra.mxu0 0.0
    %361 = vmatpush.msra.mxu0 0.0
    %362 = vmatpush.msra.mxu0 0.0
    %363 = vmatpush.msra.mxu0 0.0
    %364 = vmatpush.msra.mxu0 0.0
    %365 = vmatpush.msra.mxu0 0.0
    %366 = vmatpush.msra.mxu0 0.0
    %367 = vmatpush.msra.mxu0 0.0
    %368 = vmatpush.msra.mxu0 0.0
    %369 = vmatpush.msra.mxu0 0.0
    %370 = vmatpush.msra.mxu0 0.0
    %371 = vmatpush.msra.mxu0 0.0
    %372 = vmatpush.msra.mxu0 0.0
    %373 = vmatpush.msra.mxu0 %v255
    %374 = vmatmul.f32.gmra.mxu0 %v356
    %v375 = vpop.f32.mrf.mxu0
    %v376 = vadd.f32 0.0, %v375
    %377 = vdwg.mxu0
    %v378 = vmul.f32 %v353, %v330
    %v379 = vmul.f32 %v376, %v331
    %s380 = scalar_lea.vmem %s3, 32
    %v381 = vld [vmem:[%s380] sm:$0xff]
    %v382 = vld [vmem:[%s380 + $0x8] sm:$0xff]
    %v383 = vld [vmem:[%s380 + $0x10] sm:$0xff]
    %v384 = vld [vmem:[%s380 + $0x18] sm:$0xff]
    %s385 = scalar_lea.vmem %s3, 160
    %v386 = vld [vmem:[%s385] sm:$0xff]
    %v387 = vld [vmem:[%s385 + $0x8] sm:$0xff]
    %v388 = vld [vmem:[%s385 + $0x10] sm:$0xff]
    %v389 = vld [vmem:[%s385 + $0x18] sm:$0xff]
    %s390 = scalar_lea.vmem %s3, 288
    %v391 = vld [vmem:[%s390] sm:$0xff]
    %v392 = vld [vmem:[%s390 + $0x8] sm:$0xff]
    %v393 = vld [vmem:[%s390 + $0x10] sm:$0xff]
    %v394 = vld [vmem:[%s390 + $0x18] sm:$0xff]
    %s395 = scalar_lea.vmem %s4, 8
    %v396 = vld [vmem:[%s395] sm:$0xff]
    %v397 = vld [vmem:[%s2 + $0xb] sm:$0x1]
    %v398 = vld [vmem:[%s2 + $0xc] sm:$0x1]
    %v399 = vld [vmem:[%s2 + $0xd] sm:$0x1]
    %v400 = vperm.slane %v397, 0
    %402 = vrot.lane.b32.xlu0 %v400, 120
    %v403 = vpop.permute.xlu0 %402
    %405 = vmatpush.msra.mxu0 0.0
    %406 = vmatpush.msra.mxu0 0.0
    %407 = vmatpush.msra.mxu0 0.0
    %408 = vmatpush.msra.mxu0 0.0
    %409 = vmatpush.msra.mxu0 0.0
    %410 = vmatpush.msra.mxu0 0.0
    %411 = vmatpush.msra.mxu0 0.0
    %412 = vmatpush.msra.mxu0 0.0
    %413 = vmatpush.msra.mxu0 0.0
    %414 = vmatpush.msra.mxu0 0.0
    %415 = vmatpush.msra.mxu0 0.0
    %416 = vmatpush.msra.mxu0 0.0
    %417 = vmatpush.msra.mxu0 %v384
    %418 = vmatpush.msra.mxu0 %v383
    %419 = vmatpush.msra.mxu0 %v382
    %420 = vmatpush.msra.mxu0 %v381
    %421 = vmatmul.f32.gmra.mxu0 %v181
    %v422 = vpop.f32.mrf.mxu0
    %v423 = vadd.f32 %v403, %v422
    %424 = vmatmul.f32.gmra.mxu0 %v184
    %v425 = vpop.f32.mrf.mxu0
    %v426 = vadd.f32 %v403, %v425
    %427 = vdwg.mxu0
    %v428 = vperm.slane %v398, 0
    %430 = vrot.lane.b32.xlu0 %v428, 120
    %v431 = vpop.permute.xlu0 %430
    %433 = vmatpush.msra.mxu0 0.0
    %434 = vmatpush.msra.mxu0 0.0
    %435 = vmatpush.msra.mxu0 0.0
    %436 = vmatpush.msra.mxu0 0.0
    %437 = vmatpush.msra.mxu0 0.0
    %438 = vmatpush.msra.mxu0 0.0
    %439 = vmatpush.msra.mxu0 0.0
    %440 = vmatpush.msra.mxu0 0.0
    %441 = vmatpush.msra.mxu0 0.0
    %442 = vmatpush.msra.mxu0 0.0
    %443 = vmatpush.msra.mxu0 0.0
    %444 = vmatpush.msra.mxu0 0.0
    %445 = vmatpush.msra.mxu0 %v389
    %446 = vmatpush.msra.mxu0 %v388
    %447 = vmatpush.msra.mxu0 %v387
    %448 = vmatpush.msra.mxu0 %v386
    %449 = vmatmul.f32.gmra.mxu0 %v181
    %v450 = vpop.f32.mrf.mxu0
    %v451 = vadd.f32 %v431, %v450
    %452 = vmatmul.f32.gmra.mxu0 %v184
    %v453 = vpop.f32.mrf.mxu0
    %v454 = vadd.f32 %v431, %v453
    %455 = vdwg.mxu0
    %v456 = vperm.slane %v399, 0
    %458 = vrot.lane.b32.xlu0 %v456, 120
    %v459 = vpop.permute.xlu0 %458
    %461 = vmatpush.msra.mxu0 0.0
    %462 = vmatpush.msra.mxu0 0.0
    %463 = vmatpush.msra.mxu0 0.0
    %464 = vmatpush.msra.mxu0 0.0
    %465 = vmatpush.msra.mxu0 0.0
    %466 = vmatpush.msra.mxu0 0.0
    %467 = vmatpush.msra.mxu0 0.0
    %468 = vmatpush.msra.mxu0 0.0
    %469 = vmatpush.msra.mxu0 0.0
    %470 = vmatpush.msra.mxu0 0.0
    %471 = vmatpush.msra.mxu0 0.0
    %472 = vmatpush.msra.mxu0 0.0
    %473 = vmatpush.msra.mxu0 %v394
    %474 = vmatpush.msra.mxu0 %v393
    %475 = vmatpush.msra.mxu0 %v392
    %476 = vmatpush.msra.mxu0 %v391
    %477 = vmatmul.f32.gmra.mxu0 %v181
    %v478 = vpop.f32.mrf.mxu0
    %v479 = vadd.f32 %v459, %v478
    %480 = vmatmul.f32.gmra.mxu0 %v184
    %v481 = vpop.f32.mrf.mxu0
    %v482 = vadd.f32 %v459, %v481
    %483 = vdwg.mxu0
    %v485 = vsel %vm257, %v423, 0
    %v488 = vsel %vm257, %v451, 0
    %490 = vmatpush.xpose.msra.mxu0 0.0
    %491 = vmatpush.xpose.msra.mxu0 0.0
    %492 = vmatpush.xpose.msra.mxu0 0.0
    %493 = vmatpush.xpose.msra.mxu0 0.0
    %494 = vmatpush.xpose.msra.mxu0 0.0
    %495 = vmatpush.xpose.msra.mxu0 0.0
    %496 = vmatpush.xpose.msra.mxu0 0.0
    %497 = vmatpush.xpose.msra.mxu0 0.0
    %498 = vmatpush.xpose.msra.mxu0 0.0
    %499 = vmatpush.xpose.msra.mxu0 0.0
    %500 = vmatpush.xpose.msra.mxu0 0.0
    %501 = vmatpush.xpose.msra.mxu0 0.0
    %502 = vmatpush.xpose.msra.mxu0 0.0
    %503 = vmatpush.xpose.msra.mxu0 0.0
    %504 = vmatpush.xpose.msra.mxu0 0.0
    %505 = vmatpush.xpose.msra.mxu0 %v488
    %506 = vmatmul.f32.gmra.mxu0 %v485
    %v507 = vpop.f32.mrf.mxu0
    %v508 = vadd.f32 0.0, %v507
    %509 = vdwg.mxu0
    %v511 = vsel %vm257, %v426, 0
    %v514 = vsel %vm257, %v454, 0
    %516 = vmatpush.xpose.msra.mxu0 0.0
    %517 = vmatpush.xpose.msra.mxu0 0.0
    %518 = vmatpush.xpose.msra.mxu0 0.0
    %519 = vmatpush.xpose.msra.mxu0 0.0
    %520 = vmatpush.xpose.msra.mxu0 0.0
    %521 = vmatpush.xpose.msra.mxu0 0.0
    %522 = vmatpush.xpose.msra.mxu0 0.0
    %523 = vmatpush.xpose.msra.mxu0 0.0
    %524 = vmatpush.xpose.msra.mxu0 0.0
    %525 = vmatpush.xpose.msra.mxu0 0.0
    %526 = vmatpush.xpose.msra.mxu0 0.0
    %527 = vmatpush.xpose.msra.mxu0 0.0
    %528 = vmatpush.xpose.msra.mxu0 0.0
    %529 = vmatpush.xpose.msra.mxu0 0.0
    %530 = vmatpush.xpose.msra.mxu0 0.0
    %531 = vmatpush.xpose.msra.mxu0 %v514
    %532 = vmatmul.f32.gmra.mxu0 %v511
    %v533 = vpop.f32.mrf.mxu0
    %v534 = vadd.f32 0.0, %v533
    %535 = vdwg.mxu0
    %v536 = vmul.f32 %v508, 0.35355338
    %v537 = vmul.f32 %v534, 0.35355338
    %v538 = vsel %vm257, %v536, -inf
    %539 = vmax.xlane.f32.xlu0 %v538
    %v540 = vpop.xlane.xlu0 %539
    %v541 = vsel %vm257, %v537, -inf
    %542 = vmax.xlane.f32.xlu0 %v541
    %v543 = vpop.xlane.xlu0 %542
    %v544 = vsub.f32 %v536, %v540
    %v545 = vsub.f32 %v537, %v543
    %v546 = vmul.f32 %v544, 1.442695
    %v547 = vpow.pop %v546
    %v548 = vmul.f32 %v545, 1.442695
    %v549 = vpow.pop %v548
    %v550 = vsel %vm257, %v547, 0.0
    %551 = vadd.xlane.f32.xlu0 %v550
    %v552 = vpop.xlane.xlu0 %551
    %v553 = vsel %vm257, %v549, 0.0
    %554 = vadd.xlane.f32.xlu0 %v553
    %v555 = vpop.xlane.xlu0 %554
    %v556 = vrcp.pop %v552
    %v557 = vrcp.pop %v555
    %v559 = vsel %vm257, %v547, 0
    %561 = vmatpush.msra.mxu0 0.0
    %562 = vmatpush.msra.mxu0 0.0
    %563 = vmatpush.msra.mxu0 0.0
    %564 = vmatpush.msra.mxu0 0.0
    %565 = vmatpush.msra.mxu0 0.0
    %566 = vmatpush.msra.mxu0 0.0
    %567 = vmatpush.msra.mxu0 0.0
    %568 = vmatpush.msra.mxu0 0.0
    %569 = vmatpush.msra.mxu0 0.0
    %570 = vmatpush.msra.mxu0 0.0
    %571 = vmatpush.msra.mxu0 0.0
    %572 = vmatpush.msra.mxu0 0.0
    %573 = vmatpush.msra.mxu0 0.0
    %574 = vmatpush.msra.mxu0 0.0
    %575 = vmatpush.msra.mxu0 0.0
    %576 = vmatpush.msra.mxu0 %v479
    %577 = vmatmul.f32.gmra.mxu0 %v559
    %v578 = vpop.f32.mrf.mxu0
    %v579 = vadd.f32 0.0, %v578
    %580 = vdwg.mxu0
    %v582 = vsel %vm257, %v549, 0
    %584 = vmatpush.msra.mxu0 0.0
    %585 = vmatpush.msra.mxu0 0.0
    %586 = vmatpush.msra.mxu0 0.0
    %587 = vmatpush.msra.mxu0 0.0
    %588 = vmatpush.msra.mxu0 0.0
    %589 = vmatpush.msra.mxu0 0.0
    %590 = vmatpush.msra.mxu0 0.0
    %591 = vmatpush.msra.mxu0 0.0
    %592 = vmatpush.msra.mxu0 0.0
    %593 = vmatpush.msra.mxu0 0.0
    %594 = vmatpush.msra.mxu0 0.0
    %595 = vmatpush.msra.mxu0 0.0
    %596 = vmatpush.msra.mxu0 0.0
    %597 = vmatpush.msra.mxu0 0.0
    %598 = vmatpush.msra.mxu0 0.0
    %599 = vmatpush.msra.mxu0 %v482
    %600 = vmatmul.f32.gmra.mxu0 %v582
    %v601 = vpop.f32.mrf.mxu0
    %v602 = vadd.f32 0.0, %v601
    %603 = vdwg.mxu0
    %v604 = vmul.f32 %v579, %v556
    %v605 = vmul.f32 %v602, %v557
    %v607 = vsel %vm257, %v604, 0
    %v610 = vsel %vm257, %v605, 0
    %612 = vmatpush.msra.mxu0 0.0
    %613 = vmatpush.msra.mxu0 0.0
    %614 = vmatpush.msra.mxu0 0.0
    %615 = vmatpush.msra.mxu0 0.0
    %616 = vmatpush.msra.mxu0 0.0
    %617 = vmatpush.msra.mxu0 0.0
    %618 = vmatpush.msra.mxu0 0.0
    %619 = vmatpush.msra.mxu0 0.0
    %620 = vmatpush.msra.mxu0 0.0
    %621 = vmatpush.msra.mxu0 0.0
    %622 = vmatpush.msra.mxu0 0.0
    %623 = vmatpush.msra.mxu0 0.0
    %624 = vmatpush.msra.mxu0 0.0
    %625 = vmatpush.msra.mxu0 0.0
    %626 = vmatpush.msra.mxu0 0.0
    %627 = vmatpush.msra.mxu0 %v396
    %628 = vmatmul.f32.gmra.mxu0 %v607
    %v629 = vpop.f32.mrf.mxu0
    %v630 = vadd.f32 0.0, %v629
    %631 = vmatmul.f32.gmra.mxu0 %v610
    %v632 = vpop.f32.mrf.mxu0
    %v633 = vadd.f32 0.0, %v632
    %634 = vdwg.mxu0
    %v636 = vsel %vm257, %v378, 0
    %v639 = vsel %vm257, %v379, 0
    %641 = vmatpush.msra.mxu0 0.0
    %642 = vmatpush.msra.mxu0 0.0
    %643 = vmatpush.msra.mxu0 0.0
    %644 = vmatpush.msra.mxu0 0.0
    %645 = vmatpush.msra.mxu0 0.0
    %646 = vmatpush.msra.mxu0 0.0
    %647 = vmatpush.msra.mxu0 0.0
    %648 = vmatpush.msra.mxu0 0.0
    %649 = vmatpush.msra.mxu0 0.0
    %650 = vmatpush.msra.mxu0 0.0
    %651 = vmatpush.msra.mxu0 0.0
    %652 = vmatpush.msra.mxu0 0.0
    %653 = vmatpush.msra.mxu0 0.0
    %654 = vmatpush.msra.mxu0 0.0
    %655 = vmatpush.msra.mxu0 0.0
    %656 = vmatpush.msra.mxu0 %v175
    %657 = vmatmul.f32.gmra.mxu0 %v636
    %v658 = vpop.f32.mrf.mxu0
    %v659 = vadd.f32 %v630, %v658
    %660 = vmatmul.f32.gmra.mxu0 %v639
    %v661 = vpop.f32.mrf.mxu0
    %v662 = vadd.f32 %v633, %v661
    %663 = vdwg.mxu0
    %s664 = scalar_lea.vmem %s3, 64
    %v665 = vld [vmem:[%s664] sm:$0xff]
    %v666 = vld [vmem:[%s664 + $0x8] sm:$0xff]
    %v667 = vld [vmem:[%s664 + $0x10] sm:$0xff]
    %v668 = vld [vmem:[%s664 + $0x18] sm:$0xff]
    %s669 = scalar_lea.vmem %s3, 192
    %v670 = vld [vmem:[%s669] sm:$0xff]
    %v671 = vld [vmem:[%s669 + $0x8] sm:$0xff]
    %v672 = vld [vmem:[%s669 + $0x10] sm:$0xff]
    %v673 = vld [vmem:[%s669 + $0x18] sm:$0xff]
    %s674 = scalar_lea.vmem %s3, 320
    %v675 = vld [vmem:[%s674] sm:$0xff]
    %v676 = vld [vmem:[%s674 + $0x8] sm:$0xff]
    %v677 = vld [vmem:[%s674 + $0x10] sm:$0xff]
    %v678 = vld [vmem:[%s674 + $0x18] sm:$0xff]
    %s679 = scalar_lea.vmem %s4, 16
    %v680 = vld [vmem:[%s679] sm:$0xff]
    %v681 = vld [vmem:[%s2 + $0xb] sm:$0x1]
    %v682 = vld [vmem:[%s2 + $0xc] sm:$0x1]
    %v683 = vld [vmem:[%s2 + $0xd] sm:$0x1]
    %v684 = vperm.slane %v681, 0
    %686 = vrot.lane.b32.xlu0 %v684, 112
    %v687 = vpop.permute.xlu0 %686
    %689 = vmatpush.msra.mxu0 0.0
    %690 = vmatpush.msra.mxu0 0.0
    %691 = vmatpush.msra.mxu0 0.0
    %692 = vmatpush.msra.mxu0 0.0
    %693 = vmatpush.msra.mxu0 0.0
    %694 = vmatpush.msra.mxu0 0.0
    %695 = vmatpush.msra.mxu0 0.0
    %696 = vmatpush.msra.mxu0 0.0
    %697 = vmatpush.msra.mxu0 0.0
    %698 = vmatpush.msra.mxu0 0.0
    %699 = vmatpush.msra.mxu0 0.0
    %700 = vmatpush.msra.mxu0 0.0
    %701 = vmatpush.msra.mxu0 %v668
    %702 = vmatpush.msra.mxu0 %v667
    %703 = vmatpush.msra.mxu0 %v666
    %704 = vmatpush.msra.mxu0 %v665
    %705 = vmatmul.f32.gmra.mxu0 %v181
    %v706 = vpop.f32.mrf.mxu0
    %v707 = vadd.f32 %v687, %v706
    %708 = vmatmul.f32.gmra.mxu0 %v184
    %v709 = vpop.f32.mrf.mxu0
    %v710 = vadd.f32 %v687, %v709
    %711 = vdwg.mxu0
    %v712 = vperm.slane %v682, 0
    %714 = vrot.lane.b32.xlu0 %v712, 112
    %v715 = vpop.permute.xlu0 %714
    %717 = vmatpush.msra.mxu0 0.0
    %718 = vmatpush.msra.mxu0 0.0
    %719 = vmatpush.msra.mxu0 0.0
    %720 = vmatpush.msra.mxu0 0.0
    %721 = vmatpush.msra.mxu0 0.0
    %722 = vmatpush.msra.mxu0 0.0
    %723 = vmatpush.msra.mxu0 0.0
    %724 = vmatpush.msra.mxu0 0.0
    %725 = vmatpush.msra.mxu0 0.0
    %726 = vmatpush.msra.mxu0 0.0
    %727 = vmatpush.msra.mxu0 0.0
    %728 = vmatpush.msra.mxu0 0.0
    %729 = vmatpush.msra.mxu0 %v673
    %730 = vmatpush.msra.mxu0 %v672
    %731 = vmatpush.msra.mxu0 %v671
    %732 = vmatpush.msra.mxu0 %v670
    %733 = vmatmul.f32.gmra.mxu0 %v181
    %v734 = vpop.f32.mrf.mxu0
    %v735 = vadd.f32 %v715, %v734
    %736 = vmatmul.f32.gmra.mxu0 %v184
    %v737 = vpop.f32.mrf.mxu0
    %v738 = vadd.f32 %v715, %v737
    %739 = vdwg.mxu0
    %v740 = vperm.slane %v683, 0
    %742 = vrot.lane.b32.xlu0 %v740, 112
    %v743 = vpop.permute.xlu0 %742
    %745 = vmatpush.msra.mxu0 0.0
    %746 = vmatpush.msra.mxu0 0.0
    %747 = vmatpush.msra.mxu0 0.0
    %748 = vmatpush.msra.mxu0 0.0
    %749 = vmatpush.msra.mxu0 0.0
    %750 = vmatpush.msra.mxu0 0.0
    %751 = vmatpush.msra.mxu0 0.0
    %752 = vmatpush.msra.mxu0 0.0
    %753 = vmatpush.msra.mxu0 0.0
    %754 = vmatpush.msra.mxu0 0.0
    %755 = vmatpush.msra.mxu0 0.0
    %756 = vmatpush.msra.mxu0 0.0
    %757 = vmatpush.msra.mxu0 %v678
    %758 = vmatpush.msra.mxu0 %v677
    %759 = vmatpush.msra.mxu0 %v676
    %760 = vmatpush.msra.mxu0 %v675
    %761 = vmatmul.f32.gmra.mxu0 %v181
    %v762 = vpop.f32.mrf.mxu0
    %v763 = vadd.f32 %v743, %v762
    %764 = vmatmul.f32.gmra.mxu0 %v184
    %v765 = vpop.f32.mrf.mxu0
    %v766 = vadd.f32 %v743, %v765
    %767 = vdwg.mxu0
    %v769 = vsel %vm257, %v707, 0
    %v772 = vsel %vm257, %v735, 0
    %774 = vmatpush.xpose.msra.mxu0 0.0
    %775 = vmatpush.xpose.msra.mxu0 0.0
    %776 = vmatpush.xpose.msra.mxu0 0.0
    %777 = vmatpush.xpose.msra.mxu0 0.0
    %778 = vmatpush.xpose.msra.mxu0 0.0
    %779 = vmatpush.xpose.msra.mxu0 0.0
    %780 = vmatpush.xpose.msra.mxu0 0.0
    %781 = vmatpush.xpose.msra.mxu0 0.0
    %782 = vmatpush.xpose.msra.mxu0 0.0
    %783 = vmatpush.xpose.msra.mxu0 0.0
    %784 = vmatpush.xpose.msra.mxu0 0.0
    %785 = vmatpush.xpose.msra.mxu0 0.0
    %786 = vmatpush.xpose.msra.mxu0 0.0
    %787 = vmatpush.xpose.msra.mxu0 0.0
    %788 = vmatpush.xpose.msra.mxu0 0.0
    %789 = vmatpush.xpose.msra.mxu0 %v772
    %790 = vmatmul.f32.gmra.mxu0 %v769
    %v791 = vpop.f32.mrf.mxu0
    %v792 = vadd.f32 0.0, %v791
    %793 = vdwg.mxu0
    %v795 = vsel %vm257, %v710, 0
    %v798 = vsel %vm257, %v738, 0
    %800 = vmatpush.xpose.msra.mxu0 0.0
    %801 = vmatpush.xpose.msra.mxu0 0.0
    %802 = vmatpush.xpose.msra.mxu0 0.0
    %803 = vmatpush.xpose.msra.mxu0 0.0
    %804 = vmatpush.xpose.msra.mxu0 0.0
    %805 = vmatpush.xpose.msra.mxu0 0.0
    %806 = vmatpush.xpose.msra.mxu0 0.0
    %807 = vmatpush.xpose.msra.mxu0 0.0
    %808 = vmatpush.xpose.msra.mxu0 0.0
    %809 = vmatpush.xpose.msra.mxu0 0.0
    %810 = vmatpush.xpose.msra.mxu0 0.0
    %811 = vmatpush.xpose.msra.mxu0 0.0
    %812 = vmatpush.xpose.msra.mxu0 0.0
    %813 = vmatpush.xpose.msra.mxu0 0.0
    %814 = vmatpush.xpose.msra.mxu0 0.0
    %815 = vmatpush.xpose.msra.mxu0 %v798
    %816 = vmatmul.f32.gmra.mxu0 %v795
    %v817 = vpop.f32.mrf.mxu0
    %v818 = vadd.f32 0.0, %v817
    %819 = vdwg.mxu0
    %v820 = vmul.f32 %v792, 0.35355338
    %v821 = vmul.f32 %v818, 0.35355338
    %v822 = vsel %vm257, %v820, -inf
    %823 = vmax.xlane.f32.xlu0 %v822
    %v824 = vpop.xlane.xlu0 %823
    %v825 = vsel %vm257, %v821, -inf
    %826 = vmax.xlane.f32.xlu0 %v825
    %v827 = vpop.xlane.xlu0 %826
    %v828 = vsub.f32 %v820, %v824
    %v829 = vsub.f32 %v821, %v827
    %v830 = vmul.f32 %v828, 1.442695
    %v831 = vpow.pop %v830
    %v832 = vmul.f32 %v829, 1.442695
    %v833 = vpow.pop %v832
    %v834 = vsel %vm257, %v831, 0.0
    %835 = vadd.xlane.f32.xlu0 %v834
    %v836 = vpop.xlane.xlu0 %835
    %v837 = vsel %vm257, %v833, 0.0
    %838 = vadd.xlane.f32.xlu0 %v837
    %v839 = vpop.xlane.xlu0 %838
    %v840 = vrcp.pop %v836
    %v841 = vrcp.pop %v839
    %v843 = vsel %vm257, %v831, 0
    %845 = vmatpush.msra.mxu0 0.0
    %846 = vmatpush.msra.mxu0 0.0
    %847 = vmatpush.msra.mxu0 0.0
    %848 = vmatpush.msra.mxu0 0.0
    %849 = vmatpush.msra.mxu0 0.0
    %850 = vmatpush.msra.mxu0 0.0
    %851 = vmatpush.msra.mxu0 0.0
    %852 = vmatpush.msra.mxu0 0.0
    %853 = vmatpush.msra.mxu0 0.0
    %854 = vmatpush.msra.mxu0 0.0
    %855 = vmatpush.msra.mxu0 0.0
    %856 = vmatpush.msra.mxu0 0.0
    %857 = vmatpush.msra.mxu0 0.0
    %858 = vmatpush.msra.mxu0 0.0
    %859 = vmatpush.msra.mxu0 0.0
    %860 = vmatpush.msra.mxu0 %v763
    %861 = vmatmul.f32.gmra.mxu0 %v843
    %v862 = vpop.f32.mrf.mxu0
    %v863 = vadd.f32 0.0, %v862
    %864 = vdwg.mxu0
    %v866 = vsel %vm257, %v833, 0
    %868 = vmatpush.msra.mxu0 0.0
    %869 = vmatpush.msra.mxu0 0.0
    %870 = vmatpush.msra.mxu0 0.0
    %871 = vmatpush.msra.mxu0 0.0
    %872 = vmatpush.msra.mxu0 0.0
    %873 = vmatpush.msra.mxu0 0.0
    %874 = vmatpush.msra.mxu0 0.0
    %875 = vmatpush.msra.mxu0 0.0
    %876 = vmatpush.msra.mxu0 0.0
    %877 = vmatpush.msra.mxu0 0.0
    %878 = vmatpush.msra.mxu0 0.0
    %879 = vmatpush.msra.mxu0 0.0
    %880 = vmatpush.msra.mxu0 0.0
    %881 = vmatpush.msra.mxu0 0.0
    %882 = vmatpush.msra.mxu0 0.0
    %883 = vmatpush.msra.mxu0 %v766
    %884 = vmatmul.f32.gmra.mxu0 %v866
    %v885 = vpop.f32.mrf.mxu0
    %v886 = vadd.f32 0.0, %v885
    %887 = vdwg.mxu0
    %v888 = vmul.f32 %v863, %v840
    %v889 = vmul.f32 %v886, %v841
    %v891 = vsel %vm257, %v888, 0
    %v894 = vsel %vm257, %v889, 0
    %896 = vmatpush.msra.mxu0 0.0
    %897 = vmatpush.msra.mxu0 0.0
    %898 = vmatpush.msra.mxu0 0.0
    %899 = vmatpush.msra.mxu0 0.0
    %900 = vmatpush.msra.mxu0 0.0
    %901 = vmatpush.msra.mxu0 0.0
    %902 = vmatpush.msra.mxu0 0.0
    %903 = vmatpush.msra.mxu0 0.0
    %904 = vmatpush.msra.mxu0 0.0
    %905 = vmatpush.msra.mxu0 0.0
    %906 = vmatpush.msra.mxu0 0.0
    %907 = vmatpush.msra.mxu0 0.0
    %908 = vmatpush.msra.mxu0 0.0
    %909 = vmatpush.msra.mxu0 0.0
    %910 = vmatpush.msra.mxu0 0.0
    %911 = vmatpush.msra.mxu0 %v680
    %912 = vmatmul.f32.gmra.mxu0 %v891
    %v913 = vpop.f32.mrf.mxu0
    %v914 = vadd.f32 0.0, %v913
    %915 = vmatmul.f32.gmra.mxu0 %v894
    %v916 = vpop.f32.mrf.mxu0
    %v917 = vadd.f32 0.0, %v916
    %918 = vdwg.mxu0
    %v919 = vadd.f32 %v659, %v914
    %v920 = vadd.f32 %v662, %v917
    %s921 = scalar_lea.vmem %s3, 96
    %v922 = vld [vmem:[%s921] sm:$0xff]
    %v923 = vld [vmem:[%s921 + $0x8] sm:$0xff]
    %v924 = vld [vmem:[%s921 + $0x10] sm:$0xff]
    %v925 = vld [vmem:[%s921 + $0x18] sm:$0xff]
    %s926 = scalar_lea.vmem %s3, 224
    %v927 = vld [vmem:[%s926] sm:$0xff]
    %v928 = vld [vmem:[%s926 + $0x8] sm:$0xff]
    %v929 = vld [vmem:[%s926 + $0x10] sm:$0xff]
    %v930 = vld [vmem:[%s926 + $0x18] sm:$0xff]
    %s931 = scalar_lea.vmem %s3, 352
    %v932 = vld [vmem:[%s931] sm:$0xff]
    %v933 = vld [vmem:[%s931 + $0x8] sm:$0xff]
    %v934 = vld [vmem:[%s931 + $0x10] sm:$0xff]
    %v935 = vld [vmem:[%s931 + $0x18] sm:$0xff]
    %s936 = scalar_lea.vmem %s4, 24
    %v937 = vld [vmem:[%s936] sm:$0xff]
    %v938 = vld [vmem:[%s2 + $0xb] sm:$0x1]
    %v939 = vld [vmem:[%s2 + $0xc] sm:$0x1]
    %v940 = vld [vmem:[%s2 + $0xd] sm:$0x1]
    %v941 = vperm.slane %v938, 0
    %943 = vrot.lane.b32.xlu0 %v941, 104
    %v944 = vpop.permute.xlu0 %943
    %946 = vmatpush.msra.mxu0 0.0
    %947 = vmatpush.msra.mxu0 0.0
    %948 = vmatpush.msra.mxu0 0.0
    %949 = vmatpush.msra.mxu0 0.0
    %950 = vmatpush.msra.mxu0 0.0
    %951 = vmatpush.msra.mxu0 0.0
    %952 = vmatpush.msra.mxu0 0.0
    %953 = vmatpush.msra.mxu0 0.0
    %954 = vmatpush.msra.mxu0 0.0
    %955 = vmatpush.msra.mxu0 0.0
    %956 = vmatpush.msra.mxu0 0.0
    %957 = vmatpush.msra.mxu0 0.0
    %958 = vmatpush.msra.mxu0 %v925
    %959 = vmatpush.msra.mxu0 %v924
    %960 = vmatpush.msra.mxu0 %v923
    %961 = vmatpush.msra.mxu0 %v922
    %962 = vmatmul.f32.gmra.mxu0 %v181
    %v963 = vpop.f32.mrf.mxu0
    %v964 = vadd.f32 %v944, %v963
    %965 = vmatmul.f32.gmra.mxu0 %v184
    %v966 = vpop.f32.mrf.mxu0
    %v967 = vadd.f32 %v944, %v966
    %968 = vdwg.mxu0
    %v969 = vperm.slane %v939, 0
    %971 = vrot.lane.b32.xlu0 %v969, 104
    %v972 = vpop.permute.xlu0 %971
    %974 = vmatpush.msra.mxu0 0.0
    %975 = vmatpush.msra.mxu0 0.0
    %976 = vmatpush.msra.mxu0 0.0
    %977 = vmatpush.msra.mxu0 0.0
    %978 = vmatpush.msra.mxu0 0.0
    %979 = vmatpush.msra.mxu0 0.0
    %980 = vmatpush.msra.mxu0 0.0
    %981 = vmatpush.msra.mxu0 0.0
    %982 = vmatpush.msra.mxu0 0.0
    %983 = vmatpush.msra.mxu0 0.0
    %984 = vmatpush.msra.mxu0 0.0
    %985 = vmatpush.msra.mxu0 0.0
    %986 = vmatpush.msra.mxu0 %v930
    %987 = vmatpush.msra.mxu0 %v929
    %988 = vmatpush.msra.mxu0 %v928
    %989 = vmatpush.msra.mxu0 %v927
    %990 = vmatmul.f32.gmra.mxu0 %v181
    %v991 = vpop.f32.mrf.mxu0
    %v992 = vadd.f32 %v972, %v991
    %993 = vmatmul.f32.gmra.mxu0 %v184
    %v994 = vpop.f32.mrf.mxu0
    %v995 = vadd.f32 %v972, %v994
    %996 = vdwg.mxu0
    %v997 = vperm.slane %v940, 0
    %999 = vrot.lane.b32.xlu0 %v997, 104
    %v1000 = vpop.permute.xlu0 %999
    %1002 = vmatpush.msra.mxu0 0.0
    %1003 = vmatpush.msra.mxu0 0.0
    %1004 = vmatpush.msra.mxu0 0.0
    %1005 = vmatpush.msra.mxu0 0.0
    %1006 = vmatpush.msra.mxu0 0.0
    %1007 = vmatpush.msra.mxu0 0.0
    %1008 = vmatpush.msra.mxu0 0.0
    %1009 = vmatpush.msra.mxu0 0.0
    %1010 = vmatpush.msra.mxu0 0.0
    %1011 = vmatpush.msra.mxu0 0.0
    %1012 = vmatpush.msra.mxu0 0.0
    %1013 = vmatpush.msra.mxu0 0.0
    %1014 = vmatpush.msra.mxu0 %v935
    %1015 = vmatpush.msra.mxu0 %v934
    %1016 = vmatpush.msra.mxu0 %v933
    %1017 = vmatpush.msra.mxu0 %v932
    %1018 = vmatmul.f32.gmra.mxu0 %v181
    %v1019 = vpop.f32.mrf.mxu0
    %v1020 = vadd.f32 %v1000, %v1019
    %1021 = vmatmul.f32.gmra.mxu0 %v184
    %v1022 = vpop.f32.mrf.mxu0
    %v1023 = vadd.f32 %v1000, %v1022
    %1024 = vdwg.mxu0
    %v1026 = vsel %vm257, %v964, 0
    %v1029 = vsel %vm257, %v992, 0
    %1031 = vmatpush.xpose.msra.mxu0 0.0
    %1032 = vmatpush.xpose.msra.mxu0 0.0
    %1033 = vmatpush.xpose.msra.mxu0 0.0
    %1034 = vmatpush.xpose.msra.mxu0 0.0
    %1035 = vmatpush.xpose.msra.mxu0 0.0
    %1036 = vmatpush.xpose.msra.mxu0 0.0
    %1037 = vmatpush.xpose.msra.mxu0 0.0
    %1038 = vmatpush.xpose.msra.mxu0 0.0
    %1039 = vmatpush.xpose.msra.mxu0 0.0
    %1040 = vmatpush.xpose.msra.mxu0 0.0
    %1041 = vmatpush.xpose.msra.mxu0 0.0
    %1042 = vmatpush.xpose.msra.mxu0 0.0
    %1043 = vmatpush.xpose.msra.mxu0 0.0
    %1044 = vmatpush.xpose.msra.mxu0 0.0
    %1045 = vmatpush.xpose.msra.mxu0 0.0
    %1046 = vmatpush.xpose.msra.mxu0 %v1029
    %1047 = vmatmul.f32.gmra.mxu0 %v1026
    %v1048 = vpop.f32.mrf.mxu0
    %v1049 = vadd.f32 0.0, %v1048
    %1050 = vdwg.mxu0
    %v1052 = vsel %vm257, %v967, 0
    %v1055 = vsel %vm257, %v995, 0
    %1057 = vmatpush.xpose.msra.mxu0 0.0
    %1058 = vmatpush.xpose.msra.mxu0 0.0
    %1059 = vmatpush.xpose.msra.mxu0 0.0
    %1060 = vmatpush.xpose.msra.mxu0 0.0
    %1061 = vmatpush.xpose.msra.mxu0 0.0
    %1062 = vmatpush.xpose.msra.mxu0 0.0
    %1063 = vmatpush.xpose.msra.mxu0 0.0
    %1064 = vmatpush.xpose.msra.mxu0 0.0
    %1065 = vmatpush.xpose.msra.mxu0 0.0
    %1066 = vmatpush.xpose.msra.mxu0 0.0
    %1067 = vmatpush.xpose.msra.mxu0 0.0
    %1068 = vmatpush.xpose.msra.mxu0 0.0
    %1069 = vmatpush.xpose.msra.mxu0 0.0
    %1070 = vmatpush.xpose.msra.mxu0 0.0
    %1071 = vmatpush.xpose.msra.mxu0 0.0
    %1072 = vmatpush.xpose.msra.mxu0 %v1055
    %1073 = vmatmul.f32.gmra.mxu0 %v1052
    %v1074 = vpop.f32.mrf.mxu0
    %v1075 = vadd.f32 0.0, %v1074
    %1076 = vdwg.mxu0
    %v1077 = vmul.f32 %v1049, 0.35355338
    %v1078 = vmul.f32 %v1075, 0.35355338
    %v1079 = vsel %vm257, %v1077, -inf
    %1080 = vmax.xlane.f32.xlu0 %v1079
    %v1081 = vpop.xlane.xlu0 %1080
    %v1082 = vsel %vm257, %v1078, -inf
    %1083 = vmax.xlane.f32.xlu0 %v1082
    %v1084 = vpop.xlane.xlu0 %1083
    %v1085 = vsub.f32 %v1077, %v1081
    %v1086 = vsub.f32 %v1078, %v1084
    %v1087 = vmul.f32 %v1085, 1.442695
    %v1088 = vpow.pop %v1087
    %v1089 = vmul.f32 %v1086, 1.442695
    %v1090 = vpow.pop %v1089
    %v1091 = vsel %vm257, %v1088, 0.0
    %1092 = vadd.xlane.f32.xlu0 %v1091
    %v1093 = vpop.xlane.xlu0 %1092
    %v1094 = vsel %vm257, %v1090, 0.0
    %1095 = vadd.xlane.f32.xlu0 %v1094
    %v1096 = vpop.xlane.xlu0 %1095
    %v1097 = vrcp.pop %v1093
    %v1098 = vrcp.pop %v1096
    %v1100 = vsel %vm257, %v1088, 0
    %1102 = vmatpush.msra.mxu0 0.0
    %1103 = vmatpush.msra.mxu0 0.0
    %1104 = vmatpush.msra.mxu0 0.0
    %1105 = vmatpush.msra.mxu0 0.0
    %1106 = vmatpush.msra.mxu0 0.0
    %1107 = vmatpush.msra.mxu0 0.0
    %1108 = vmatpush.msra.mxu0 0.0
    %1109 = vmatpush.msra.mxu0 0.0
    %1110 = vmatpush.msra.mxu0 0.0
    %1111 = vmatpush.msra.mxu0 0.0
    %1112 = vmatpush.msra.mxu0 0.0
    %1113 = vmatpush.msra.mxu0 0.0
    %1114 = vmatpush.msra.mxu0 0.0
    %1115 = vmatpush.msra.mxu0 0.0
    %1116 = vmatpush.msra.mxu0 0.0
    %1117 = vmatpush.msra.mxu0 %v1020
    %1118 = vmatmul.f32.gmra.mxu0 %v1100
    %v1119 = vpop.f32.mrf.mxu0
    %v1120 = vadd.f32 0.0, %v1119
    %1121 = vdwg.mxu0
    %v1123 = vsel %vm257, %v1090, 0
    %1125 = vmatpush.msra.mxu0 0.0
    %1126 = vmatpush.msra.mxu0 0.0
    %1127 = vmatpush.msra.mxu0 0.0
    %1128 = vmatpush.msra.mxu0 0.0
    %1129 = vmatpush.msra.mxu0 0.0
    %1130 = vmatpush.msra.mxu0 0.0
    %1131 = vmatpush.msra.mxu0 0.0
    %1132 = vmatpush.msra.mxu0 0.0
    %1133 = vmatpush.msra.mxu0 0.0
    %1134 = vmatpush.msra.mxu0 0.0
    %1135 = vmatpush.msra.mxu0 0.0
    %1136 = vmatpush.msra.mxu0 0.0
    %1137 = vmatpush.msra.mxu0 0.0
    %1138 = vmatpush.msra.mxu0 0.0
    %1139 = vmatpush.msra.mxu0 0.0
    %1140 = vmatpush.msra.mxu0 %v1023
    %1141 = vmatmul.f32.gmra.mxu0 %v1123
    %v1142 = vpop.f32.mrf.mxu0
    %v1143 = vadd.f32 0.0, %v1142
    %1144 = vdwg.mxu0
    %v1145 = vmul.f32 %v1120, %v1097
    %v1146 = vmul.f32 %v1143, %v1098
    %v1148 = vsel %vm257, %v1145, 0
    %v1151 = vsel %vm257, %v1146, 0
    %1153 = vmatpush.msra.mxu0 0.0
    %1154 = vmatpush.msra.mxu0 0.0
    %1155 = vmatpush.msra.mxu0 0.0
    %1156 = vmatpush.msra.mxu0 0.0
    %1157 = vmatpush.msra.mxu0 0.0
    %1158 = vmatpush.msra.mxu0 0.0
    %1159 = vmatpush.msra.mxu0 0.0
    %1160 = vmatpush.msra.mxu0 0.0
    %1161 = vmatpush.msra.mxu0 0.0
    %1162 = vmatpush.msra.mxu0 0.0
    %1163 = vmatpush.msra.mxu0 0.0
    %1164 = vmatpush.msra.mxu0 0.0
    %1165 = vmatpush.msra.mxu0 0.0
    %1166 = vmatpush.msra.mxu0 0.0
    %1167 = vmatpush.msra.mxu0 0.0
    %1168 = vmatpush.msra.mxu0 %v937
    %1169 = vmatmul.f32.gmra.mxu0 %v1148
    %v1170 = vpop.f32.mrf.mxu0
    %v1171 = vadd.f32 0.0, %v1170
    %1172 = vmatmul.f32.gmra.mxu0 %v1151
    %v1173 = vpop.f32.mrf.mxu0
    %v1174 = vadd.f32 0.0, %v1173
    %1175 = vdwg.mxu0
    %v1176 = vadd.f32 %v919, %v1171
    %v1177 = vadd.f32 %v920, %v1174
    %v1178 = vperm.slane %v154, 0
    %v1179 = vadd.f32 %v1176, %v1178
    %v1180 = vadd.f32 %v1177, %v1178
    %v1181 = vadd.f32 %v152, %v1179
    %v1182 = vadd.f32 %v153, %v1180
    %v1183 = vsel %vm96, %v1181, 0.0
    %1184 = vadd.xlane.f32.xlu0 %v1183
    %v1185 = vpop.xlane.xlu0 %1184
    %v1186 = vsel %vm96, %v1182, 0.0
    %1187 = vadd.xlane.f32.xlu0 %v1186
    %v1188 = vpop.xlane.xlu0 %1187
    %v1189 = vmul.f32 %v1185, %v109
    %v1190 = vmul.f32 %v1188, %v109
    %v1191 = vsub.f32 %v1181, %v1189
    %v1192 = vsub.f32 %v1182, %v1190
    %v1193 = vmul.f32 %v1191, %v1191
    %v1194 = vmul.f32 %v1192, %v1192
    %v1195 = vsel %vm96, %v1193, 0.0
    %1196 = vadd.xlane.f32.xlu0 %v1195
    %v1197 = vpop.xlane.xlu0 %1196
    %v1198 = vsel %vm96, %v1194, 0.0
    %1199 = vadd.xlane.f32.xlu0 %v1198
    %v1200 = vpop.xlane.xlu0 %1199
    %v1201 = vmul.f32 %v1197, %v109
    %v1202 = vmul.f32 %v1200, %v109
    %v1203 = vadd.f32 %v1201, 1e-12
    %v1204 = vadd.f32 %v1202, 1e-12
    %v1205 = vrsqrt.pop %v1203
    %v1206 = vmul.f32 %v1205, %v1203
    %v1207 = vmul.f32 %v1206, %v1205
    %v1208 = vmul.f32 0.5, %v1207
    %v1209 = vsub.f32 1.5, %v1208
    %v1210 = vmul.f32 %v1205, %v1209
    %vm1211 = vweird.f32 %v1203
    %vm1212 = vweird.f32 %v1205
    %vm1213 = vmor %vm1211, %vm1212
    %v1214 = vsel %vm1213, %v1205, %v1210
    %v1215 = vrsqrt.pop %v1204
    %v1216 = vmul.f32 %v1215, %v1204
    %v1217 = vmul.f32 %v1216, %v1215
    %v1218 = vmul.f32 0.5, %v1217
    %v1219 = vsub.f32 1.5, %v1218
    %v1220 = vmul.f32 %v1215, %v1219
    %vm1221 = vweird.f32 %v1204
    %vm1222 = vweird.f32 %v1215
    %vm1223 = vmor %vm1221, %vm1222
    %v1224 = vsel %vm1223, %v1215, %v1220
    %v1225 = vmul.f32 %v1191, %v1214
    %v1226 = vmul.f32 %v1192, %v1224
    %v1227 = vperm.slane %v155, 0
    %v1228 = vmul.f32 %v1225, %v1227
    %v1229 = vmul.f32 %v1226, %v1227
    %v1230 = vperm.slane %v156, 0
    %v1231 = vadd.f32 %v1228, %v1230
    %v1232 = vadd.f32 %v1229, %v1230
    %v1233 = vld [vmem:[%s5] sm:$0xff]
    %v1234 = vld [vmem:[%s5 + $0x8] sm:$0xff]
    %v1235 = vld [vmem:[%s5 + $0x10] sm:$0xff]
    %v1236 = vld [vmem:[%s5 + $0x18] sm:$0xff]
    %v1237 = vperm.slane %v160, 0
    %v1239 = vsel %vm96, %v1231, 0
    %v1242 = vsel %vm96, %v1232, 0
    %1244 = vmatpush.msra.mxu0 0.0
    %1245 = vmatpush.msra.mxu0 0.0
    %1246 = vmatpush.msra.mxu0 0.0
    %1247 = vmatpush.msra.mxu0 0.0
    %1248 = vmatpush.msra.mxu0 0.0
    %1249 = vmatpush.msra.mxu0 0.0
    %1250 = vmatpush.msra.mxu0 0.0
    %1251 = vmatpush.msra.mxu0 0.0
    %1252 = vmatpush.msra.mxu0 0.0
    %1253 = vmatpush.msra.mxu0 0.0
    %1254 = vmatpush.msra.mxu0 0.0
    %1255 = vmatpush.msra.mxu0 0.0
    %1256 = vmatpush.msra.mxu0 %v1236
    %1257 = vmatpush.msra.mxu0 %v1235
    %1258 = vmatpush.msra.mxu0 %v1234
    %1259 = vmatpush.msra.mxu0 %v1233
    %1260 = vmatmul.f32.gmra.mxu0 %v1239
    %v1261 = vpop.f32.mrf.mxu0
    %v1262 = vadd.f32 %v1237, %v1261
    %1263 = vmatmul.f32.gmra.mxu0 %v1242
    %v1264 = vpop.f32.mrf.mxu0
    %v1265 = vadd.f32 %v1237, %v1264
    %1266 = vdwg.mxu0
    %v1267 = vmul.f32 %v1262, 0.5
    %v1268 = vmul.f32 %v1265, 0.5
    %v1269 = vmul.f32 %v1262, 0.70710677
    %v1270 = vmul.f32 %v1265, 0.70710677
    %v1271 = vmul.f32 %v1269, %v1269
    %v1272 = vmin.f32 16.0, %v1271
    %v1273 = vmul.f32 %v1272, 2.1237322e-06
    %v1274 = vadd.f32 %v1273, 0.00028619796
    %v1275 = vmul.f32 %v1272, %v1274
    %v1276 = vadd.f32 %v1275, 0.0036580483
    %v1277 = vmul.f32 %v1272, %v1276
    %v1278 = vadd.f32 %v1277, 0.05243302
    %v1279 = vmul.f32 %v1272, %v1278
    %v1280 = vadd.f32 %v1279, 0.18741608
    %v1281 = vmul.f32 %v1272, %v1280
    %v1282 = vadd.f32 %v1281, 1.1283791
    %v1283 = vmul.f32 %v1269, %v1282
    %v1284 = vmul.f32 %v1272, 3.8918573e-05
    %v1285 = vadd.f32 %v1284, 0.001143296
    %v1286 = vmul.f32 %v1272, %v1285
    %v1287 = vadd.f32 %v1286, 0.014752088
    %v1288 = vmul.f32 %v1272, %v1287
    %v1289 = vadd.f32 %v1288, 0.112945676
    %v1290 = vmul.f32 %v1272, %v1289
    %v1291 = vadd.f32 %v1290, 0.4994258
    %v1292 = vmul.f32 %v1272, %v1291
    %v1293 = vadd.f32 %v1292, 1.0
    %v1294 = vrcp.pop %v1293
    %v1295 = vmul.f32 %v1293, %v1294
    %v1296 = vsub.f32 1.0, %v1295
    %v1297 = vmul.f32 %v1294, %v1296
    %v1298 = vadd.f32 %v1294, %v1297
    %vm1299 = vweird.f32 %v1293
    %vm1300 = vweird.f32 %v1294
    %vm1301 = vmor %vm1299, %vm1300
    %v1302 = vsel %vm1301, %v1294, %v1298
    %v1303 = vand.u32 2147483647, %v1293
    %vm1304 = vcmp.eq.f32.partialorder %v1303, 8.507059e+37
    %v1305 = vand.u32 %v1293, 2147483648
    %v1306 = vor.u32 1.1754944e-38, %v1305
    %v1307 = vsel %vm1304, %v1306, %v1302
    %v1308 = vmul.f32 %v1283, %v1307
    %v1309 = vmin.f32 %v1308, 1.0
    %v1310 = vmax.f32 %v1309, -1.0
    %v1311 = vmul.f32 %v1270, %v1270
    %v1312 = vmin.f32 16.0, %v1311
    %v1313 = vmul.f32 %v1312, 2.1237322e-06
    %v1314 = vadd.f32 %v1313, 0.00028619796
    %v1315 = vmul.f32 %v1312, %v1314
    %v1316 = vadd.f32 %v1315, 0.0036580483
    %v1317 = vmul.f32 %v1312, %v1316
    %v1318 = vadd.f32 %v1317, 0.05243302
    %v1319 = vmul.f32 %v1312, %v1318
    %v1320 = vadd.f32 %v1319, 0.18741608
    %v1321 = vmul.f32 %v1312, %v1320
    %v1322 = vadd.f32 %v1321, 1.1283791
    %v1323 = vmul.f32 %v1270, %v1322
    %v1324 = vmul.f32 %v1312, 3.8918573e-05
    %v1325 = vadd.f32 %v1324, 0.001143296
    %v1326 = vmul.f32 %v1312, %v1325
    %v1327 = vadd.f32 %v1326, 0.014752088
    %v1328 = vmul.f32 %v1312, %v1327
    %v1329 = vadd.f32 %v1328, 0.112945676
    %v1330 = vmul.f32 %v1312, %v1329
    %v1331 = vadd.f32 %v1330, 0.4994258
    %v1332 = vmul.f32 %v1312, %v1331
    %v1333 = vadd.f32 %v1332, 1.0
    %v1334 = vrcp.pop %v1333
    %v1335 = vmul.f32 %v1333, %v1334
    %v1336 = vsub.f32 1.0, %v1335
    %v1337 = vmul.f32 %v1334, %v1336
    %v1338 = vadd.f32 %v1334, %v1337
    %vm1339 = vweird.f32 %v1333
    %vm1340 = vweird.f32 %v1334
    %vm1341 = vmor %vm1339, %vm1340
    %v1342 = vsel %vm1341, %v1334, %v1338
    %v1343 = vand.u32 2147483647, %v1333
    %vm1344 = vcmp.eq.f32.partialorder %v1343, 8.507059e+37
    %v1345 = vand.u32 %v1333, 2147483648
    %v1346 = vor.u32 1.1754944e-38, %v1345
    %v1347 = vsel %vm1344, %v1346, %v1342
    %v1348 = vmul.f32 %v1323, %v1347
    %v1349 = vmin.f32 %v1348, 1.0
    %v1350 = vmax.f32 %v1349, -1.0
    %v1351 = vadd.f32 %v1310, 1.0
    %v1352 = vadd.f32 %v1350, 1.0
    %v1353 = vmul.f32 %v1267, %v1351
    %v1354 = vmul.f32 %v1268, %v1352
    %v1355 = vld [vmem:[%s6] sm:$0xff]
    %v1356 = vld [vmem:[%s6 + $0x8] sm:$0xff]
    %v1357 = vld [vmem:[%s6 + $0x10] sm:$0xff]
    %v1358 = vld [vmem:[%s6 + $0x18] sm:$0xff]
    %v1359 = vld [vmem:[%s6 + $0x20] sm:$0xff]
    %v1360 = vld [vmem:[%s6 + $0x28] sm:$0xff]
    %v1361 = vld [vmem:[%s6 + $0x30] sm:$0xff]
    %v1362 = vld [vmem:[%s6 + $0x38] sm:$0xff]
    %v1363 = vld [vmem:[%s6 + $0x40] sm:$0xff]
    %v1364 = vld [vmem:[%s6 + $0x48] sm:$0xff]
    %v1365 = vld [vmem:[%s6 + $0x50] sm:$0xff]
    %v1366 = vld [vmem:[%s6 + $0x58] sm:$0xff]
    %v1367 = vld [vmem:[%s6 + $0x60] sm:$0xff]
    %v1368 = vld [vmem:[%s6 + $0x68] sm:$0xff]
    %v1369 = vld [vmem:[%s6 + $0x70] sm:$0xff]
    %v1370 = vld [vmem:[%s6 + $0x78] sm:$0xff]
    %v1371 = vperm.slane %v157, 0
    %1372 = vmatpush.msra.mxu0 %v1370
    %1373 = vmatpush.msra.mxu0 %v1369
    %1374 = vmatpush.msra.mxu0 %v1368
    %1375 = vmatpush.msra.mxu0 %v1367
    %1376 = vmatpush.msra.mxu0 %v1366
    %1377 = vmatpush.msra.mxu0 %v1365
    %1378 = vmatpush.msra.mxu0 %v1364
    %1379 = vmatpush.msra.mxu0 %v1363
    %1380 = vmatpush.msra.mxu0 %v1362
    %1381 = vmatpush.msra.mxu0 %v1361
    %1382 = vmatpush.msra.mxu0 %v1360
    %1383 = vmatpush.msra.mxu0 %v1359
    %1384 = vmatpush.msra.mxu0 %v1358
    %1385 = vmatpush.msra.mxu0 %v1357
    %1386 = vmatpush.msra.mxu0 %v1356
    %1387 = vmatpush.msra.mxu0 %v1355
    %1388 = vmatmul.f32.gmra.mxu0 %v1353
    %v1389 = vpop.f32.mrf.mxu0
    %v1390 = vadd.f32 %v1371, %v1389
    %1391 = vmatmul.f32.gmra.mxu0 %v1354
    %v1392 = vpop.f32.mrf.mxu0
    %v1393 = vadd.f32 %v1371, %v1392
    %1394 = vdwg.mxu0
    %v1395 = vadd.f32 %v1231, %v1390
    %v1396 = vadd.f32 %v1232, %v1393
    %v1397 = vsel %vm96, %v1395, 0.0
    %1398 = vadd.xlane.f32.xlu0 %v1397
    %v1399 = vpop.xlane.xlu0 %1398
    %v1400 = vsel %vm96, %v1396, 0.0
    %1401 = vadd.xlane.f32.xlu0 %v1400
    %v1402 = vpop.xlane.xlu0 %1401
    %v1403 = vmul.f32 %v1399, %v109
    %v1404 = vmul.f32 %v1402, %v109
    %v1405 = vsub.f32 %v1395, %v1403
    %v1406 = vsub.f32 %v1396, %v1404
    %v1407 = vmul.f32 %v1405, %v1405
    %v1408 = vmul.f32 %v1406, %v1406
    %v1409 = vsel %vm96, %v1407, 0.0
    %1410 = vadd.xlane.f32.xlu0 %v1409
    %v1411 = vpop.xlane.xlu0 %1410
    %v1412 = vsel %vm96, %v1408, 0.0
    %1413 = vadd.xlane.f32.xlu0 %v1412
    %v1414 = vpop.xlane.xlu0 %1413
    %v1415 = vmul.f32 %v1411, %v109
    %v1416 = vmul.f32 %v1414, %v109
    %v1417 = vadd.f32 %v1415, 1e-12
    %v1418 = vadd.f32 %v1416, 1e-12
    %v1419 = vrsqrt.pop %v1417
    %v1420 = vmul.f32 %v1419, %v1417
    %v1421 = vmul.f32 %v1420, %v1419
    %v1422 = vmul.f32 0.5, %v1421
    %v1423 = vsub.f32 1.5, %v1422
    %v1424 = vmul.f32 %v1419, %v1423
    %vm1425 = vweird.f32 %v1417
    %vm1426 = vweird.f32 %v1419
    %vm1427 = vmor %vm1425, %vm1426
    %v1428 = vsel %vm1427, %v1419, %v1424
    %v1429 = vrsqrt.pop %v1418
    %v1430 = vmul.f32 %v1429, %v1418
    %v1431 = vmul.f32 %v1430, %v1429
    %v1432 = vmul.f32 0.5, %v1431
    %v1433 = vsub.f32 1.5, %v1432
    %v1434 = vmul.f32 %v1429, %v1433
    %vm1435 = vweird.f32 %v1418
    %vm1436 = vweird.f32 %v1429
    %vm1437 = vmor %vm1435, %vm1436
    %v1438 = vsel %vm1437, %v1429, %v1434
    %v1439 = vmul.f32 %v1405, %v1428
    %v1440 = vmul.f32 %v1406, %v1438
    %v1441 = vperm.slane %v158, 0
    %v1442 = vmul.f32 %v1439, %v1441
    %v1443 = vmul.f32 %v1440, %v1441
    %v1444 = vperm.slane %v159, 0
    %v1445 = vadd.f32 %v1442, %v1444
    %v1446 = vadd.f32 %v1443, %v1444
    %v1447 = vadd.f32 %v152, %v1445
    %v1448 = vadd.f32 %v153, %v1446
    %v1449 = vld [vmem:[%s2 + $0x17] sm:$0x1]
    %v1450 = vld [vmem:[%s2 + $0x18] sm:$0x1]
    %v1451 = vld [vmem:[%s2 + $0x19] sm:$0x1]
    %v1452 = vld [vmem:[%s2 + $0x1a] sm:$0x1]
    %v1453 = vld [vmem:[%s2 + $0x1b] sm:$0x1]
    %v1454 = vld [vmem:[%s2 + $0x1c] sm:$0x1]
    %v1455 = vld [vmem:[%s7 + $0x1] sm:$0x1]
    %s1456 = scalar_lea.vmem %s3, 384
    %v1457 = vld [vmem:[%s1456] sm:$0xff]
    %v1458 = vld [vmem:[%s1456 + $0x8] sm:$0xff]
    %v1459 = vld [vmem:[%s1456 + $0x10] sm:$0xff]
    %v1460 = vld [vmem:[%s1456 + $0x18] sm:$0xff]
    %s1461 = scalar_lea.vmem %s3, 512
    %v1462 = vld [vmem:[%s1461] sm:$0xff]
    %v1463 = vld [vmem:[%s1461 + $0x8] sm:$0xff]
    %v1464 = vld [vmem:[%s1461 + $0x10] sm:$0xff]
    %v1465 = vld [vmem:[%s1461 + $0x18] sm:$0xff]
    %s1466 = scalar_lea.vmem %s3, 640
    %v1467 = vld [vmem:[%s1466] sm:$0xff]
    %v1468 = vld [vmem:[%s1466 + $0x8] sm:$0xff]
    %v1469 = vld [vmem:[%s1466 + $0x10] sm:$0xff]
    %v1470 = vld [vmem:[%s1466 + $0x18] sm:$0xff]
    %s1471 = scalar_lea.vmem %s4, 32
    %v1472 = vld [vmem:[%s1471] sm:$0xff]
    %v1473 = vld [vmem:[%s2 + $0x14] sm:$0x1]
    %v1474 = vld [vmem:[%s2 + $0x15] sm:$0x1]
    %v1475 = vld [vmem:[%s2 + $0x16] sm:$0x1]
    %v1476 = vperm.slane %v1473, 0
    %v1478 = vsel %vm96, %v1445, 0
    %v1481 = vsel %vm96, %v1446, 0
    %1483 = vmatpush.msra.mxu0 0.0
    %1484 = vmatpush.msra.mxu0 0.0
    %1485 = vmatpush.msra.mxu0 0.0
    %1486 = vmatpush.msra.mxu0 0.0
    %1487 = vmatpush.msra.mxu0 0.0
    %1488 = vmatpush.msra.mxu0 0.0
    %1489 = vmatpush.msra.mxu0 0.0
    %1490 = vmatpush.msra.mxu0 0.0
    %1491 = vmatpush.msra.mxu0 0.0
    %1492 = vmatpush.msra.mxu0 0.0
    %1493 = vmatpush.msra.mxu0 0.0
    %1494 = vmatpush.msra.mxu0 0.0
    %1495 = vmatpush.msra.mxu0 %v1460
    %1496 = vmatpush.msra.mxu0 %v1459
    %1497 = vmatpush.msra.mxu0 %v1458
    %1498 = vmatpush.msra.mxu0 %v1457
    %1499 = vmatmul.f32.gmra.mxu0 %v1478
    %v1500 = vpop.f32.mrf.mxu0
    %v1501 = vadd.f32 %v1476, %v1500
    %1502 = vmatmul.f32.gmra.mxu0 %v1481
    %v1503 = vpop.f32.mrf.mxu0
    %v1504 = vadd.f32 %v1476, %v1503
    %1505 = vdwg.mxu0
    %v1506 = vperm.slane %v1474, 0
    %1507 = vmatpush.msra.mxu0 0.0
    %1508 = vmatpush.msra.mxu0 0.0
    %1509 = vmatpush.msra.mxu0 0.0
    %1510 = vmatpush.msra.mxu0 0.0
    %1511 = vmatpush.msra.mxu0 0.0
    %1512 = vmatpush.msra.mxu0 0.0
    %1513 = vmatpush.msra.mxu0 0.0
    %1514 = vmatpush.msra.mxu0 0.0
    %1515 = vmatpush.msra.mxu0 0.0
    %1516 = vmatpush.msra.mxu0 0.0
    %1517 = vmatpush.msra.mxu0 0.0
    %1518 = vmatpush.msra.mxu0 0.0
    %1519 = vmatpush.msra.mxu0 %v1465
    %1520 = vmatpush.msra.mxu0 %v1464
    %1521 = vmatpush.msra.mxu0 %v1463
    %1522 = vmatpush.msra.mxu0 %v1462
    %1523 = vmatmul.f32.gmra.mxu0 %v1478
    %v1524 = vpop.f32.mrf.mxu0
    %v1525 = vadd.f32 %v1506, %v1524
    %1526 = vmatmul.f32.gmra.mxu0 %v1481
    %v1527 = vpop.f32.mrf.mxu0
    %v1528 = vadd.f32 %v1506, %v1527
    %1529 = vdwg.mxu0
    %v1530 = vperm.slane %v1475, 0
    %1531 = vmatpush.msra.mxu0 0.0
    %1532 = vmatpush.msra.mxu0 0.0
    %1533 = vmatpush.msra.mxu0 0.0
    %1534 = vmatpush.msra.mxu0 0.0
    %1535 = vmatpush.msra.mxu0 0.0
    %1536 = vmatpush.msra.mxu0 0.0
    %1537 = vmatpush.msra.mxu0 0.0
    %1538 = vmatpush.msra.mxu0 0.0
    %1539 = vmatpush.msra.mxu0 0.0
    %1540 = vmatpush.msra.mxu0 0.0
    %1541 = vmatpush.msra.mxu0 0.0
    %1542 = vmatpush.msra.mxu0 0.0
    %1543 = vmatpush.msra.mxu0 %v1470
    %1544 = vmatpush.msra.mxu0 %v1469
    %1545 = vmatpush.msra.mxu0 %v1468
    %1546 = vmatpush.msra.mxu0 %v1467
    %1547 = vmatmul.f32.gmra.mxu0 %v1478
    %v1548 = vpop.f32.mrf.mxu0
    %v1549 = vadd.f32 %v1530, %v1548
    %1550 = vmatmul.f32.gmra.mxu0 %v1481
    %v1551 = vpop.f32.mrf.mxu0
    %v1552 = vadd.f32 %v1530, %v1551
    %1553 = vdwg.mxu0
    %v1555 = vsel %vm257, %v1501, 0
    %v1558 = vsel %vm257, %v1525, 0
    %1560 = vmatpush.xpose.msra.mxu0 0.0
    %1561 = vmatpush.xpose.msra.mxu0 0.0
    %1562 = vmatpush.xpose.msra.mxu0 0.0
    %1563 = vmatpush.xpose.msra.mxu0 0.0
    %1564 = vmatpush.xpose.msra.mxu0 0.0
    %1565 = vmatpush.xpose.msra.mxu0 0.0
    %1566 = vmatpush.xpose.msra.mxu0 0.0
    %1567 = vmatpush.xpose.msra.mxu0 0.0
    %1568 = vmatpush.xpose.msra.mxu0 0.0
    %1569 = vmatpush.xpose.msra.mxu0 0.0
    %1570 = vmatpush.xpose.msra.mxu0 0.0
    %1571 = vmatpush.xpose.msra.mxu0 0.0
    %1572 = vmatpush.xpose.msra.mxu0 0.0
    %1573 = vmatpush.xpose.msra.mxu0 0.0
    %1574 = vmatpush.xpose.msra.mxu0 0.0
    %1575 = vmatpush.xpose.msra.mxu0 %v1558
    %1576 = vmatmul.f32.gmra.mxu0 %v1555
    %v1577 = vpop.f32.mrf.mxu0
    %v1578 = vadd.f32 0.0, %v1577
    %1579 = vdwg.mxu0
    %v1581 = vsel %vm257, %v1504, 0
    %v1584 = vsel %vm257, %v1528, 0
    %1586 = vmatpush.xpose.msra.mxu0 0.0
    %1587 = vmatpush.xpose.msra.mxu0 0.0
    %1588 = vmatpush.xpose.msra.mxu0 0.0
    %1589 = vmatpush.xpose.msra.mxu0 0.0
    %1590 = vmatpush.xpose.msra.mxu0 0.0
    %1591 = vmatpush.xpose.msra.mxu0 0.0
    %1592 = vmatpush.xpose.msra.mxu0 0.0
    %1593 = vmatpush.xpose.msra.mxu0 0.0
    %1594 = vmatpush.xpose.msra.mxu0 0.0
    %1595 = vmatpush.xpose.msra.mxu0 0.0
    %1596 = vmatpush.xpose.msra.mxu0 0.0
    %1597 = vmatpush.xpose.msra.mxu0 0.0
    %1598 = vmatpush.xpose.msra.mxu0 0.0
    %1599 = vmatpush.xpose.msra.mxu0 0.0
    %1600 = vmatpush.xpose.msra.mxu0 0.0
    %1601 = vmatpush.xpose.msra.mxu0 %v1584
    %1602 = vmatmul.f32.gmra.mxu0 %v1581
    %v1603 = vpop.f32.mrf.mxu0
    %v1604 = vadd.f32 0.0, %v1603
    %1605 = vdwg.mxu0
    %v1606 = vmul.f32 %v1578, 0.35355338
    %v1607 = vmul.f32 %v1604, 0.35355338
    %v1608 = vsel %vm257, %v1606, -inf
    %1609 = vmax.xlane.f32.xlu0 %v1608
    %v1610 = vpop.xlane.xlu0 %1609
    %v1611 = vsel %vm257, %v1607, -inf
    %1612 = vmax.xlane.f32.xlu0 %v1611
    %v1613 = vpop.xlane.xlu0 %1612
    %v1614 = vsub.f32 %v1606, %v1610
    %v1615 = vsub.f32 %v1607, %v1613
    %v1616 = vmul.f32 %v1614, 1.442695
    %v1617 = vpow.pop %v1616
    %v1618 = vmul.f32 %v1615, 1.442695
    %v1619 = vpow.pop %v1618
    %v1620 = vsel %vm257, %v1617, 0.0
    %1621 = vadd.xlane.f32.xlu0 %v1620
    %v1622 = vpop.xlane.xlu0 %1621
    %v1623 = vsel %vm257, %v1619, 0.0
    %1624 = vadd.xlane.f32.xlu0 %v1623
    %v1625 = vpop.xlane.xlu0 %1624
    %v1626 = vrcp.pop %v1622
    %v1627 = vrcp.pop %v1625
    %v1629 = vsel %vm257, %v1617, 0
    %1631 = vmatpush.msra.mxu0 0.0
    %1632 = vmatpush.msra.mxu0 0.0
    %1633 = vmatpush.msra.mxu0 0.0
    %1634 = vmatpush.msra.mxu0 0.0
    %1635 = vmatpush.msra.mxu0 0.0
    %1636 = vmatpush.msra.mxu0 0.0
    %1637 = vmatpush.msra.mxu0 0.0
    %1638 = vmatpush.msra.mxu0 0.0
    %1639 = vmatpush.msra.mxu0 0.0
    %1640 = vmatpush.msra.mxu0 0.0
    %1641 = vmatpush.msra.mxu0 0.0
    %1642 = vmatpush.msra.mxu0 0.0
    %1643 = vmatpush.msra.mxu0 0.0
    %1644 = vmatpush.msra.mxu0 0.0
    %1645 = vmatpush.msra.mxu0 0.0
    %1646 = vmatpush.msra.mxu0 %v1549
    %1647 = vmatmul.f32.gmra.mxu0 %v1629
    %v1648 = vpop.f32.mrf.mxu0
    %v1649 = vadd.f32 0.0, %v1648
    %1650 = vdwg.mxu0
    %v1652 = vsel %vm257, %v1619, 0
    %1654 = vmatpush.msra.mxu0 0.0
    %1655 = vmatpush.msra.mxu0 0.0
    %1656 = vmatpush.msra.mxu0 0.0
    %1657 = vmatpush.msra.mxu0 0.0
    %1658 = vmatpush.msra.mxu0 0.0
    %1659 = vmatpush.msra.mxu0 0.0
    %1660 = vmatpush.msra.mxu0 0.0
    %1661 = vmatpush.msra.mxu0 0.0
    %1662 = vmatpush.msra.mxu0 0.0
    %1663 = vmatpush.msra.mxu0 0.0
    %1664 = vmatpush.msra.mxu0 0.0
    %1665 = vmatpush.msra.mxu0 0.0
    %1666 = vmatpush.msra.mxu0 0.0
    %1667 = vmatpush.msra.mxu0 0.0
    %1668 = vmatpush.msra.mxu0 0.0
    %1669 = vmatpush.msra.mxu0 %v1552
    %1670 = vmatmul.f32.gmra.mxu0 %v1652
    %v1671 = vpop.f32.mrf.mxu0
    %v1672 = vadd.f32 0.0, %v1671
    %1673 = vdwg.mxu0
    %v1674 = vmul.f32 %v1649, %v1626
    %v1675 = vmul.f32 %v1672, %v1627
    %s1676 = scalar_lea.vmem %s3, 416
    %v1677 = vld [vmem:[%s1676] sm:$0xff]
    %v1678 = vld [vmem:[%s1676 + $0x8] sm:$0xff]
    %v1679 = vld [vmem:[%s1676 + $0x10] sm:$0xff]
    %v1680 = vld [vmem:[%s1676 + $0x18] sm:$0xff]
    %s1681 = scalar_lea.vmem %s3, 544
    %v1682 = vld [vmem:[%s1681] sm:$0xff]
    %v1683 = vld [vmem:[%s1681 + $0x8] sm:$0xff]
    %v1684 = vld [vmem:[%s1681 + $0x10] sm:$0xff]
    %v1685 = vld [vmem:[%s1681 + $0x18] sm:$0xff]
    %s1686 = scalar_lea.vmem %s3, 672
    %v1687 = vld [vmem:[%s1686] sm:$0xff]
    %v1688 = vld [vmem:[%s1686 + $0x8] sm:$0xff]
    %v1689 = vld [vmem:[%s1686 + $0x10] sm:$0xff]
    %v1690 = vld [vmem:[%s1686 + $0x18] sm:$0xff]
    %s1691 = scalar_lea.vmem %s4, 40
    %v1692 = vld [vmem:[%s1691] sm:$0xff]
    %v1693 = vld [vmem:[%s2 + $0x14] sm:$0x1]
    %v1694 = vld [vmem:[%s2 + $0x15] sm:$0x1]
    %v1695 = vld [vmem:[%s2 + $0x16] sm:$0x1]
    %v1696 = vperm.slane %v1693, 0
    %1698 = vrot.lane.b32.xlu0 %v1696, 120
    %v1699 = vpop.permute.xlu0 %1698
    %1701 = vmatpush.msra.mxu0 0.0
    %1702 = vmatpush.msra.mxu0 0.0
    %1703 = vmatpush.msra.mxu0 0.0
    %1704 = vmatpush.msra.mxu0 0.0
    %1705 = vmatpush.msra.mxu0 0.0
    %1706 = vmatpush.msra.mxu0 0.0
    %1707 = vmatpush.msra.mxu0 0.0
    %1708 = vmatpush.msra.mxu0 0.0
    %1709 = vmatpush.msra.mxu0 0.0
    %1710 = vmatpush.msra.mxu0 0.0
    %1711 = vmatpush.msra.mxu0 0.0
    %1712 = vmatpush.msra.mxu0 0.0
    %1713 = vmatpush.msra.mxu0 %v1680
    %1714 = vmatpush.msra.mxu0 %v1679
    %1715 = vmatpush.msra.mxu0 %v1678
    %1716 = vmatpush.msra.mxu0 %v1677
    %1717 = vmatmul.f32.gmra.mxu0 %v1478
    %v1718 = vpop.f32.mrf.mxu0
    %v1719 = vadd.f32 %v1699, %v1718
    %1720 = vmatmul.f32.gmra.mxu0 %v1481
    %v1721 = vpop.f32.mrf.mxu0
    %v1722 = vadd.f32 %v1699, %v1721
    %1723 = vdwg.mxu0
    %v1724 = vperm.slane %v1694, 0
    %1726 = vrot.lane.b32.xlu0 %v1724, 120
    %v1727 = vpop.permute.xlu0 %1726
    %1729 = vmatpush.msra.mxu0 0.0
    %1730 = vmatpush.msra.mxu0 0.0
    %1731 = vmatpush.msra.mxu0 0.0
    %1732 = vmatpush.msra.mxu0 0.0
    %1733 = vmatpush.msra.mxu0 0.0
    %1734 = vmatpush.msra.mxu0 0.0
    %1735 = vmatpush.msra.mxu0 0.0
    %1736 = vmatpush.msra.mxu0 0.0
    %1737 = vmatpush.msra.mxu0 0.0
    %1738 = vmatpush.msra.mxu0 0.0
    %1739 = vmatpush.msra.mxu0 0.0
    %1740 = vmatpush.msra.mxu0 0.0
    %1741 = vmatpush.msra.mxu0 %v1685
    %1742 = vmatpush.msra.mxu0 %v1684
    %1743 = vmatpush.msra.mxu0 %v1683
    %1744 = vmatpush.msra.mxu0 %v1682
    %1745 = vmatmul.f32.gmra.mxu0 %v1478
    %v1746 = vpop.f32.mrf.mxu0
    %v1747 = vadd.f32 %v1727, %v1746
    %1748 = vmatmul.f32.gmra.mxu0 %v1481
    %v1749 = vpop.f32.mrf.mxu0
    %v1750 = vadd.f32 %v1727, %v1749
    %1751 = vdwg.mxu0
    %v1752 = vperm.slane %v1695, 0
    %1754 = vrot.lane.b32.xlu0 %v1752, 120
    %v1755 = vpop.permute.xlu0 %1754
    %1757 = vmatpush.msra.mxu0 0.0
    %1758 = vmatpush.msra.mxu0 0.0
    %1759 = vmatpush.msra.mxu0 0.0
    %1760 = vmatpush.msra.mxu0 0.0
    %1761 = vmatpush.msra.mxu0 0.0
    %1762 = vmatpush.msra.mxu0 0.0
    %1763 = vmatpush.msra.mxu0 0.0
    %1764 = vmatpush.msra.mxu0 0.0
    %1765 = vmatpush.msra.mxu0 0.0
    %1766 = vmatpush.msra.mxu0 0.0
    %1767 = vmatpush.msra.mxu0 0.0
    %1768 = vmatpush.msra.mxu0 0.0
    %1769 = vmatpush.msra.mxu0 %v1690
    %1770 = vmatpush.msra.mxu0 %v1689
    %1771 = vmatpush.msra.mxu0 %v1688
    %1772 = vmatpush.msra.mxu0 %v1687
    %1773 = vmatmul.f32.gmra.mxu0 %v1478
    %v1774 = vpop.f32.mrf.mxu0
    %v1775 = vadd.f32 %v1755, %v1774
    %1776 = vmatmul.f32.gmra.mxu0 %v1481
    %v1777 = vpop.f32.mrf.mxu0
    %v1778 = vadd.f32 %v1755, %v1777
    %1779 = vdwg.mxu0
    %v1781 = vsel %vm257, %v1719, 0
    %v1784 = vsel %vm257, %v1747, 0
    %1786 = vmatpush.xpose.msra.mxu0 0.0
    %1787 = vmatpush.xpose.msra.mxu0 0.0
    %1788 = vmatpush.xpose.msra.mxu0 0.0
    %1789 = vmatpush.xpose.msra.mxu0 0.0
    %1790 = vmatpush.xpose.msra.mxu0 0.0
    %1791 = vmatpush.xpose.msra.mxu0 0.0
    %1792 = vmatpush.xpose.msra.mxu0 0.0
    %1793 = vmatpush.xpose.msra.mxu0 0.0
    %1794 = vmatpush.xpose.msra.mxu0 0.0
    %1795 = vmatpush.xpose.msra.mxu0 0.0
    %1796 = vmatpush.xpose.msra.mxu0 0.0
    %1797 = vmatpush.xpose.msra.mxu0 0.0
    %1798 = vmatpush.xpose.msra.mxu0 0.0
    %1799 = vmatpush.xpose.msra.mxu0 0.0
    %1800 = vmatpush.xpose.msra.mxu0 0.0
    %1801 = vmatpush.xpose.msra.mxu0 %v1784
    %1802 = vmatmul.f32.gmra.mxu0 %v1781
    %v1803 = vpop.f32.mrf.mxu0
    %v1804 = vadd.f32 0.0, %v1803
    %1805 = vdwg.mxu0
    %v1807 = vsel %vm257, %v1722, 0
    %v1810 = vsel %vm257, %v1750, 0
    %1812 = vmatpush.xpose.msra.mxu0 0.0
    %1813 = vmatpush.xpose.msra.mxu0 0.0
    %1814 = vmatpush.xpose.msra.mxu0 0.0
    %1815 = vmatpush.xpose.msra.mxu0 0.0
    %1816 = vmatpush.xpose.msra.mxu0 0.0
    %1817 = vmatpush.xpose.msra.mxu0 0.0
    %1818 = vmatpush.xpose.msra.mxu0 0.0
    %1819 = vmatpush.xpose.msra.mxu0 0.0
    %1820 = vmatpush.xpose.msra.mxu0 0.0
    %1821 = vmatpush.xpose.msra.mxu0 0.0
    %1822 = vmatpush.xpose.msra.mxu0 0.0
    %1823 = vmatpush.xpose.msra.mxu0 0.0
    %1824 = vmatpush.xpose.msra.mxu0 0.0
    %1825 = vmatpush.xpose.msra.mxu0 0.0
    %1826 = vmatpush.xpose.msra.mxu0 0.0
    %1827 = vmatpush.xpose.msra.mxu0 %v1810
    %1828 = vmatmul.f32.gmra.mxu0 %v1807
    %v1829 = vpop.f32.mrf.mxu0
    %v1830 = vadd.f32 0.0, %v1829
    %1831 = vdwg.mxu0
    %v1832 = vmul.f32 %v1804, 0.35355338
    %v1833 = vmul.f32 %v1830, 0.35355338
    %v1834 = vsel %vm257, %v1832, -inf
    %1835 = vmax.xlane.f32.xlu0 %v1834
    %v1836 = vpop.xlane.xlu0 %1835
    %v1837 = vsel %vm257, %v1833, -inf
    %1838 = vmax.xlane.f32.xlu0 %v1837
    %v1839 = vpop.xlane.xlu0 %1838
    %v1840 = vsub.f32 %v1832, %v1836
    %v1841 = vsub.f32 %v1833, %v1839
    %v1842 = vmul.f32 %v1840, 1.442695
    %v1843 = vpow.pop %v1842
    %v1844 = vmul.f32 %v1841, 1.442695
    %v1845 = vpow.pop %v1844
    %v1846 = vsel %vm257, %v1843, 0.0
    %1847 = vadd.xlane.f32.xlu0 %v1846
    %v1848 = vpop.xlane.xlu0 %1847
    %v1849 = vsel %vm257, %v1845, 0.0
    %1850 = vadd.xlane.f32.xlu0 %v1849
    %v1851 = vpop.xlane.xlu0 %1850
    %v1852 = vrcp.pop %v1848
    %v1853 = vrcp.pop %v1851
    %v1855 = vsel %vm257, %v1843, 0
    %1857 = vmatpush.msra.mxu0 0.0
    %1858 = vmatpush.msra.mxu0 0.0
    %1859 = vmatpush.msra.mxu0 0.0
    %1860 = vmatpush.msra.mxu0 0.0
    %1861 = vmatpush.msra.mxu0 0.0
    %1862 = vmatpush.msra.mxu0 0.0
    %1863 = vmatpush.msra.mxu0 0.0
    %1864 = vmatpush.msra.mxu0 0.0
    %1865 = vmatpush.msra.mxu0 0.0
    %1866 = vmatpush.msra.mxu0 0.0
    %1867 = vmatpush.msra.mxu0 0.0
    %1868 = vmatpush.msra.mxu0 0.0
    %1869 = vmatpush.msra.mxu0 0.0
    %1870 = vmatpush.msra.mxu0 0.0
    %1871 = vmatpush.msra.mxu0 0.0
    %1872 = vmatpush.msra.mxu0 %v1775
    %1873 = vmatmul.f32.gmra.mxu0 %v1855
    %v1874 = vpop.f32.mrf.mxu0
    %v1875 = vadd.f32 0.0, %v1874
    %1876 = vdwg.mxu0
    %v1878 = vsel %vm257, %v1845, 0
    %1880 = vmatpush.msra.mxu0 0.0
    %1881 = vmatpush.msra.mxu0 0.0
    %1882 = vmatpush.msra.mxu0 0.0
    %1883 = vmatpush.msra.mxu0 0.0
    %1884 = vmatpush.msra.mxu0 0.0
    %1885 = vmatpush.msra.mxu0 0.0
    %1886 = vmatpush.msra.mxu0 0.0
    %1887 = vmatpush.msra.mxu0 0.0
    %1888 = vmatpush.msra.mxu0 0.0
    %1889 = vmatpush.msra.mxu0 0.0
    %1890 = vmatpush.msra.mxu0 0.0
    %1891 = vmatpush.msra.mxu0 0.0
    %1892 = vmatpush.msra.mxu0 0.0
    %1893 = vmatpush.msra.mxu0 0.0
    %1894 = vmatpush.msra.mxu0 0.0
    %1895 = vmatpush.msra.mxu0 %v1778
    %1896 = vmatmul.f32.gmra.mxu0 %v1878
    %v1897 = vpop.f32.mrf.mxu0
    %v1898 = vadd.f32 0.0, %v1897
    %1899 = vdwg.mxu0
    %v1900 = vmul.f32 %v1875, %v1852
    %v1901 = vmul.f32 %v1898, %v1853
    %v1903 = vsel %vm257, %v1900, 0
    %v1906 = vsel %vm257, %v1901, 0
    %1908 = vmatpush.msra.mxu0 0.0
    %1909 = vmatpush.msra.mxu0 0.0
    %1910 = vmatpush.msra.mxu0 0.0
    %1911 = vmatpush.msra.mxu0 0.0
    %1912 = vmatpush.msra.mxu0 0.0
    %1913 = vmatpush.msra.mxu0 0.0
    %1914 = vmatpush.msra.mxu0 0.0
    %1915 = vmatpush.msra.mxu0 0.0
    %1916 = vmatpush.msra.mxu0 0.0
    %1917 = vmatpush.msra.mxu0 0.0
    %1918 = vmatpush.msra.mxu0 0.0
    %1919 = vmatpush.msra.mxu0 0.0
    %1920 = vmatpush.msra.mxu0 0.0
    %1921 = vmatpush.msra.mxu0 0.0
    %1922 = vmatpush.msra.mxu0 0.0
    %1923 = vmatpush.msra.mxu0 %v1692
    %1924 = vmatmul.f32.gmra.mxu0 %v1903
    %v1925 = vpop.f32.mrf.mxu0
    %v1926 = vadd.f32 0.0, %v1925
    %1927 = vmatmul.f32.gmra.mxu0 %v1906
    %v1928 = vpop.f32.mrf.mxu0
    %v1929 = vadd.f32 0.0, %v1928
    %1930 = vdwg.mxu0
    %v1932 = vsel %vm257, %v1674, 0
    %v1935 = vsel %vm257, %v1675, 0
    %1937 = vmatpush.msra.mxu0 0.0
    %1938 = vmatpush.msra.mxu0 0.0
    %1939 = vmatpush.msra.mxu0 0.0
    %1940 = vmatpush.msra.mxu0 0.0
    %1941 = vmatpush.msra.mxu0 0.0
    %1942 = vmatpush.msra.mxu0 0.0
    %1943 = vmatpush.msra.mxu0 0.0
    %1944 = vmatpush.msra.mxu0 0.0
    %1945 = vmatpush.msra.mxu0 0.0
    %1946 = vmatpush.msra.mxu0 0.0
    %1947 = vmatpush.msra.mxu0 0.0
    %1948 = vmatpush.msra.mxu0 0.0
    %1949 = vmatpush.msra.mxu0 0.0
    %1950 = vmatpush.msra.mxu0 0.0
    %1951 = vmatpush.msra.mxu0 0.0
    %1952 = vmatpush.msra.mxu0 %v1472
    %1953 = vmatmul.f32.gmra.mxu0 %v1932
    %v1954 = vpop.f32.mrf.mxu0
    %v1955 = vadd.f32 %v1926, %v1954
    %1956 = vmatmul.f32.gmra.mxu0 %v1935
    %v1957 = vpop.f32.mrf.mxu0
    %v1958 = vadd.f32 %v1929, %v1957
    %1959 = vdwg.mxu0
    %s1960 = scalar_lea.vmem %s3, 448
    %v1961 = vld [vmem:[%s1960] sm:$0xff]
    %v1962 = vld [vmem:[%s1960 + $0x8] sm:$0xff]
    %v1963 = vld [vmem:[%s1960 + $0x10] sm:$0xff]
    %v1964 = vld [vmem:[%s1960 + $0x18] sm:$0xff]
    %s1965 = scalar_lea.vmem %s3, 576
    %v1966 = vld [vmem:[%s1965] sm:$0xff]
    %v1967 = vld [vmem:[%s1965 + $0x8] sm:$0xff]
    %v1968 = vld [vmem:[%s1965 + $0x10] sm:$0xff]
    %v1969 = vld [vmem:[%s1965 + $0x18] sm:$0xff]
    %s1970 = scalar_lea.vmem %s3, 704
    %v1971 = vld [vmem:[%s1970] sm:$0xff]
    %v1972 = vld [vmem:[%s1970 + $0x8] sm:$0xff]
    %v1973 = vld [vmem:[%s1970 + $0x10] sm:$0xff]
    %v1974 = vld [vmem:[%s1970 + $0x18] sm:$0xff]
    %s1975 = scalar_lea.vmem %s4, 48
    %v1976 = vld [vmem:[%s1975] sm:$0xff]
    %v1977 = vld [vmem:[%s2 + $0x14] sm:$0x1]
    %v1978 = vld [vmem:[%s2 + $0x15] sm:$0x1]
    %v1979 = vld [vmem:[%s2 + $0x16] sm:$0x1]
    %v1980 = vperm.slane %v1977, 0
    %1982 = vrot.lane.b32.xlu0 %v1980, 112
    %v1983 = vpop.permute.xlu0 %1982
    %1985 = vmatpush.msra.mxu0 0.0
    %1986 = vmatpush.msra.mxu0 0.0
    %1987 = vmatpush.msra.mxu0 0.0
    %1988 = vmatpush.msra.mxu0 0.0
    %1989 = vmatpush.msra.mxu0 0.0
    %1990 = vmatpush.msra.mxu0 0.0
    %1991 = vmatpush.msra.mxu0 0.0
    %1992 = vmatpush.msra.mxu0 0.0
    %1993 = vmatpush.msra.mxu0 0.0
    %1994 = vmatpush.msra.mxu0 0.0
    %1995 = vmatpush.msra.mxu0 0.0
    %1996 = vmatpush.msra.mxu0 0.0
    %1997 = vmatpush.msra.mxu0 %v1964
    %1998 = vmatpush.msra.mxu0 %v1963
    %1999 = vmatpush.msra.mxu0 %v1962
    %2000 = vmatpush.msra.mxu0 %v1961
    %2001 = vmatmul.f32.gmra.mxu0 %v1478
    %v2002 = vpop.f32.mrf.mxu0
    %v2003 = vadd.f32 %v1983, %v2002
    %2004 = vmatmul.f32.gmra.mxu0 %v1481
    %v2005 = vpop.f32.mrf.mxu0
    %v2006 = vadd.f32 %v1983, %v2005
    %2007 = vdwg.mxu0
    %v2008 = vperm.slane %v1978, 0
    %2010 = vrot.lane.b32.xlu0 %v2008, 112
    %v2011 = vpop.permute.xlu0 %2010
    %2013 = vmatpush.msra.mxu0 0.0
    %2014 = vmatpush.msra.mxu0 0.0
    %2015 = vmatpush.msra.mxu0 0.0
    %2016 = vmatpush.msra.mxu0 0.0
    %2017 = vmatpush.msra.mxu0 0.0
    %2018 = vmatpush.msra.mxu0 0.0
    %2019 = vmatpush.msra.mxu0 0.0
    %2020 = vmatpush.msra.mxu0 0.0
    %2021 = vmatpush.msra.mxu0 0.0
    %2022 = vmatpush.msra.mxu0 0.0
    %2023 = vmatpush.msra.mxu0 0.0
    %2024 = vmatpush.msra.mxu0 0.0
    %2025 = vmatpush.msra.mxu0 %v1969
    %2026 = vmatpush.msra.mxu0 %v1968
    %2027 = vmatpush.msra.mxu0 %v1967
    %2028 = vmatpush.msra.mxu0 %v1966
    %2029 = vmatmul.f32.gmra.mxu0 %v1478
    %v2030 = vpop.f32.mrf.mxu0
    %v2031 = vadd.f32 %v2011, %v2030
    %2032 = vmatmul.f32.gmra.mxu0 %v1481
    %v2033 = vpop.f32.mrf.mxu0
    %v2034 = vadd.f32 %v2011, %v2033
    %2035 = vdwg.mxu0
    %v2036 = vperm.slane %v1979, 0
    %2038 = vrot.lane.b32.xlu0 %v2036, 112
    %v2039 = vpop.permute.xlu0 %2038
    %2041 = vmatpush.msra.mxu0 0.0
    %2042 = vmatpush.msra.mxu0 0.0
    %2043 = vmatpush.msra.mxu0 0.0
    %2044 = vmatpush.msra.mxu0 0.0
    %2045 = vmatpush.msra.mxu0 0.0
    %2046 = vmatpush.msra.mxu0 0.0
    %2047 = vmatpush.msra.mxu0 0.0
    %2048 = vmatpush.msra.mxu0 0.0
    %2049 = vmatpush.msra.mxu0 0.0
    %2050 = vmatpush.msra.mxu0 0.0
    %2051 = vmatpush.msra.mxu0 0.0
    %2052 = vmatpush.msra.mxu0 0.0
    %2053 = vmatpush.msra.mxu0 %v1974
    %2054 = vmatpush.msra.mxu0 %v1973
    %2055 = vmatpush.msra.mxu0 %v1972
    %2056 = vmatpush.msra.mxu0 %v1971
    %2057 = vmatmul.f32.gmra.mxu0 %v1478
    %v2058 = vpop.f32.mrf.mxu0
    %v2059 = vadd.f32 %v2039, %v2058
    %2060 = vmatmul.f32.gmra.mxu0 %v1481
    %v2061 = vpop.f32.mrf.mxu0
    %v2062 = vadd.f32 %v2039, %v2061
    %2063 = vdwg.mxu0
    %v2065 = vsel %vm257, %v2003, 0
    %v2068 = vsel %vm257, %v2031, 0
    %2070 = vmatpush.xpose.msra.mxu0 0.0
    %2071 = vmatpush.xpose.msra.mxu0 0.0
    %2072 = vmatpush.xpose.msra.mxu0 0.0
    %2073 = vmatpush.xpose.msra.mxu0 0.0
    %2074 = vmatpush.xpose.msra.mxu0 0.0
    %2075 = vmatpush.xpose.msra.mxu0 0.0
    %2076 = vmatpush.xpose.msra.mxu0 0.0
    %2077 = vmatpush.xpose.msra.mxu0 0.0
    %2078 = vmatpush.xpose.msra.mxu0 0.0
    %2079 = vmatpush.xpose.msra.mxu0 0.0
    %2080 = vmatpush.xpose.msra.mxu0 0.0
    %2081 = vmatpush.xpose.msra.mxu0 0.0
    %2082 = vmatpush.xpose.msra.mxu0 0.0
    %2083 = vmatpush.xpose.msra.mxu0 0.0
    %2084 = vmatpush.xpose.msra.mxu0 0.0
    %2085 = vmatpush.xpose.msra.mxu0 %v2068
    %2086 = vmatmul.f32.gmra.mxu0 %v2065
    %v2087 = vpop.f32.mrf.mxu0
    %v2088 = vadd.f32 0.0, %v2087
    %2089 = vdwg.mxu0
    %v2091 = vsel %vm257, %v2006, 0
    %v2094 = vsel %vm257, %v2034, 0
    %2096 = vmatpush.xpose.msra.mxu0 0.0
    %2097 = vmatpush.xpose.msra.mxu0 0.0
    %2098 = vmatpush.xpose.msra.mxu0 0.0
    %2099 = vmatpush.xpose.msra.mxu0 0.0
    %2100 = vmatpush.xpose.msra.mxu0 0.0
    %2101 = vmatpush.xpose.msra.mxu0 0.0
    %2102 = vmatpush.xpose.msra.mxu0 0.0
    %2103 = vmatpush.xpose.msra.mxu0 0.0
    %2104 = vmatpush.xpose.msra.mxu0 0.0
    %2105 = vmatpush.xpose.msra.mxu0 0.0
    %2106 = vmatpush.xpose.msra.mxu0 0.0
    %2107 = vmatpush.xpose.msra.mxu0 0.0
    %2108 = vmatpush.xpose.msra.mxu0 0.0
    %2109 = vmatpush.xpose.msra.mxu0 0.0
    %2110 = vmatpush.xpose.msra.mxu0 0.0
    %2111 = vmatpush.xpose.msra.mxu0 %v2094
    %2112 = vmatmul.f32.gmra.mxu0 %v2091
    %v2113 = vpop.f32.mrf.mxu0
    %v2114 = vadd.f32 0.0, %v2113
    %2115 = vdwg.mxu0
    %v2116 = vmul.f32 %v2088, 0.35355338
    %v2117 = vmul.f32 %v2114, 0.35355338
    %v2118 = vsel %vm257, %v2116, -inf
    %2119 = vmax.xlane.f32.xlu0 %v2118
    %v2120 = vpop.xlane.xlu0 %2119
    %v2121 = vsel %vm257, %v2117, -inf
    %2122 = vmax.xlane.f32.xlu0 %v2121
    %v2123 = vpop.xlane.xlu0 %2122
    %v2124 = vsub.f32 %v2116, %v2120
    %v2125 = vsub.f32 %v2117, %v2123
    %v2126 = vmul.f32 %v2124, 1.442695
    %v2127 = vpow.pop %v2126
    %v2128 = vmul.f32 %v2125, 1.442695
    %v2129 = vpow.pop %v2128
    %v2130 = vsel %vm257, %v2127, 0.0
    %2131 = vadd.xlane.f32.xlu0 %v2130
    %v2132 = vpop.xlane.xlu0 %2131
    %v2133 = vsel %vm257, %v2129, 0.0
    %2134 = vadd.xlane.f32.xlu0 %v2133
    %v2135 = vpop.xlane.xlu0 %2134
    %v2136 = vrcp.pop %v2132
    %v2137 = vrcp.pop %v2135
    %v2139 = vsel %vm257, %v2127, 0
    %2141 = vmatpush.msra.mxu0 0.0
    %2142 = vmatpush.msra.mxu0 0.0
    %2143 = vmatpush.msra.mxu0 0.0
    %2144 = vmatpush.msra.mxu0 0.0
    %2145 = vmatpush.msra.mxu0 0.0
    %2146 = vmatpush.msra.mxu0 0.0
    %2147 = vmatpush.msra.mxu0 0.0
    %2148 = vmatpush.msra.mxu0 0.0
    %2149 = vmatpush.msra.mxu0 0.0
    %2150 = vmatpush.msra.mxu0 0.0
    %2151 = vmatpush.msra.mxu0 0.0
    %2152 = vmatpush.msra.mxu0 0.0
    %2153 = vmatpush.msra.mxu0 0.0
    %2154 = vmatpush.msra.mxu0 0.0
    %2155 = vmatpush.msra.mxu0 0.0
    %2156 = vmatpush.msra.mxu0 %v2059
    %2157 = vmatmul.f32.gmra.mxu0 %v2139
    %v2158 = vpop.f32.mrf.mxu0
    %v2159 = vadd.f32 0.0, %v2158
    %2160 = vdwg.mxu0
    %v2162 = vsel %vm257, %v2129, 0
    %2164 = vmatpush.msra.mxu0 0.0
    %2165 = vmatpush.msra.mxu0 0.0
    %2166 = vmatpush.msra.mxu0 0.0
    %2167 = vmatpush.msra.mxu0 0.0
    %2168 = vmatpush.msra.mxu0 0.0
    %2169 = vmatpush.msra.mxu0 0.0
    %2170 = vmatpush.msra.mxu0 0.0
    %2171 = vmatpush.msra.mxu0 0.0
    %2172 = vmatpush.msra.mxu0 0.0
    %2173 = vmatpush.msra.mxu0 0.0
    %2174 = vmatpush.msra.mxu0 0.0
    %2175 = vmatpush.msra.mxu0 0.0
    %2176 = vmatpush.msra.mxu0 0.0
    %2177 = vmatpush.msra.mxu0 0.0
    %2178 = vmatpush.msra.mxu0 0.0
    %2179 = vmatpush.msra.mxu0 %v2062
    %2180 = vmatmul.f32.gmra.mxu0 %v2162
    %v2181 = vpop.f32.mrf.mxu0
    %v2182 = vadd.f32 0.0, %v2181
    %2183 = vdwg.mxu0
    %v2184 = vmul.f32 %v2159, %v2136
    %v2185 = vmul.f32 %v2182, %v2137
    %v2187 = vsel %vm257, %v2184, 0
    %v2190 = vsel %vm257, %v2185, 0
    %2192 = vmatpush.msra.mxu0 0.0
    %2193 = vmatpush.msra.mxu0 0.0
    %2194 = vmatpush.msra.mxu0 0.0
    %2195 = vmatpush.msra.mxu0 0.0
    %2196 = vmatpush.msra.mxu0 0.0
    %2197 = vmatpush.msra.mxu0 0.0
    %2198 = vmatpush.msra.mxu0 0.0
    %2199 = vmatpush.msra.mxu0 0.0
    %2200 = vmatpush.msra.mxu0 0.0
    %2201 = vmatpush.msra.mxu0 0.0
    %2202 = vmatpush.msra.mxu0 0.0
    %2203 = vmatpush.msra.mxu0 0.0
    %2204 = vmatpush.msra.mxu0 0.0
    %2205 = vmatpush.msra.mxu0 0.0
    %2206 = vmatpush.msra.mxu0 0.0
    %2207 = vmatpush.msra.mxu0 %v1976
    %2208 = vmatmul.f32.gmra.mxu0 %v2187
    %v2209 = vpop.f32.mrf.mxu0
    %v2210 = vadd.f32 0.0, %v2209
    %2211 = vmatmul.f32.gmra.mxu0 %v2190
    %v2212 = vpop.f32.mrf.mxu0
    %v2213 = vadd.f32 0.0, %v2212
    %2214 = vdwg.mxu0
    %v2215 = vadd.f32 %v1955, %v2210
    %v2216 = vadd.f32 %v1958, %v2213
    %s2217 = scalar_lea.vmem %s3, 480
    %v2218 = vld [vmem:[%s2217] sm:$0xff]
    %v2219 = vld [vmem:[%s2217 + $0x8] sm:$0xff]
    %v2220 = vld [vmem:[%s2217 + $0x10] sm:$0xff]
    %v2221 = vld [vmem:[%s2217 + $0x18] sm:$0xff]
    %s2222 = scalar_lea.vmem %s3, 608
    %v2223 = vld [vmem:[%s2222] sm:$0xff]
    %v2224 = vld [vmem:[%s2222 + $0x8] sm:$0xff]
    %v2225 = vld [vmem:[%s2222 + $0x10] sm:$0xff]
    %v2226 = vld [vmem:[%s2222 + $0x18] sm:$0xff]
    %s2227 = scalar_lea.vmem %s3, 736
    %v2228 = vld [vmem:[%s2227] sm:$0xff]
    %v2229 = vld [vmem:[%s2227 + $0x8] sm:$0xff]
    %v2230 = vld [vmem:[%s2227 + $0x10] sm:$0xff]
    %v2231 = vld [vmem:[%s2227 + $0x18] sm:$0xff]
    %s2232 = scalar_lea.vmem %s4, 56
    %v2233 = vld [vmem:[%s2232] sm:$0xff]
    %v2234 = vld [vmem:[%s2 + $0x14] sm:$0x1]
    %v2235 = vld [vmem:[%s2 + $0x15] sm:$0x1]
    %v2236 = vld [vmem:[%s2 + $0x16] sm:$0x1]
    %v2237 = vperm.slane %v2234, 0
    %2239 = vrot.lane.b32.xlu0 %v2237, 104
    %v2240 = vpop.permute.xlu0 %2239
    %2242 = vmatpush.msra.mxu0 0.0
    %2243 = vmatpush.msra.mxu0 0.0
    %2244 = vmatpush.msra.mxu0 0.0
    %2245 = vmatpush.msra.mxu0 0.0
    %2246 = vmatpush.msra.mxu0 0.0
    %2247 = vmatpush.msra.mxu0 0.0
    %2248 = vmatpush.msra.mxu0 0.0
    %2249 = vmatpush.msra.mxu0 0.0
    %2250 = vmatpush.msra.mxu0 0.0
    %2251 = vmatpush.msra.mxu0 0.0
    %2252 = vmatpush.msra.mxu0 0.0
    %2253 = vmatpush.msra.mxu0 0.0
    %2254 = vmatpush.msra.mxu0 %v2221
    %2255 = vmatpush.msra.mxu0 %v2220
    %2256 = vmatpush.msra.mxu0 %v2219
    %2257 = vmatpush.msra.mxu0 %v2218
    %2258 = vmatmul.f32.gmra.mxu0 %v1478
    %v2259 = vpop.f32.mrf.mxu0
    %v2260 = vadd.f32 %v2240, %v2259
    %2261 = vmatmul.f32.gmra.mxu0 %v1481
    %v2262 = vpop.f32.mrf.mxu0
    %v2263 = vadd.f32 %v2240, %v2262
    %2264 = vdwg.mxu0
    %v2265 = vperm.slane %v2235, 0
    %2267 = vrot.lane.b32.xlu0 %v2265, 104
    %v2268 = vpop.permute.xlu0 %2267
    %2270 = vmatpush.msra.mxu0 0.0
    %2271 = vmatpush.msra.mxu0 0.0
    %2272 = vmatpush.msra.mxu0 0.0
    %2273 = vmatpush.msra.mxu0 0.0
    %2274 = vmatpush.msra.mxu0 0.0
    %2275 = vmatpush.msra.mxu0 0.0
    %2276 = vmatpush.msra.mxu0 0.0
    %2277 = vmatpush.msra.mxu0 0.0
    %2278 = vmatpush.msra.mxu0 0.0
    %2279 = vmatpush.msra.mxu0 0.0
    %2280 = vmatpush.msra.mxu0 0.0
    %2281 = vmatpush.msra.mxu0 0.0
    %2282 = vmatpush.msra.mxu0 %v2226
    %2283 = vmatpush.msra.mxu0 %v2225
    %2284 = vmatpush.msra.mxu0 %v2224
    %2285 = vmatpush.msra.mxu0 %v2223
    %2286 = vmatmul.f32.gmra.mxu0 %v1478
    %v2287 = vpop.f32.mrf.mxu0
    %v2288 = vadd.f32 %v2268, %v2287
    %2289 = vmatmul.f32.gmra.mxu0 %v1481
    %v2290 = vpop.f32.mrf.mxu0
    %v2291 = vadd.f32 %v2268, %v2290
    %2292 = vdwg.mxu0
    %v2293 = vperm.slane %v2236, 0
    %2295 = vrot.lane.b32.xlu0 %v2293, 104
    %v2296 = vpop.permute.xlu0 %2295
    %2298 = vmatpush.msra.mxu0 0.0
    %2299 = vmatpush.msra.mxu0 0.0
    %2300 = vmatpush.msra.mxu0 0.0
    %2301 = vmatpush.msra.mxu0 0.0
    %2302 = vmatpush.msra.mxu0 0.0
    %2303 = vmatpush.msra.mxu0 0.0
    %2304 = vmatpush.msra.mxu0 0.0
    %2305 = vmatpush.msra.mxu0 0.0
    %2306 = vmatpush.msra.mxu0 0.0
    %2307 = vmatpush.msra.mxu0 0.0
    %2308 = vmatpush.msra.mxu0 0.0
    %2309 = vmatpush.msra.mxu0 0.0
    %2310 = vmatpush.msra.mxu0 %v2231
    %2311 = vmatpush.msra.mxu0 %v2230
    %2312 = vmatpush.msra.mxu0 %v2229
    %2313 = vmatpush.msra.mxu0 %v2228
    %2314 = vmatmul.f32.gmra.mxu0 %v1478
    %v2315 = vpop.f32.mrf.mxu0
    %v2316 = vadd.f32 %v2296, %v2315
    %2317 = vmatmul.f32.gmra.mxu0 %v1481
    %v2318 = vpop.f32.mrf.mxu0
    %v2319 = vadd.f32 %v2296, %v2318
    %2320 = vdwg.mxu0
    %v2322 = vsel %vm257, %v2260, 0
    %v2325 = vsel %vm257, %v2288, 0
    %2327 = vmatpush.xpose.msra.mxu0 0.0
    %2328 = vmatpush.xpose.msra.mxu0 0.0
    %2329 = vmatpush.xpose.msra.mxu0 0.0
    %2330 = vmatpush.xpose.msra.mxu0 0.0
    %2331 = vmatpush.xpose.msra.mxu0 0.0
    %2332 = vmatpush.xpose.msra.mxu0 0.0
    %2333 = vmatpush.xpose.msra.mxu0 0.0
    %2334 = vmatpush.xpose.msra.mxu0 0.0
    %2335 = vmatpush.xpose.msra.mxu0 0.0
    %2336 = vmatpush.xpose.msra.mxu0 0.0
    %2337 = vmatpush.xpose.msra.mxu0 0.0
    %2338 = vmatpush.xpose.msra.mxu0 0.0
    %2339 = vmatpush.xpose.msra.mxu0 0.0
    %2340 = vmatpush.xpose.msra.mxu0 0.0
    %2341 = vmatpush.xpose.msra.mxu0 0.0
    %2342 = vmatpush.xpose.msra.mxu0 %v2325
    %2343 = vmatmul.f32.gmra.mxu0 %v2322
    %v2344 = vpop.f32.mrf.mxu0
    %v2345 = vadd.f32 0.0, %v2344
    %2346 = vdwg.mxu0
    %v2348 = vsel %vm257, %v2263, 0
    %v2351 = vsel %vm257, %v2291, 0
    %2353 = vmatpush.xpose.msra.mxu0 0.0
    %2354 = vmatpush.xpose.msra.mxu0 0.0
    %2355 = vmatpush.xpose.msra.mxu0 0.0
    %2356 = vmatpush.xpose.msra.mxu0 0.0
    %2357 = vmatpush.xpose.msra.mxu0 0.0
    %2358 = vmatpush.xpose.msra.mxu0 0.0
    %2359 = vmatpush.xpose.msra.mxu0 0.0
    %2360 = vmatpush.xpose.msra.mxu0 0.0
    %2361 = vmatpush.xpose.msra.mxu0 0.0
    %2362 = vmatpush.xpose.msra.mxu0 0.0
    %2363 = vmatpush.xpose.msra.mxu0 0.0
    %2364 = vmatpush.xpose.msra.mxu0 0.0
    %2365 = vmatpush.xpose.msra.mxu0 0.0
    %2366 = vmatpush.xpose.msra.mxu0 0.0
    %2367 = vmatpush.xpose.msra.mxu0 0.0
    %2368 = vmatpush.xpose.msra.mxu0 %v2351
    %2369 = vmatmul.f32.gmra.mxu0 %v2348
    %v2370 = vpop.f32.mrf.mxu0
    %v2371 = vadd.f32 0.0, %v2370
    %2372 = vdwg.mxu0
    %v2373 = vmul.f32 %v2345, 0.35355338
    %v2374 = vmul.f32 %v2371, 0.35355338
    %v2375 = vsel %vm257, %v2373, -inf
    %2376 = vmax.xlane.f32.xlu0 %v2375
    %v2377 = vpop.xlane.xlu0 %2376
    %v2378 = vsel %vm257, %v2374, -inf
    %2379 = vmax.xlane.f32.xlu0 %v2378
    %v2380 = vpop.xlane.xlu0 %2379
    %v2381 = vsub.f32 %v2373, %v2377
    %v2382 = vsub.f32 %v2374, %v2380
    %v2383 = vmul.f32 %v2381, 1.442695
    %v2384 = vpow.pop %v2383
    %v2385 = vmul.f32 %v2382, 1.442695
    %v2386 = vpow.pop %v2385
    %v2387 = vsel %vm257, %v2384, 0.0
    %2388 = vadd.xlane.f32.xlu0 %v2387
    %v2389 = vpop.xlane.xlu0 %2388
    %v2390 = vsel %vm257, %v2386, 0.0
    %2391 = vadd.xlane.f32.xlu0 %v2390
    %v2392 = vpop.xlane.xlu0 %2391
    %v2393 = vrcp.pop %v2389
    %v2394 = vrcp.pop %v2392
    %v2396 = vsel %vm257, %v2384, 0
    %2398 = vmatpush.msra.mxu0 0.0
    %2399 = vmatpush.msra.mxu0 0.0
    %2400 = vmatpush.msra.mxu0 0.0
    %2401 = vmatpush.msra.mxu0 0.0
    %2402 = vmatpush.msra.mxu0 0.0
    %2403 = vmatpush.msra.mxu0 0.0
    %2404 = vmatpush.msra.mxu0 0.0
    %2405 = vmatpush.msra.mxu0 0.0
    %2406 = vmatpush.msra.mxu0 0.0
    %2407 = vmatpush.msra.mxu0 0.0
    %2408 = vmatpush.msra.mxu0 0.0
    %2409 = vmatpush.msra.mxu0 0.0
    %2410 = vmatpush.msra.mxu0 0.0
    %2411 = vmatpush.msra.mxu0 0.0
    %2412 = vmatpush.msra.mxu0 0.0
    %2413 = vmatpush.msra.mxu0 %v2316
    %2414 = vmatmul.f32.gmra.mxu0 %v2396
    %v2415 = vpop.f32.mrf.mxu0
    %v2416 = vadd.f32 0.0, %v2415
    %2417 = vdwg.mxu0
    %v2419 = vsel %vm257, %v2386, 0
    %2421 = vmatpush.msra.mxu0 0.0
    %2422 = vmatpush.msra.mxu0 0.0
    %2423 = vmatpush.msra.mxu0 0.0
    %2424 = vmatpush.msra.mxu0 0.0
    %2425 = vmatpush.msra.mxu0 0.0
    %2426 = vmatpush.msra.mxu0 0.0
    %2427 = vmatpush.msra.mxu0 0.0
    %2428 = vmatpush.msra.mxu0 0.0
    %2429 = vmatpush.msra.mxu0 0.0
    %2430 = vmatpush.msra.mxu0 0.0
    %2431 = vmatpush.msra.mxu0 0.0
    %2432 = vmatpush.msra.mxu0 0.0
    %2433 = vmatpush.msra.mxu0 0.0
    %2434 = vmatpush.msra.mxu0 0.0
    %2435 = vmatpush.msra.mxu0 0.0
    %2436 = vmatpush.msra.mxu0 %v2319
    %2437 = vmatmul.f32.gmra.mxu0 %v2419
    %v2438 = vpop.f32.mrf.mxu0
    %v2439 = vadd.f32 0.0, %v2438
    %2440 = vdwg.mxu0
    %v2441 = vmul.f32 %v2416, %v2393
    %v2442 = vmul.f32 %v2439, %v2394
    %v2444 = vsel %vm257, %v2441, 0
    %v2447 = vsel %vm257, %v2442, 0
    %2449 = vmatpush.msra.mxu0 0.0
    %2450 = vmatpush.msra.mxu0 0.0
    %2451 = vmatpush.msra.mxu0 0.0
    %2452 = vmatpush.msra.mxu0 0.0
    %2453 = vmatpush.msra.mxu0 0.0
    %2454 = vmatpush.msra.mxu0 0.0
    %2455 = vmatpush.msra.mxu0 0.0
    %2456 = vmatpush.msra.mxu0 0.0
    %2457 = vmatpush.msra.mxu0 0.0
    %2458 = vmatpush.msra.mxu0 0.0
    %2459 = vmatpush.msra.mxu0 0.0
    %2460 = vmatpush.msra.mxu0 0.0
    %2461 = vmatpush.msra.mxu0 0.0
    %2462 = vmatpush.msra.mxu0 0.0
    %2463 = vmatpush.msra.mxu0 0.0
    %2464 = vmatpush.msra.mxu0 %v2233
    %2465 = vmatmul.f32.gmra.mxu0 %v2444
    %v2466 = vpop.f32.mrf.mxu0
    %v2467 = vadd.f32 0.0, %v2466
    %2468 = vmatmul.f32.gmra.mxu0 %v2447
    %v2469 = vpop.f32.mrf.mxu0
    %v2470 = vadd.f32 0.0, %v2469
    %2471 = vdwg.mxu0
    %v2472 = vadd.f32 %v2215, %v2467
    %v2473 = vadd.f32 %v2216, %v2470
    %v2474 = vperm.slane %v1449, 0
    %v2475 = vadd.f32 %v2472, %v2474
    %v2476 = vadd.f32 %v2473, %v2474
    %v2477 = vadd.f32 %v1445, %v2475
    %v2478 = vadd.f32 %v1446, %v2476
    %v2479 = vsel %vm96, %v2477, 0.0
    %2480 = vadd.xlane.f32.xlu0 %v2479
    %v2481 = vpop.xlane.xlu0 %2480
    %v2482 = vsel %vm96, %v2478, 0.0
    %2483 = vadd.xlane.f32.xlu0 %v2482
    %v2484 = vpop.xlane.xlu0 %2483
    %v2485 = vmul.f32 %v2481, %v109
    %v2486 = vmul.f32 %v2484, %v109
    %v2487 = vsub.f32 %v2477, %v2485
    %v2488 = vsub.f32 %v2478, %v2486
    %v2489 = vmul.f32 %v2487, %v2487
    %v2490 = vmul.f32 %v2488, %v2488
    %v2491 = vsel %vm96, %v2489, 0.0
    %2492 = vadd.xlane.f32.xlu0 %v2491
    %v2493 = vpop.xlane.xlu0 %2492
    %v2494 = vsel %vm96, %v2490, 0.0
    %2495 = vadd.xlane.f32.xlu0 %v2494
    %v2496 = vpop.xlane.xlu0 %2495
    %v2497 = vmul.f32 %v2493, %v109
    %v2498 = vmul.f32 %v2496, %v109
    %v2499 = vadd.f32 %v2497, 1e-12
    %v2500 = vadd.f32 %v2498, 1e-12
    %v2501 = vrsqrt.pop %v2499
    %v2502 = vmul.f32 %v2501, %v2499
    %v2503 = vmul.f32 %v2502, %v2501
    %v2504 = vmul.f32 0.5, %v2503
    %v2505 = vsub.f32 1.5, %v2504
    %v2506 = vmul.f32 %v2501, %v2505
    %vm2507 = vweird.f32 %v2499
    %vm2508 = vweird.f32 %v2501
    %vm2509 = vmor %vm2507, %vm2508
    %v2510 = vsel %vm2509, %v2501, %v2506
    %v2511 = vrsqrt.pop %v2500
    %v2512 = vmul.f32 %v2511, %v2500
    %v2513 = vmul.f32 %v2512, %v2511
    %v2514 = vmul.f32 0.5, %v2513
    %v2515 = vsub.f32 1.5, %v2514
    %v2516 = vmul.f32 %v2511, %v2515
    %vm2517 = vweird.f32 %v2500
    %vm2518 = vweird.f32 %v2511
    %vm2519 = vmor %vm2517, %vm2518
    %v2520 = vsel %vm2519, %v2511, %v2516
    %v2521 = vmul.f32 %v2487, %v2510
    %v2522 = vmul.f32 %v2488, %v2520
    %v2523 = vperm.slane %v1450, 0
    %v2524 = vmul.f32 %v2521, %v2523
    %v2525 = vmul.f32 %v2522, %v2523
    %v2526 = vperm.slane %v1451, 0
    %v2527 = vadd.f32 %v2524, %v2526
    %v2528 = vadd.f32 %v2525, %v2526
    %s2529 = scalar_lea.vmem %s5, 32
    %v2530 = vld [vmem:[%s2529] sm:$0xff]
    %v2531 = vld [vmem:[%s2529 + $0x8] sm:$0xff]
    %v2532 = vld [vmem:[%s2529 + $0x10] sm:$0xff]
    %v2533 = vld [vmem:[%s2529 + $0x18] sm:$0xff]
    %v2534 = vperm.slane %v1455, 0
    %v2536 = vsel %vm96, %v2527, 0
    %v2539 = vsel %vm96, %v2528, 0
    %2541 = vmatpush.msra.mxu0 0.0
    %2542 = vmatpush.msra.mxu0 0.0
    %2543 = vmatpush.msra.mxu0 0.0
    %2544 = vmatpush.msra.mxu0 0.0
    %2545 = vmatpush.msra.mxu0 0.0
    %2546 = vmatpush.msra.mxu0 0.0
    %2547 = vmatpush.msra.mxu0 0.0
    %2548 = vmatpush.msra.mxu0 0.0
    %2549 = vmatpush.msra.mxu0 0.0
    %2550 = vmatpush.msra.mxu0 0.0
    %2551 = vmatpush.msra.mxu0 0.0
    %2552 = vmatpush.msra.mxu0 0.0
    %2553 = vmatpush.msra.mxu0 %v2533
    %2554 = vmatpush.msra.mxu0 %v2532
    %2555 = vmatpush.msra.mxu0 %v2531
    %2556 = vmatpush.msra.mxu0 %v2530
    %2557 = vmatmul.f32.gmra.mxu0 %v2536
    %v2558 = vpop.f32.mrf.mxu0
    %v2559 = vadd.f32 %v2534, %v2558
    %2560 = vmatmul.f32.gmra.mxu0 %v2539
    %v2561 = vpop.f32.mrf.mxu0
    %v2562 = vadd.f32 %v2534, %v2561
    %2563 = vdwg.mxu0
    %v2564 = vmul.f32 %v2559, 0.5
    %v2565 = vmul.f32 %v2562, 0.5
    %v2566 = vmul.f32 %v2559, 0.70710677
    %v2567 = vmul.f32 %v2562, 0.70710677
    %v2568 = vmul.f32 %v2566, %v2566
    %v2569 = vmin.f32 16.0, %v2568
    %v2570 = vmul.f32 %v2569, 2.1237322e-06
    %v2571 = vadd.f32 %v2570, 0.00028619796
    %v2572 = vmul.f32 %v2569, %v2571
    %v2573 = vadd.f32 %v2572, 0.0036580483
    %v2574 = vmul.f32 %v2569, %v2573
    %v2575 = vadd.f32 %v2574, 0.05243302
    %v2576 = vmul.f32 %v2569, %v2575
    %v2577 = vadd.f32 %v2576, 0.18741608
    %v2578 = vmul.f32 %v2569, %v2577
    %v2579 = vadd.f32 %v2578, 1.1283791
    %v2580 = vmul.f32 %v2566, %v2579
    %v2581 = vmul.f32 %v2569, 3.8918573e-05
    %v2582 = vadd.f32 %v2581, 0.001143296
    %v2583 = vmul.f32 %v2569, %v2582
    %v2584 = vadd.f32 %v2583, 0.014752088
    %v2585 = vmul.f32 %v2569, %v2584
    %v2586 = vadd.f32 %v2585, 0.112945676
    %v2587 = vmul.f32 %v2569, %v2586
    %v2588 = vadd.f32 %v2587, 0.4994258
    %v2589 = vmul.f32 %v2569, %v2588
    %v2590 = vadd.f32 %v2589, 1.0
    %v2591 = vrcp.pop %v2590
    %v2592 = vmul.f32 %v2590, %v2591
    %v2593 = vsub.f32 1.0, %v2592
    %v2594 = vmul.f32 %v2591, %v2593
    %v2595 = vadd.f32 %v2591, %v2594
    %vm2596 = vweird.f32 %v2590
    %vm2597 = vweird.f32 %v2591
    %vm2598 = vmor %vm2596, %vm2597
    %v2599 = vsel %vm2598, %v2591, %v2595
    %v2600 = vand.u32 2147483647, %v2590
    %vm2601 = vcmp.eq.f32.partialorder %v2600, 8.507059e+37
    %v2602 = vand.u32 %v2590, 2147483648
    %v2603 = vor.u32 1.1754944e-38, %v2602
    %v2604 = vsel %vm2601, %v2603, %v2599
    %v2605 = vmul.f32 %v2580, %v2604
    %v2606 = vmin.f32 %v2605, 1.0
    %v2607 = vmax.f32 %v2606, -1.0
    %v2608 = vmul.f32 %v2567, %v2567
    %v2609 = vmin.f32 16.0, %v2608
    %v2610 = vmul.f32 %v2609, 2.1237322e-06
    %v2611 = vadd.f32 %v2610, 0.00028619796
    %v2612 = vmul.f32 %v2609, %v2611
    %v2613 = vadd.f32 %v2612, 0.0036580483
    %v2614 = vmul.f32 %v2609, %v2613
    %v2615 = vadd.f32 %v2614, 0.05243302
    %v2616 = vmul.f32 %v2609, %v2615
    %v2617 = vadd.f32 %v2616, 0.18741608
    %v2618 = vmul.f32 %v2609, %v2617
    %v2619 = vadd.f32 %v2618, 1.1283791
    %v2620 = vmul.f32 %v2567, %v2619
    %v2621 = vmul.f32 %v2609, 3.8918573e-05
    %v2622 = vadd.f32 %v2621, 0.001143296
    %v2623 = vmul.f32 %v2609, %v2622
    %v2624 = vadd.f32 %v2623, 0.014752088
    %v2625 = vmul.f32 %v2609, %v2624
    %v2626 = vadd.f32 %v2625, 0.112945676
    %v2627 = vmul.f32 %v2609, %v2626
    %v2628 = vadd.f32 %v2627, 0.4994258
    %v2629 = vmul.f32 %v2609, %v2628
    %v2630 = vadd.f32 %v2629, 1.0
    %v2631 = vrcp.pop %v2630
    %v2632 = vmul.f32 %v2630, %v2631
    %v2633 = vsub.f32 1.0, %v2632
    %v2634 = vmul.f32 %v2631, %v2633
    %v2635 = vadd.f32 %v2631, %v2634
    %vm2636 = vweird.f32 %v2630
    %vm2637 = vweird.f32 %v2631
    %vm2638 = vmor %vm2636, %vm2637
    %v2639 = vsel %vm2638, %v2631, %v2635
    %v2640 = vand.u32 2147483647, %v2630
    %vm2641 = vcmp.eq.f32.partialorder %v2640, 8.507059e+37
    %v2642 = vand.u32 %v2630, 2147483648
    %v2643 = vor.u32 1.1754944e-38, %v2642
    %v2644 = vsel %vm2641, %v2643, %v2639
    %v2645 = vmul.f32 %v2620, %v2644
    %v2646 = vmin.f32 %v2645, 1.0
    %v2647 = vmax.f32 %v2646, -1.0
    %v2648 = vadd.f32 %v2607, 1.0
    %v2649 = vadd.f32 %v2647, 1.0
    %v2650 = vmul.f32 %v2564, %v2648
    %v2651 = vmul.f32 %v2565, %v2649
    %s2652 = scalar_lea.vmem %s6, 128
    %v2653 = vld [vmem:[%s2652] sm:$0xff]
    %v2654 = vld [vmem:[%s2652 + $0x8] sm:$0xff]
    %v2655 = vld [vmem:[%s2652 + $0x10] sm:$0xff]
    %v2656 = vld [vmem:[%s2652 + $0x18] sm:$0xff]
    %v2657 = vld [vmem:[%s2652 + $0x20] sm:$0xff]
    %v2658 = vld [vmem:[%s2652 + $0x28] sm:$0xff]
    %v2659 = vld [vmem:[%s2652 + $0x30] sm:$0xff]
    %v2660 = vld [vmem:[%s2652 + $0x38] sm:$0xff]
    %v2661 = vld [vmem:[%s2652 + $0x40] sm:$0xff]
    %v2662 = vld [vmem:[%s2652 + $0x48] sm:$0xff]
    %v2663 = vld [vmem:[%s2652 + $0x50] sm:$0xff]
    %v2664 = vld [vmem:[%s2652 + $0x58] sm:$0xff]
    %v2665 = vld [vmem:[%s2652 + $0x60] sm:$0xff]
    %v2666 = vld [vmem:[%s2652 + $0x68] sm:$0xff]
    %v2667 = vld [vmem:[%s2652 + $0x70] sm:$0xff]
    %v2668 = vld [vmem:[%s2652 + $0x78] sm:$0xff]
    %v2669 = vperm.slane %v1452, 0
    %2670 = vmatpush.msra.mxu0 %v2668
    %2671 = vmatpush.msra.mxu0 %v2667
    %2672 = vmatpush.msra.mxu0 %v2666
    %2673 = vmatpush.msra.mxu0 %v2665
    %2674 = vmatpush.msra.mxu0 %v2664
    %2675 = vmatpush.msra.mxu0 %v2663
    %2676 = vmatpush.msra.mxu0 %v2662
    %2677 = vmatpush.msra.mxu0 %v2661
    %2678 = vmatpush.msra.mxu0 %v2660
    %2679 = vmatpush.msra.mxu0 %v2659
    %2680 = vmatpush.msra.mxu0 %v2658
    %2681 = vmatpush.msra.mxu0 %v2657
    %2682 = vmatpush.msra.mxu0 %v2656
    %2683 = vmatpush.msra.mxu0 %v2655
    %2684 = vmatpush.msra.mxu0 %v2654
    %2685 = vmatpush.msra.mxu0 %v2653
    %2686 = vmatmul.f32.gmra.mxu0 %v2650
    %v2687 = vpop.f32.mrf.mxu0
    %v2688 = vadd.f32 %v2669, %v2687
    %2689 = vmatmul.f32.gmra.mxu0 %v2651
    %v2690 = vpop.f32.mrf.mxu0
    %v2691 = vadd.f32 %v2669, %v2690
    %2692 = vdwg.mxu0
    %v2693 = vadd.f32 %v2527, %v2688
    %v2694 = vadd.f32 %v2528, %v2691
    %v2695 = vsel %vm96, %v2693, 0.0
    %2696 = vadd.xlane.f32.xlu0 %v2695
    %v2697 = vpop.xlane.xlu0 %2696
    %v2698 = vsel %vm96, %v2694, 0.0
    %2699 = vadd.xlane.f32.xlu0 %v2698
    %v2700 = vpop.xlane.xlu0 %2699
    %v2701 = vmul.f32 %v2697, %v109
    %v2702 = vmul.f32 %v2700, %v109
    %v2703 = vsub.f32 %v2693, %v2701
    %v2704 = vsub.f32 %v2694, %v2702
    %v2705 = vmul.f32 %v2703, %v2703
    %v2706 = vmul.f32 %v2704, %v2704
    %v2707 = vsel %vm96, %v2705, 0.0
    %2708 = vadd.xlane.f32.xlu0 %v2707
    %v2709 = vpop.xlane.xlu0 %2708
    %v2710 = vsel %vm96, %v2706, 0.0
    %2711 = vadd.xlane.f32.xlu0 %v2710
    %v2712 = vpop.xlane.xlu0 %2711
    %v2713 = vmul.f32 %v2709, %v109
    %v2714 = vmul.f32 %v2712, %v109
    %v2715 = vadd.f32 %v2713, 1e-12
    %v2716 = vadd.f32 %v2714, 1e-12
    %v2717 = vrsqrt.pop %v2715
    %v2718 = vmul.f32 %v2717, %v2715
    %v2719 = vmul.f32 %v2718, %v2717
    %v2720 = vmul.f32 0.5, %v2719
    %v2721 = vsub.f32 1.5, %v2720
    %v2722 = vmul.f32 %v2717, %v2721
    %vm2723 = vweird.f32 %v2715
    %vm2724 = vweird.f32 %v2717
    %vm2725 = vmor %vm2723, %vm2724
    %v2726 = vsel %vm2725, %v2717, %v2722
    %v2727 = vrsqrt.pop %v2716
    %v2728 = vmul.f32 %v2727, %v2716
    %v2729 = vmul.f32 %v2728, %v2727
    %v2730 = vmul.f32 0.5, %v2729
    %v2731 = vsub.f32 1.5, %v2730
    %v2732 = vmul.f32 %v2727, %v2731
    %vm2733 = vweird.f32 %v2716
    %vm2734 = vweird.f32 %v2727
    %vm2735 = vmor %vm2733, %vm2734
    %v2736 = vsel %vm2735, %v2727, %v2732
    %v2737 = vmul.f32 %v2703, %v2726
    %v2738 = vmul.f32 %v2704, %v2736
    %v2739 = vperm.slane %v1453, 0
    %v2740 = vmul.f32 %v2737, %v2739
    %v2741 = vmul.f32 %v2738, %v2739
    %v2742 = vperm.slane %v1454, 0
    %v2743 = vadd.f32 %v2740, %v2742
    %v2744 = vadd.f32 %v2741, %v2742
    %v2745 = vadd.f32 %v1447, %v2743
    %v2746 = vadd.f32 %v1448, %v2744
    %v2747 = vld [vmem:[%s7 + $0x8] sm:$0xff]
    %v2748 = vld [vmem:[%s7 + $0x10] sm:$0xff]
    %v2749 = vld [vmem:[%s7 + $0x18] sm:$0xff]
    %v2750 = vld [vmem:[%s7 + $0x20] sm:$0xff]
    %v2751 = vld [vmem:[%s7 + $0x2] sm:$0x1]
    %v2752 = vld [vmem:[%s7 + $0x28] sm:$0xff]
    %v2753 = vld [vmem:[%s7 + $0x30] sm:$0xff]
    %v2754 = vld [vmem:[%s7 + $0x38] sm:$0xff]
    %v2755 = vld [vmem:[%s7 + $0x40] sm:$0xff]
    %v2756 = vld [vmem:[%s7 + $0x48] sm:$0xff]
    %v2757 = vld [vmem:[%s7 + $0x50] sm:$0xff]
    %v2758 = vld [vmem:[%s7 + $0x58] sm:$0xff]
    %v2759 = vld [vmem:[%s7 + $0x60] sm:$0xff]
    %v2760 = vld [vmem:[%s7 + $0x3] sm:$0x1]
    %v2761 = vperm.slane %v2751, 0
    %v2763 = vsel %vm96, %v2745, 0
    %v2766 = vsel %vm96, %v2746, 0
    %2768 = vmatpush.msra.mxu0 0.0
    %2769 = vmatpush.msra.mxu0 0.0
    %2770 = vmatpush.msra.mxu0 0.0
    %2771 = vmatpush.msra.mxu0 0.0
    %2772 = vmatpush.msra.mxu0 0.0
    %2773 = vmatpush.msra.mxu0 0.0
    %2774 = vmatpush.msra.mxu0 0.0
    %2775 = vmatpush.msra.mxu0 0.0
    %2776 = vmatpush.msra.mxu0 0.0
    %2777 = vmatpush.msra.mxu0 0.0
    %2778 = vmatpush.msra.mxu0 0.0
    %2779 = vmatpush.msra.mxu0 0.0
    %2780 = vmatpush.msra.mxu0 %v2750
    %2781 = vmatpush.msra.mxu0 %v2749
    %2782 = vmatpush.msra.mxu0 %v2748
    %2783 = vmatpush.msra.mxu0 %v2747
    %2784 = vmatmul.f32.gmra.mxu0 %v2763
    %v2785 = vpop.f32.mrf.mxu0
    %v2786 = vadd.f32 %v2761, %v2785
    %2787 = vmatmul.f32.gmra.mxu0 %v2766
    %v2788 = vpop.f32.mrf.mxu0
    %v2789 = vadd.f32 %v2761, %v2788
    %2790 = vdwg.mxu0
    %v2791 = vmax.f32 %v2786, 0.0
    %v2792 = vmax.f32 %v2789, 0.0
    %v2793 = vperm.slane %v2760, 0
    %vm2794 = vcmask 523264
    %v2796 = vsel %vm2794, %v2791, 0
    %v2799 = vsel %vm2794, %v2792, 0
    %2801 = vmatpush.msra.mxu0 0.0
    %2802 = vmatpush.msra.mxu0 0.0
    %2803 = vmatpush.msra.mxu0 0.0
    %2804 = vmatpush.msra.mxu0 0.0
    %2805 = vmatpush.msra.mxu0 0.0
    %2806 = vmatpush.msra.mxu0 0.0
    %2807 = vmatpush.msra.mxu0 0.0
    %2808 = vmatpush.msra.mxu0 0.0
    %2809 = vmatpush.msra.mxu0 %v2759
    %2810 = vmatpush.msra.mxu0 %v2758
    %2811 = vmatpush.msra.mxu0 %v2757
    %2812 = vmatpush.msra.mxu0 %v2756
    %2813 = vmatpush.msra.mxu0 %v2755
    %2814 = vmatpush.msra.mxu0 %v2754
    %2815 = vmatpush.msra.mxu0 %v2753
    %2816 = vmatpush.msra.mxu0 %v2752
    %2817 = vmatmul.f32.gmra.mxu0 %v2796
    %v2818 = vpop.f32.mrf.mxu0
    %v2819 = vadd.f32 %v2793, %v2818
    %2820 = vmatmul.f32.gmra.mxu0 %v2799
    %v2821 = vpop.f32.mrf.mxu0
    %v2822 = vadd.f32 %v2793, %v2821
    %2823 = vdwg.mxu0
    %2824 = vst [vmem:[%s8] sm:$0xff] %v2819
    %2825 = vst [vmem:[%s8 + $0x8] sm:$0xff] %v2822
    %vm2826 = vcmp.lt.s32.totalorder %v35, 3
    %v2827 = vsel %vm2826, %v2819, -1e+30
    %v2828 = vsel %vm2826, %v2822, -1e+30
    %2829 = vmax.xlane.f32.xlu0 %v2827
    %v2830 = vpop.xlane.xlu0 %2829
    %2831 = vmax.xlane.f32.xlu0 %v2828
    %v2832 = vpop.xlane.xlu0 %2831
    %v2833 = vsub.f32 %v2827, %v2830
    %v2834 = vsub.f32 %v2828, %v2832
    %v2835 = vmul.f32 %v2833, 1.442695
    %v2836 = vpow.pop %v2835
    %v2837 = vmul.f32 %v2834, 1.442695
    %v2838 = vpow.pop %v2837
    %2839 = vadd.xlane.f32.xlu0 %v2836
    %v2840 = vpop.xlane.xlu0 %2839
    %2841 = vadd.xlane.f32.xlu0 %v2838
    %v2842 = vpop.xlane.xlu0 %2841
    %v2843 = vlog2.pop %v2840
    %v2844 = vmul.f32 %v2843, 0.6931472
    %v2845 = vlog2.pop %v2842
    %v2846 = vmul.f32 %v2845, 0.6931472
    %v2847 = vadd.f32 %v2830, %v2844
    %v2848 = vadd.f32 %v2832, %v2846
    %2849 = vset.pattern.permute.xlu0 1
    %2850 = vperm.xlu0 %2849, %v32
    %v2851 = vpop.permute.xlu0 %2850
    %2852 = vset.pattern.permute.xlu0 1
    %2853 = vperm.xlu0 %2852, %v33
    %v2854 = vpop.permute.xlu0 %2853
    %vm2855 = vcmp.eq.s32.totalorder %v35, %v2851
    %vm2856 = vcmp.eq.s32.totalorder %v35, %v2854
    %v2857 = vsel %vm2855, 1, 0
    %v2858 = vsel %vm2856, 1, 0
    %v2859 = vcvt.s32.f32 %v2857
    %v2860 = vcvt.s32.f32 %v2858
    %v2861 = vmul.f32 %v2819, %v2859
    %v2862 = vmul.f32 %v2822, %v2860
    %2863 = vadd.xlane.f32.xlu0 %v2861
    %v2864 = vpop.xlane.xlu0 %2863
    %2865 = vadd.xlane.f32.xlu0 %v2862
    %v2866 = vpop.xlane.xlu0 %2865
    %v2867 = vsub.f32 %v2847, %v2864
    %v2868 = vsub.f32 %v2848, %v2866
    %vm2869 = vcmask 7168
    %v2870 = vsel %vm2869, %v2867, 0.0
    %v2871 = vsel %vm2869, %v2868, 0.0
    %v2872 = vadd.f32 %v2870, %v2871
    %2873 = vadd.xlane.f32.xlu0 %v2872
    %v2874 = vpop.xlane.xlu0 %2873
    %v2875 = vrot.slane %v2874, 4
    %v2876 = vadd.f32 %v2874, %v2875
    %v2877 = vrot.slane %v2876, 2
    %v2878 = vadd.f32 %v2876, %v2877
    %v2879 = vrot.slane %v2878, 1
    %v2880 = vadd.f32 %v2878, %v2879
    %s2881 = vtos %v2880
    %s2882 = smul.f32 %s2881, 0.0625
    %s2883 = scalar_lea.smem [#allocation2], 0
    %2884 = sst [smem:[%s2883]] %s2882
    // Predicated region
    $region34: #{sep_layer_bert_forward.1} parent=1 // pred_check
      _
    $region35: #{sep_layer_bert_forward.1} parent=1 // pred_check_branch
      %2886 = sbr.rel (0) target = $region37
    $region36: #{sep_layer_bert_forward.1} parent=1 // pred_region
      _
    $region37: #{sep_layer_bert_forward.1} parent=1 // pred_fallthru
      _
    // Predicated region
    $region38: #{sep_layer_bert_forward.1} parent=1 // pred_check
      _
    $region39: #{sep_layer_bert_forward.1} parent=1 // pred_check_branch
      %2888 = sbr.rel (0) target = $region41
    $region40: #{sep_layer_bert_forward.1} parent=1 // pred_region
      %2890 = vsyncadd [#allocation3], 0
      %s2892 = sshll.u32 %s9, 4
      %s2893 = int_to_ptr.hbm [resolvable:$true] %s2892
      %2895 = dma.smem_to_hbm [#allocation2], 16, %s2893, [#allocation3]
    $region41: #{sep_layer_bert_forward.1} parent=1 // pred_fallthru
      _
    // Predicated region
    $region42: #{sep_layer_bert_forward.1} parent=1 // pred_check
      _
    $region43: #{sep_layer_bert_forward.1} parent=1 // pred_check_branch
      %2897 = sbr.rel (0) target = $region45
    $region44: #{sep_layer_bert_forward.1} parent=1 // pred_region
      _
    $region45: #{sep_layer_bert_forward.1} parent=1 // pred_fallthru
      _
    // Predicated region
    $region46: #{sep_layer_bert_forward.1} parent=1 // pred_check
      _
    $region47: #{sep_layer_bert_forward.1} parent=1 // pred_check_branch
      %2899 = sbr.rel (0) target = $region49
    $region48: #{sep_layer_bert_forward.1} parent=1 // pred_region
      %2901 = dma.done [#allocation3], 16
    $region49: #{sep_layer_bert_forward.1} parent=1 // pred_fallthru
      _
    %2902 = sfence
    %2903 = vsyncpa [#allocation3], 1

</llo_original>
